<compile_context>
chip_gen: v7x
topology: tpu7x:2x2x1
jax: 0.10.0
libtpu: 0.0.40
codegen_flags: <defaults>
</compile_context>

<pallas_src>
import functools
import math

import jax
import jax.numpy as jnp
import numpy as np
from jax import lax
from jax.experimental import pallas as pl
from jax.experimental.pallas import tpu as pltpu

_LN_EPS = 1e-5
_NEG = jnp.float32(-1e9)
_VMEM_LIMIT = 64 * 1024 * 1024          # explicit scoped-VMEM budget
_COMPUTE_DTYPE = jnp.bfloat16           # MXU operand dtype (accumulate in f32)


def _row_tile(m, cap):
    if m <= cap:
        return m
    assert m % cap == 0, f"row count {m} must divide by tile {cap}"
    return cap


def _ln_f32(x, g, b):
    """LayerNorm in f32. x: (tm, D); g/b: (1, D)."""
    mu = jnp.mean(x, axis=-1, keepdims=True)
    xc = x - mu
    var = jnp.mean(xc * xc, axis=-1, keepdims=True)
    return xc * lax.rsqrt(var + _LN_EPS) * g + b


# ---------------------------------------------------------------------------
# Kernels
# ---------------------------------------------------------------------------
def _ln_qkv_kernel(x_ref, g_ref, b_ref, w_ref, bias_ref, q_ref, k_ref, v_ref, *,
                   d_model):
    # x: (tm, D); w: (D, 3D) packed Q|K|V; bias: (1, 3D); outputs: (tm, D) each.
    x = x_ref[...].astype(jnp.float32)
    xn = _ln_f32(x, g_ref[...].astype(jnp.float32), b_ref[...].astype(jnp.float32))
    acc = jnp.dot(xn.astype(_COMPUTE_DTYPE), w_ref[...].astype(_COMPUTE_DTYPE),
                  preferred_element_type=jnp.float32)
    acc = acc + bias_ref[...].astype(jnp.float32)
    d = d_model
    q_ref[...] = acc[:, 0:d].astype(q_ref.dtype)
    k_ref[...] = acc[:, d:2 * d].astype(k_ref.dtype)
    v_ref[...] = acc[:, 2 * d:3 * d].astype(v_ref.dtype)


def _proj_kv_kernel(x_ref, w_ref, bias_ref, k_ref, v_ref, *, d_model):
    # x: (tm, D); w: (D, 2D) packed K|V; bias: (1, 2D); outputs: (tm, D) each.
    acc = jnp.dot(x_ref[...].astype(_COMPUTE_DTYPE), w_ref[...].astype(_COMPUTE_DTYPE),
                  preferred_element_type=jnp.float32)
    acc = acc + bias_ref[...].astype(jnp.float32)
    d = d_model
    k_ref[...] = acc[:, 0:d].astype(k_ref.dtype)
    v_ref[...] = acc[:, d:2 * d].astype(v_ref.dtype)


def _mha_core(q, k, v, bias, o_ref, w_ref, *, num_heads, head_dim):
    """All heads of one batch element. q: (Sq, D); k/v: (Sk, D); bias f32 or None.
    Writes the merged (1, Sq, D) context once (lane-dense) and the
    head-averaged attention weights once."""
    scale = 1.0 / math.sqrt(head_dim)
    sq = q.shape[0]
    sk = k.shape[0]
    ctx_parts = []
    w_sum = jnp.zeros((sq, sk), jnp.float32)
    for h in range(num_heads):                       # static unroll over heads
        sl = slice(h * head_dim, (h + 1) * head_dim)
        qh = q[:, sl].astype(_COMPUTE_DTYPE)
        kh = k[:, sl].astype(_COMPUTE_DTYPE)
        vh = v[:, sl].astype(_COMPUTE_DTYPE)
        s = lax.dot_general(qh, kh, (((1,), (1,)), ((), ())),
                            preferred_element_type=jnp.float32) * scale
        if bias is not None:
            s = s + bias                             # mask bias stays in f32
        m = jnp.max(s, axis=-1, keepdims=True)
        p = jnp.exp(s - m)
        inv = pl.reciprocal(jnp.sum(p, axis=-1, keepdims=True), approx=True)
        attn = p * inv
        w_sum = w_sum + attn
        ctx_parts.append(jnp.dot(attn.astype(_COMPUTE_DTYPE), vh,
                                 preferred_element_type=jnp.float32))
    ctx = jnp.concatenate(ctx_parts, axis=-1)        # (Sq, D) — single dense store
    o_ref[0] = ctx.astype(o_ref.dtype)
    w_ref[0] = (w_sum * (1.0 / num_heads)).astype(w_ref.dtype)


def _attn_kernel_bias(q_ref, k_ref, v_ref, mask_ref, pad_ref, o_ref, w_ref, *,
                      num_heads, head_dim):
    # mask: (Sq, Sk) additive f32 (attn_mask); pad: (1, 1, Sk) additive f32.
    bias = mask_ref[...].astype(jnp.float32) + pad_ref[0].astype(jnp.float32)
    _mha_core(q_ref[0], k_ref[0], v_ref[0], bias, o_ref, w_ref,
              num_heads=num_heads, head_dim=head_dim)


def _attn_kernel_nobias(q_ref, k_ref, v_ref, o_ref, w_ref, *, num_heads, head_dim):
    _mha_core(q_ref[0], k_ref[0], v_ref[0], None, o_ref, w_ref,
              num_heads=num_heads, head_dim=head_dim)


def _proj_add_ln_q_kernel(ctx_ref, res_ref, wo_ref, bo_ref, g_ref, b_ref,
                          wq_ref, bq_ref, sum_ref, q_ref):
    # out-proj + residual add + LayerNorm + Q projection for the next MHA.
    proj = jnp.dot(ctx_ref[...].astype(_COMPUTE_DTYPE), wo_ref[...].astype(_COMPUTE_DTYPE),
                   preferred_element_type=jnp.float32)
    s = proj + bo_ref[...].astype(jnp.float32) + res_ref[...].astype(jnp.float32)
    sum_ref[...] = s.astype(sum_ref.dtype)
    y = _ln_f32(s, g_ref[...].astype(jnp.float32), b_ref[...].astype(jnp.float32))
    q = jnp.dot(y.astype(_COMPUTE_DTYPE), wq_ref[...].astype(_COMPUTE_DTYPE),
                preferred_element_type=jnp.float32)
    q_ref[...] = (q + bq_ref[...].astype(jnp.float32)).astype(q_ref.dtype)


def _proj_add_kernel(ctx_ref, res_ref, wo_ref, bo_ref, sum_ref):
    proj = jnp.dot(ctx_ref[...].astype(_COMPUTE_DTYPE), wo_ref[...].astype(_COMPUTE_DTYPE),
                   preferred_element_type=jnp.float32)
    s = proj + bo_ref[...].astype(jnp.float32) + res_ref[...].astype(jnp.float32)
    sum_ref[...] = s.astype(sum_ref.dtype)


def _ffn_add_ln_kernel(x_ref, g2_ref, b2_ref, w1_ref, bias1_ref, w2_ref, bias2_ref,
                       g3_ref, b3_ref, out_ref, acc_ref):
    # layernorm2 -> Linear -> ReLU -> (accumulate over d_ff tiles) -> Linear
    # -> + residual -> layernorm3.  Grid: (row_tiles, dff_tiles).
    kdx = pl.program_id(1)
    s = x_ref[...].astype(jnp.float32)               # residual (xs2)
    y = _ln_f32(s, g2_ref[...].astype(jnp.float32), b2_ref[...].astype(jnp.float32))
    h = jnp.dot(y.astype(_COMPUTE_DTYPE), w1_ref[...].astype(_COMPUTE_DTYPE),
                preferred_element_type=jnp.float32)
    h = jnp.maximum(h + bias1_ref[...].astype(jnp.float32), 0.0)

    @pl.when(kdx == 0)
    def _():
        acc_ref[...] = jnp.zeros_like(acc_ref)

    acc_ref[...] += jnp.dot(h.astype(_COMPUTE_DTYPE), w2_ref[...].astype(_COMPUTE_DTYPE),
                            preferred_element_type=jnp.float32)

    @pl.when(kdx == pl.num_programs(1) - 1)
    def _():
        z = acc_ref[...] + bias2_ref[...].astype(jnp.float32) + s
        out = _ln_f32(z, g3_ref[...].astype(jnp.float32), b3_ref[...].astype(jnp.float32))
        out_ref[...] = out.astype(out_ref.dtype)


# ---------------------------------------------------------------------------
# Pallas-call wrappers
# ---------------------------------------------------------------------------
def _cparams(*semantics):
    return pltpu.CompilerParams(dimension_semantics=semantics,
                                vmem_limit_bytes=_VMEM_LIMIT)


def ln_qkv(x2d, g, b, w_qkv, b_qkv, *, block_rows=512):
    m, d = x2d.shape
    tm = _row_tile(m, block_rows)
    kern = functools.partial(_ln_qkv_kernel, d_model=d)
    return pl.pallas_call(
        kern,
        out_shape=tuple(jax.ShapeDtypeStruct((m, d), x2d.dtype) for _ in range(3)),
        grid=(m // tm,),
        in_specs=[
            pl.BlockSpec((tm, d), lambda i: (i, 0)),
            pl.BlockSpec((1, d), lambda i: (0, 0)),
            pl.BlockSpec((1, d), lambda i: (0, 0)),
            pl.BlockSpec((d, 3 * d), lambda i: (0, 0)),
            pl.BlockSpec((1, 3 * d), lambda i: (0, 0)),
        ],
        out_specs=tuple(pl.BlockSpec((tm, d), lambda i: (i, 0)) for _ in range(3)),
        compiler_params=_cparams("parallel"),
    )(x2d, g.reshape(1, d), b.reshape(1, d), w_qkv, b_qkv.reshape(1, 3 * d))


def proj_kv(x2d, w_kv, b_kv, *, block_rows=512):
    m, d = x2d.shape
    n2 = w_kv.shape[1]
    tm = _row_tile(m, block_rows)
    kern = functools.partial(_proj_kv_kernel, d_model=d)
    return pl.pallas_call(
        kern,
        out_shape=tuple(jax.ShapeDtypeStruct((m, d), x2d.dtype) for _ in range(2)),
        grid=(m // tm,),
        in_specs=[
            pl.BlockSpec((tm, d), lambda i: (i, 0)),
            pl.BlockSpec((d, n2), lambda i: (0, 0)),
            pl.BlockSpec((1, n2), lambda i: (0, 0)),
        ],
        out_specs=tuple(pl.BlockSpec((tm, d), lambda i: (i, 0)) for _ in range(2)),
        compiler_params=_cparams("parallel"),
    )(x2d, w_kv, b_kv.reshape(1, n2))


def attention(q, k, v, num_heads, attn_bias=None, pad_bias=None):
    """q: (B, Sq, D); k/v: (B, Sk, D).
    attn_bias: (Sq, Sk) additive f32 or None; pad_bias: (B, 1, Sk) additive f32 or None.
    Returns (context (B, Sq, D), head-averaged weights (B, Sq, Sk) f32)."""
    b, sq, d = q.shape
    sk = k.shape[1]
    dh = d // num_heads

    in_specs = [
        pl.BlockSpec((1, sq, d), lambda bi: (bi, 0, 0)),
        pl.BlockSpec((1, sk, d), lambda bi: (bi, 0, 0)),
        pl.BlockSpec((1, sk, d), lambda bi: (bi, 0, 0)),
    ]
    args = [q, k, v]
    if attn_bias is not None:
        if pad_bias is None:
            pad_bias = jnp.zeros((b, 1, sk), jnp.float32)
        kern = functools.partial(_attn_kernel_bias, num_heads=num_heads, head_dim=dh)
        in_specs += [
            pl.BlockSpec((sq, sk), lambda bi: (0, 0)),
            pl.BlockSpec((1, 1, sk), lambda bi: (bi, 0, 0)),
        ]
        args += [attn_bias, pad_bias]
    else:
        kern = functools.partial(_attn_kernel_nobias, num_heads=num_heads, head_dim=dh)

    return pl.pallas_call(
        kern,
        out_shape=(jax.ShapeDtypeStruct((b, sq, d), q.dtype),
                   jax.ShapeDtypeStruct((b, sq, sk), jnp.float32)),
        grid=(b,),
        in_specs=in_specs,
        out_specs=(pl.BlockSpec((1, sq, d), lambda bi: (bi, 0, 0)),
                   pl.BlockSpec((1, sq, sk), lambda bi: (bi, 0, 0))),
        compiler_params=_cparams("parallel"),
    )(*args)


def proj_add_ln_q(ctx2d, res2d, wo, bo, g, bln, wq, bq, *, block_rows=512):
    m, d = ctx2d.shape
    tm = _row_tile(m, block_rows)
    return pl.pallas_call(
        _proj_add_ln_q_kernel,
        out_shape=(jax.ShapeDtypeStruct((m, d), ctx2d.dtype),
                   jax.ShapeDtypeStruct((m, d), ctx2d.dtype)),
        grid=(m // tm,),
        in_specs=[
            pl.BlockSpec((tm, d), lambda i: (i, 0)),
            pl.BlockSpec((tm, d), lambda i: (i, 0)),
            pl.BlockSpec((d, d), lambda i: (0, 0)),
            pl.BlockSpec((1, d), lambda i: (0, 0)),
            pl.BlockSpec((1, d), lambda i: (0, 0)),
            pl.BlockSpec((1, d), lambda i: (0, 0)),
            pl.BlockSpec((d, d), lambda i: (0, 0)),
            pl.BlockSpec((1, d), lambda i: (0, 0)),
        ],
        out_specs=(pl.BlockSpec((tm, d), lambda i: (i, 0)),
                   pl.BlockSpec((tm, d), lambda i: (i, 0))),
        compiler_params=_cparams("parallel"),
    )(ctx2d, res2d, wo, bo.reshape(1, d), g.reshape(1, d), bln.reshape(1, d),
      wq, bq.reshape(1, d))


def proj_add(ctx2d, res2d, wo, bo, *, block_rows=512):
    m, d = ctx2d.shape
    tm = _row_tile(m, block_rows)
    return pl.pallas_call(
        _proj_add_kernel,
        out_shape=jax.ShapeDtypeStruct((m, d), ctx2d.dtype),
        grid=(m // tm,),
        in_specs=[
            pl.BlockSpec((tm, d), lambda i: (i, 0)),
            pl.BlockSpec((tm, d), lambda i: (i, 0)),
            pl.BlockSpec((d, d), lambda i: (0, 0)),
            pl.BlockSpec((1, d), lambda i: (0, 0)),
        ],
        out_specs=pl.BlockSpec((tm, d), lambda i: (i, 0)),
        compiler_params=_cparams("parallel"),
    )(ctx2d, res2d, wo, bo.reshape(1, d))


def ffn_add_ln(x2d, g2, b2, w1, bias1, w2, bias2, g3, b3, *,
               block_rows=512, block_ff=1024):
    m, d = x2d.shape
    dff = w1.shape[1]
    tm = _row_tile(m, block_rows)
    tff = dff if dff <= block_ff else block_ff
    assert dff % tff == 0
    return pl.pallas_call(
        _ffn_add_ln_kernel,
        out_shape=jax.ShapeDtypeStruct((m, d), x2d.dtype),
        grid=(m // tm, dff // tff),
        in_specs=[
            pl.BlockSpec((tm, d), lambda i, j: (i, 0)),
            pl.BlockSpec((1, d), lambda i, j: (0, 0)),
            pl.BlockSpec((1, d), lambda i, j: (0, 0)),
            pl.BlockSpec((d, tff), lambda i, j: (0, j)),
            pl.BlockSpec((1, tff), lambda i, j: (0, j)),
            pl.BlockSpec((tff, d), lambda i, j: (j, 0)),
            pl.BlockSpec((1, d), lambda i, j: (0, 0)),
            pl.BlockSpec((1, d), lambda i, j: (0, 0)),
            pl.BlockSpec((1, d), lambda i, j: (0, 0)),
        ],
        out_specs=pl.BlockSpec((tm, d), lambda i, j: (i, 0)),
        scratch_shapes=[pltpu.VMEM((tm, d), jnp.float32)],
        compiler_params=_cparams("parallel", "arbitrary"),
    )(x2d, g2.reshape(1, d), b2.reshape(1, d), w1, bias1.reshape(1, dff),
      w2, bias2.reshape(1, d), g3.reshape(1, d), b3.reshape(1, d))


# ---------------------------------------------------------------------------
# DecoderLayer forward (Pallas)
# ---------------------------------------------------------------------------
@functools.partial(jax.jit, static_argnames=("num_heads",))
def decoder_layer(params, padded_targets, enc_output, pad_mask_dec, slf_attn_mask,
                  num_heads):
    # TODO(synk): dropout1/2/3 and the attention-prob dropout are identity
    #             (eval mode); training-mode stochastic dropout is not implemented.
    b, s, d = padded_targets.shape
    x_flat = padded_targets.reshape(b * s, d)
    p1 = params["mha1"]
    p2 = params["mha2"]

    # (1) pre_norm + packed Q|K|V projection for self-attention (reads x once)
    q1, k1, v1 = ln_qkv(x_flat, params["pre_g"], params["pre_b"],
                        p1["w_qkv"], p1["b_qkv"])

    # (2) self-attention. Masks stay small: (S,S) attn-mask bias + (B,1,S) pad bias.
    attn_bias = jnp.where(slf_attn_mask, _NEG, jnp.float32(0.0)).astype(jnp.float32)
    pad_bias = jnp.where(pad_mask_dec, _NEG,
                         jnp.float32(0.0)).astype(jnp.float32)[:, None, :]
    ctx1, attn1 = attention(q1.reshape(b, s, d), k1.reshape(b, s, d),
                            v1.reshape(b, s, d), num_heads, attn_bias, pad_bias)

    if enc_output is not None:
        # (3) mha1 out-proj + residual add + layernorm1 + cross-attn Q projection
        xs1, q2 = proj_add_ln_q(ctx1.reshape(b * s, d), x_flat,
                                p1["wo"], p1["bo"],
                                params["ln1_g"], params["ln1_b"],
                                p2["wq"], p2["bq"])
        s_enc = enc_output.shape[1]
        # (4) packed K|V projection of enc_output (no LayerNorm on it)
        k2, v2 = proj_kv(enc_output.reshape(b * s_enc, d), p2["w_kv"], p2["b_kv"])
        # (5) cross-attention; bias skipped (enc_pad_mask is all-False -> zero bias)
        ctx2, attn2 = attention(q2.reshape(b, s, d), k2.reshape(b, s_enc, d),
                                v2.reshape(b, s_enc, d), num_heads)
        # (6) mha2 out-proj + residual add (LN2 lives in the FFN kernel prologue)
        xs2 = proj_add(ctx2.reshape(b * s, d), xs1, p2["wo"], p2["bo"])
    else:
        # torch branch: mha2_output = identity(padded_targets)
        xs1 = proj_add(ctx1.reshape(b * s, d), x_flat, p1["wo"], p1["bo"])
        xs2 = xs1 + x_flat   # trivial elementwise add on the rarely-used branch
        attn2 = jnp.zeros_like(attn1)

    # (7) layernorm2 -> FFN (tiled over d_ff) -> + residual -> layernorm3, fused
    out = ffn_add_ln(xs2, params["ln2_g"], params["ln2_b"],
                     params["w1"], params["b1"], params["w2"], params["b2"],
                     params["ln3_g"], params["ln3_b"])
    return out.reshape(b, s, d), attn1, attn2


# ---------------------------------------------------------------------------
# Pure-JAX reference (mirror of the torch module, for verification)
# ---------------------------------------------------------------------------
def _ref_ln(x, g, b):
    mu = x.mean(-1, keepdims=True)
    var = ((x - mu) ** 2).mean(-1, keepdims=True)
    return (x - mu) / jnp.sqrt(var + _LN_EPS) * g + b


def _ref_attention(q, k, v, bias, num_heads):
    hp = lax.Precision.HIGHEST
    b, sq, d = q.shape
    sk = k.shape[1]
    dh = d // num_heads
    qh = q.reshape(b, sq, num_heads, dh).transpose(0, 2, 1, 3)
    kh = k.reshape(b, sk, num_heads, dh).transpose(0, 2, 1, 3)
    vh = v.reshape(b, sk, num_heads, dh).transpose(0, 2, 1, 3)
    s = jnp.einsum("bhqd,bhkd->bhqk", qh, kh, precision=hp) / math.sqrt(dh)
    if bias is not None:
        s = s + bias[:, None]
    a = jax.nn.softmax(s, axis=-1)
    ctx = jnp.einsum("bhqk,bhkd->bhqd", a, vh, precision=hp)
    return ctx.transpose(0, 2, 1, 3).reshape(b, sq, d), a.mean(axis=1)


def _ref_decoder_layer(params, x, enc, pad_mask, slf_mask, num_heads):
    hp = lax.Precision.HIGHEST
    d = x.shape[-1]
    p1, p2 = params["mha1"], params["mha2"]

    xn = _ref_ln(x, params["pre_g"], params["pre_b"])
    qkv = jnp.dot(xn, p1["w_qkv"], precision=hp) + p1["b_qkv"]
    q1, k1, v1 = qkv[..., :d], qkv[..., d:2 * d], qkv[..., 2 * d:]
    bias1 = (jnp.where(slf_mask, _NEG, 0.0)[None]
             + jnp.where(pad_mask, _NEG, 0.0)[:, None, :]).astype(jnp.float32)
    ctx1, a1 = _ref_attention(q1, k1, v1, bias1, num_heads)
    m1 = jnp.dot(ctx1, p1["wo"], precision=hp) + p1["bo"]

    xs1 = x + m1
    xl1 = _ref_ln(xs1, params["ln1_g"], params["ln1_b"])
    q2 = jnp.dot(xl1, p2["wq"], precision=hp) + p2["bq"]
    kv = jnp.dot(enc, p2["w_kv"], precision=hp) + p2["b_kv"]
    k2, v2 = kv[..., :d], kv[..., d:]
    ctx2, a2 = _ref_attention(q2, k2, v2, None, num_heads)
    m2 = jnp.dot(ctx2, p2["wo"], precision=hp) + p2["bo"]

    xs2 = xs1 + m2
    xl2 = _ref_ln(xs2, params["ln2_g"], params["ln2_b"])
    h = jnp.maximum(jnp.dot(xl2, params["w1"], precision=hp) + params["b1"], 0.0)
    f = jnp.dot(h, params["w2"], precision=hp) + params["b2"]
    out = _ref_ln(xs2 + f, params["ln3_g"], params["ln3_b"])
    return out, a1, a2


# ---------------------------------------------------------------------------
# Parameter init + demo
# ---------------------------------------------------------------------------
def init_params(key, d_model, d_ff):
    keys = iter(jax.random.split(key, 32))
    scale = 0.05

    def w(shape):
        return jax.random.normal(next(keys), shape, jnp.float32) * scale

    def ln_params():
        g = 1.0 + 0.1 * jax.random.normal(next(keys), (d_model,), jnp.float32)
        b = 0.1 * jax.random.normal(next(keys), (d_model,), jnp.float32)
        return g, b

    mha1 = dict(w_qkv=w((d_model, 3 * d_model)), b_qkv=w((3 * d_model,)),
                wo=w((d_model, d_model)), bo=w((d_model,)))
    mha2 = dict(wq=w((d_model, d_model)), bq=w((d_model,)),
                w_kv=w((d_model, 2 * d_model)), b_kv=w((2 * d_model,)),
                wo=w((d_model, d_model)), bo=w((d_model,)))
    pre_g, pre_b = ln_params()
    ln1_g, ln1_b = ln_params()
    ln2_g, ln2_b = ln_params()
    ln3_g, ln3_b = ln_params()
    return dict(
        mha1=mha1, mha2=mha2,
        w1=w((d_model, d_ff)), b1=w((d_ff,)),
        w2=w((d_ff, d_model)), b2=w((d_model,)),
        pre_g=pre_g, pre_b=pre_b,
        ln1_g=ln1_g, ln1_b=ln1_b,
        ln2_g=ln2_g, ln2_b=ln2_b,
        ln3_g=ln3_g, ln3_b=ln3_b,
    )


if __name__ == "__main__":
    key = jax.random.PRNGKey(0)
    B, S, S_ENC, D_MODEL, NUM_HEADS, D_FF = 2, 8, 16, 32, 4, 64

    kx, ke, kp = jax.random.split(key, 3)
    params = init_params(kp, D_MODEL, D_FF)
    padded_targets = jax.random.normal(kx, (B, S, D_MODEL), jnp.float32)
    enc_output = jax.random.normal(ke, (B, S_ENC, D_MODEL), jnp.float32)

    # causal self-attention mask (True = not allowed) and decoder key-padding mask
    slf_attn_mask = jnp.triu(jnp.ones((S, S), jnp.bool_), k=1)
    pad_mask_dec = jnp.zeros((B, S), jnp.bool_).at[1, S - 2:].set(True)

    out, attn1, attn2 = decoder_layer(params, padded_targets, enc_output,
                                      pad_mask_dec, slf_attn_mask, NUM_HEADS)
    out, attn1, attn2 = jax.block_until_ready((out, attn1, attn2))

    ref_out, ref_a1, ref_a2 = _ref_decoder_layer(params, padded_targets, enc_output,
                                                 pad_mask_dec, slf_attn_mask, NUM_HEADS)
    # bf16 MXU operands (f32 accumulation) -> slightly relaxed tolerance vs f32 ref
    np.testing.assert_allclose(np.asarray(out), np.asarray(ref_out), rtol=2e-2, atol=2e-2)
    np.testing.assert_allclose(np.asarray(attn1), np.asarray(ref_a1), rtol=2e-2, atol=2e-2)
    np.testing.assert_allclose(np.asarray(attn2), np.asarray(ref_a2), rtol=2e-2, atol=2e-2)

    print("KERNEL_OK")
</pallas_src>

<mosaic_0001>
module attributes {stable_mosaic.version = 11 : i64} {
  func.func @_attn_kernel_bias(%arg0: i32, %arg1: memref<1x8x32xf32, #tpu.memory_space<vmem>>, %arg2: memref<1x8x32xf32, #tpu.memory_space<vmem>>, %arg3: memref<1x8x32xf32, #tpu.memory_space<vmem>>, %arg4: memref<8x8xf32, #tpu.memory_space<vmem>>, %arg5: memref<1x1x8xf32, #tpu.memory_space<vmem>>, %arg6: memref<1x8x32xf32, #tpu.memory_space<vmem>>, %arg7: memref<1x8x8xf32, #tpu.memory_space<vmem>>) attributes {dimension_semantics = [#tpu.dimension_semantics<parallel>], iteration_bounds = array<i64: 2>, scalar_prefetch = 0 : i64, scratch_operands = 0 : i64, tpu.core_type = #tpu.core_type<tc>, window_params = [{transform_indices = @transform_0, window_bounds = array<i64: 1, 8, 32>}, {transform_indices = @transform_1, window_bounds = array<i64: 1, 8, 32>}, {transform_indices = @transform_2, window_bounds = array<i64: 1, 8, 32>}, {pipeline_mode = #tpu.pipeline_mode<synchronous>, transform_indices = @transform_3, window_bounds = array<i64: 8, 8>}, {transform_indices = @transform_4, window_bounds = array<i64: 1, 1, 8>}, {transform_indices = @transform_5, window_bounds = array<i64: 1, 8, 32>}, {transform_indices = @transform_6, window_bounds = array<i64: 1, 8, 8>}]} {
    %c0 = arith.constant 0 : index
    %c0_0 = arith.constant 0 : index
    %0 = vector.load %arg4[%c0, %c0_0] : memref<8x8xf32, #tpu.memory_space<vmem>>, vector<8x8xf32>
    %c0_1 = arith.constant 0 : index
    %c0_2 = arith.constant 0 : index
    %c0_3 = arith.constant 0 : index
    %1 = vector.load %arg5[%c0_1, %c0_2, %c0_3] : memref<1x1x8xf32, #tpu.memory_space<vmem>>, vector<1x1x8xf32>
    %2 = vector.shape_cast %1 : vector<1x1x8xf32> to vector<1x8xf32>
    %3 = vector.broadcast %2 : vector<1x8xf32> to vector<8x8xf32>
    %4 = arith.addf %0, %3 : vector<8x8xf32>
    %c0_4 = arith.constant 0 : index
    %c0_5 = arith.constant 0 : index
    %c0_6 = arith.constant 0 : index
    %5 = vector.load %arg1[%c0_4, %c0_5, %c0_6] : memref<1x8x32xf32, #tpu.memory_space<vmem>>, vector<1x8x32xf32>
    %6 = vector.shape_cast %5 : vector<1x8x32xf32> to vector<8x32xf32>
    %c0_7 = arith.constant 0 : index
    %c0_8 = arith.constant 0 : index
    %c0_9 = arith.constant 0 : index
    %7 = vector.load %arg2[%c0_7, %c0_8, %c0_9] : memref<1x8x32xf32, #tpu.memory_space<vmem>>, vector<1x8x32xf32>
    %8 = vector.shape_cast %7 : vector<1x8x32xf32> to vector<8x32xf32>
    %c0_10 = arith.constant 0 : index
    %c0_11 = arith.constant 0 : index
    %c0_12 = arith.constant 0 : index
    %9 = vector.load %arg3[%c0_10, %c0_11, %c0_12] : memref<1x8x32xf32, #tpu.memory_space<vmem>>, vector<1x8x32xf32>
    %10 = vector.shape_cast %9 : vector<1x8x32xf32> to vector<8x32xf32>
    %cst = arith.constant 0.000000e+00 : f32
    %11 = vector.broadcast %cst : f32 to vector<8x8xf32>
    %12 = vector.extract_strided_slice %6 {offsets = [0, 0], sizes = [8, 8], strides = [1, 1]} : vector<8x32xf32> to vector<8x8xf32>
    %13 = arith.truncf %12 : vector<8x8xf32> to vector<8x8xbf16>
    %14 = vector.extract_strided_slice %8 {offsets = [0, 0], sizes = [8, 8], strides = [1, 1]} : vector<8x32xf32> to vector<8x8xf32>
    %15 = arith.truncf %14 : vector<8x8xf32> to vector<8x8xbf16>
    %16 = vector.extract_strided_slice %10 {offsets = [0, 0], sizes = [8, 8], strides = [1, 1]} : vector<8x32xf32> to vector<8x8xf32>
    %17 = arith.truncf %16 : vector<8x8xf32> to vector<8x8xbf16>
    %cst_13 = arith.constant dense<0.000000e+00> : vector<8x8xf32>
    %18 = tpu.matmul %13, %15, %cst_13 {dimension_numbers = #tpu.dot_dimension_numbers<[1], [1], [0], [0], [0, 0, 1, 0], [], []>} : vector<8x8xbf16>, vector<8x8xbf16>, vector<8x8xf32> -> vector<8x8xf32>
    %cst_14 = arith.constant 0.353553385 : f32
    %19 = vector.broadcast %cst_14 : f32 to vector<8x8xf32>
    %20 = arith.mulf %18, %19 : vector<8x8xf32>
    %21 = arith.addf %20, %4 : vector<8x8xf32>
    %cst_15 = arith.constant dense<0xFF800000> : vector<8xf32>
    %22 = vector.multi_reduction <maximumf>, %21, %cst_15 [1] : vector<8x8xf32> to vector<8xf32>
    %23 = vector.shape_cast %22 : vector<8xf32> to vector<8x1xf32>
    %24 = vector.broadcast %23 : vector<8x1xf32> to vector<8x8xf32>
    %25 = arith.subf %21, %24 : vector<8x8xf32>
    %26 = math.exp %25 : vector<8x8xf32>
    %cst_16 = arith.constant dense<0.000000e+00> : vector<8xf32>
    %27 = vector.multi_reduction <add>, %26, %cst_16 [1] : vector<8x8xf32> to vector<8xf32>
    %28 = vector.shape_cast %27 : vector<8xf32> to vector<8x1xf32>
    %29 = tpu.reciprocal %28 {approx = true} : vector<8x1xf32> -> vector<8x1xf32>
    %30 = vector.broadcast %29 : vector<8x1xf32> to vector<8x8xf32>
    %31 = arith.mulf %26, %30 : vector<8x8xf32>
    %32 = arith.addf %11, %31 : vector<8x8xf32>
    %33 = arith.truncf %31 : vector<8x8xf32> to vector<8x8xbf16>
    %cst_17 = arith.constant dense<0.000000e+00> : vector<8x8xf32>
    %34 = tpu.matmul %33, %17, %cst_17 {dimension_numbers = #tpu.dot_dimension_numbers<[1], [0], [0], [1], [0, 0, 1, 1], [], []>} : vector<8x8xbf16>, vector<8x8xbf16>, vector<8x8xf32> -> vector<8x8xf32>
    %35 = vector.extract_strided_slice %6 {offsets = [0, 8], sizes = [8, 8], strides = [1, 1]} : vector<8x32xf32> to vector<8x8xf32>
    %36 = arith.truncf %35 : vector<8x8xf32> to vector<8x8xbf16>
    %37 = vector.extract_strided_slice %8 {offsets = [0, 8], sizes = [8, 8], strides = [1, 1]} : vector<8x32xf32> to vector<8x8xf32>
    %38 = arith.truncf %37 : vector<8x8xf32> to vector<8x8xbf16>
    %39 = vector.extract_strided_slice %10 {offsets = [0, 8], sizes = [8, 8], strides = [1, 1]} : vector<8x32xf32> to vector<8x8xf32>
    %40 = arith.truncf %39 : vector<8x8xf32> to vector<8x8xbf16>
    %cst_18 = arith.constant dense<0.000000e+00> : vector<8x8xf32>
    %41 = tpu.matmul %36, %38, %cst_18 {dimension_numbers = #tpu.dot_dimension_numbers<[1], [1], [0], [0], [0, 0, 1, 0], [], []>} : vector<8x8xbf16>, vector<8x8xbf16>, vector<8x8xf32> -> vector<8x8xf32>
    %cst_19 = arith.constant 0.353553385 : f32
    %42 = vector.broadcast %cst_19 : f32 to vector<8x8xf32>
    %43 = arith.mulf %41, %42 : vector<8x8xf32>
    %44 = arith.addf %43, %4 : vector<8x8xf32>
    %cst_20 = arith.constant dense<0xFF800000> : vector<8xf32>
    %45 = vector.multi_reduction <maximumf>, %44, %cst_20 [1] : vector<8x8xf32> to vector<8xf32>
    %46 = vector.shape_cast %45 : vector<8xf32> to vector<8x1xf32>
    %47 = vector.broadcast %46 : vector<8x1xf32> to vector<8x8xf32>
    %48 = arith.subf %44, %47 : vector<8x8xf32>
    %49 = math.exp %48 : vector<8x8xf32>
    %cst_21 = arith.constant dense<0.000000e+00> : vector<8xf32>
    %50 = vector.multi_reduction <add>, %49, %cst_21 [1] : vector<8x8xf32> to vector<8xf32>
    %51 = vector.shape_cast %50 : vector<8xf32> to vector<8x1xf32>
    %52 = tpu.reciprocal %51 {approx = true} : vector<8x1xf32> -> vector<8x1xf32>
    %53 = vector.broadcast %52 : vector<8x1xf32> to vector<8x8xf32>
    %54 = arith.mulf %49, %53 : vector<8x8xf32>
    %55 = arith.addf %32, %54 : vector<8x8xf32>
    %56 = arith.truncf %54 : vector<8x8xf32> to vector<8x8xbf16>
    %cst_22 = arith.constant dense<0.000000e+00> : vector<8x8xf32>
    %57 = tpu.matmul %56, %40, %cst_22 {dimension_numbers = #tpu.dot_dimension_numbers<[1], [0], [0], [1], [0, 0, 1, 1], [], []>} : vector<8x8xbf16>, vector<8x8xbf16>, vector<8x8xf32> -> vector<8x8xf32>
    %58 = vector.extract_strided_slice %6 {offsets = [0, 16], sizes = [8, 8], strides = [1, 1]} : vector<8x32xf32> to vector<8x8xf32>
    %59 = arith.truncf %58 : vector<8x8xf32> to vector<8x8xbf16>
    %60 = vector.extract_strided_slice %8 {offsets = [0, 16], sizes = [8, 8], strides = [1, 1]} : vector<8x32xf32> to vector<8x8xf32>
    %61 = arith.truncf %60 : vector<8x8xf32> to vector<8x8xbf16>
    %62 = vector.extract_strided_slice %10 {offsets = [0, 16], sizes = [8, 8], strides = [1, 1]} : vector<8x32xf32> to vector<8x8xf32>
    %63 = arith.truncf %62 : vector<8x8xf32> to vector<8x8xbf16>
    %cst_23 = arith.constant dense<0.000000e+00> : vector<8x8xf32>
    %64 = tpu.matmul %59, %61, %cst_23 {dimension_numbers = #tpu.dot_dimension_numbers<[1], [1], [0], [0], [0, 0, 1, 0], [], []>} : vector<8x8xbf16>, vector<8x8xbf16>, vector<8x8xf32> -> vector<8x8xf32>
    %cst_24 = arith.constant 0.353553385 : f32
    %65 = vector.broadcast %cst_24 : f32 to vector<8x8xf32>
    %66 = arith.mulf %64, %65 : vector<8x8xf32>
    %67 = arith.addf %66, %4 : vector<8x8xf32>
    %cst_25 = arith.constant dense<0xFF800000> : vector<8xf32>
    %68 = vector.multi_reduction <maximumf>, %67, %cst_25 [1] : vector<8x8xf32> to vector<8xf32>
    %69 = vector.shape_cast %68 : vector<8xf32> to vector<8x1xf32>
    %70 = vector.broadcast %69 : vector<8x1xf32> to vector<8x8xf32>
    %71 = arith.subf %67, %70 : vector<8x8xf32>
    %72 = math.exp %71 : vector<8x8xf32>
    %cst_26 = arith.constant dense<0.000000e+00> : vector<8xf32>
    %73 = vector.multi_reduction <add>, %72, %cst_26 [1] : vector<8x8xf32> to vector<8xf32>
    %74 = vector.shape_cast %73 : vector<8xf32> to vector<8x1xf32>
    %75 = tpu.reciprocal %74 {approx = true} : vector<8x1xf32> -> vector<8x1xf32>
    %76 = vector.broadcast %75 : vector<8x1xf32> to vector<8x8xf32>
    %77 = arith.mulf %72, %76 : vector<8x8xf32>
    %78 = arith.addf %55, %77 : vector<8x8xf32>
    %79 = arith.truncf %77 : vector<8x8xf32> to vector<8x8xbf16>
    %cst_27 = arith.constant dense<0.000000e+00> : vector<8x8xf32>
    %80 = tpu.matmul %79, %63, %cst_27 {dimension_numbers = #tpu.dot_dimension_numbers<[1], [0], [0], [1], [0, 0, 1, 1], [], []>} : vector<8x8xbf16>, vector<8x8xbf16>, vector<8x8xf32> -> vector<8x8xf32>
    %81 = vector.extract_strided_slice %6 {offsets = [0, 24], sizes = [8, 8], strides = [1, 1]} : vector<8x32xf32> to vector<8x8xf32>
    %82 = arith.truncf %81 : vector<8x8xf32> to vector<8x8xbf16>
    %83 = vector.extract_strided_slice %8 {offsets = [0, 24], sizes = [8, 8], strides = [1, 1]} : vector<8x32xf32> to vector<8x8xf32>
    %84 = arith.truncf %83 : vector<8x8xf32> to vector<8x8xbf16>
    %85 = vector.extract_strided_slice %10 {offsets = [0, 24], sizes = [8, 8], strides = [1, 1]} : vector<8x32xf32> to vector<8x8xf32>
    %86 = arith.truncf %85 : vector<8x8xf32> to vector<8x8xbf16>
    %cst_28 = arith.constant dense<0.000000e+00> : vector<8x8xf32>
    %87 = tpu.matmul %82, %84, %cst_28 {dimension_numbers = #tpu.dot_dimension_numbers<[1], [1], [0], [0], [0, 0, 1, 0], [], []>} : vector<8x8xbf16>, vector<8x8xbf16>, vector<8x8xf32> -> vector<8x8xf32>
    %cst_29 = arith.constant 0.353553385 : f32
    %88 = vector.broadcast %cst_29 : f32 to vector<8x8xf32>
    %89 = arith.mulf %87, %88 : vector<8x8xf32>
    %90 = arith.addf %89, %4 : vector<8x8xf32>
    %cst_30 = arith.constant dense<0xFF800000> : vector<8xf32>
    %91 = vector.multi_reduction <maximumf>, %90, %cst_30 [1] : vector<8x8xf32> to vector<8xf32>
    %92 = vector.shape_cast %91 : vector<8xf32> to vector<8x1xf32>
    %93 = vector.broadcast %92 : vector<8x1xf32> to vector<8x8xf32>
    %94 = arith.subf %90, %93 : vector<8x8xf32>
    %95 = math.exp %94 : vector<8x8xf32>
    %cst_31 = arith.constant dense<0.000000e+00> : vector<8xf32>
    %96 = vector.multi_reduction <add>, %95, %cst_31 [1] : vector<8x8xf32> to vector<8xf32>
    %97 = vector.shape_cast %96 : vector<8xf32> to vector<8x1xf32>
    %98 = tpu.reciprocal %97 {approx = true} : vector<8x1xf32> -> vector<8x1xf32>
    %99 = vector.broadcast %98 : vector<8x1xf32> to vector<8x8xf32>
    %100 = arith.mulf %95, %99 : vector<8x8xf32>
    %101 = arith.addf %78, %100 : vector<8x8xf32>
    %102 = arith.truncf %100 : vector<8x8xf32> to vector<8x8xbf16>
    %cst_32 = arith.constant dense<0.000000e+00> : vector<8x8xf32>
    %103 = tpu.matmul %102, %86, %cst_32 {dimension_numbers = #tpu.dot_dimension_numbers<[1], [0], [0], [1], [0, 0, 1, 1], [], []>} : vector<8x8xbf16>, vector<8x8xbf16>, vector<8x8xf32> -> vector<8x8xf32>
    %104 = tpu.concatenate %34, %57, %80, %103 in 1 : vector<8x8xf32>, vector<8x8xf32>, vector<8x8xf32>, vector<8x8xf32> -> vector<8x32xf32>
    %c0_33 = arith.constant 0 : index
    %c0_34 = arith.constant 0 : index
    %c0_35 = arith.constant 0 : index
    %105 = vector.load %arg6[%c0_33, %c0_34, %c0_35] : memref<1x8x32xf32, #tpu.memory_space<vmem>>, vector<1x8x32xf32>
    %106 = vector.shape_cast %105 : vector<1x8x32xf32> to vector<8x32xf32>
    %107 = vector.shape_cast %104 : vector<8x32xf32> to vector<1x8x32xf32>
    tpu.vector_store %arg6[%c0_33, %c0_34, %c0_35], %107 {strides = array<i32>} : memref<1x8x32xf32, #tpu.memory_space<vmem>>, vector<1x8x32xf32>,
    %cst_36 = arith.constant 2.500000e-01 : f32
    %108 = vector.broadcast %cst_36 : f32 to vector<8x8xf32>
    %109 = arith.mulf %101, %108 : vector<8x8xf32>
    %c0_37 = arith.constant 0 : index
    %c0_38 = arith.constant 0 : index
    %c0_39 = arith.constant 0 : index
    %110 = vector.load %arg7[%c0_37, %c0_38, %c0_39] : memref<1x8x8xf32, #tpu.memory_space<vmem>>, vector<1x8x8xf32>
    %111 = vector.shape_cast %110 : vector<1x8x8xf32> to vector<8x8xf32>
    %112 = vector.shape_cast %109 : vector<8x8xf32> to vector<1x8x8xf32>
    tpu.vector_store %arg7[%c0_37, %c0_38, %c0_39], %112 {strides = array<i32>} : memref<1x8x8xf32, #tpu.memory_space<vmem>>, vector<1x8x8xf32>,
    return
  }
  func.func @transform_0(%arg0: i32) -> (i32, i32, i32) {
    %c0_i32 = arith.constant 0 : i32
    %c0_i32_0 = arith.constant 0 : i32
    %c0_i32_1 = arith.constant 0 : i32
    return %arg0, %c0_i32, %c0_i32_0 : i32, i32, i32
  }
  func.func @transform_1(%arg0: i32) -> (i32, i32, i32) {
    %c0_i32 = arith.constant 0 : i32
    %c0_i32_0 = arith.constant 0 : i32
    %c0_i32_1 = arith.constant 0 : i32
    return %arg0, %c0_i32, %c0_i32_0 : i32, i32, i32
  }
  func.func @transform_2(%arg0: i32) -> (i32, i32, i32) {
    %c0_i32 = arith.constant 0 : i32
    %c0_i32_0 = arith.constant 0 : i32
    %c0_i32_1 = arith.constant 0 : i32
    return %arg0, %c0_i32, %c0_i32_0 : i32, i32, i32
  }
  func.func @transform_3(%arg0: i32) -> (i32, i32) {
    %c0_i32 = arith.constant 0 : i32
    %c0_i32_0 = arith.constant 0 : i32
    %c0_i32_1 = arith.constant 0 : i32
    return %c0_i32, %c0_i32_0 : i32, i32
  }
  func.func @transform_4(%arg0: i32) -> (i32, i32, i32) {
    %c0_i32 = arith.constant 0 : i32
    %c0_i32_0 = arith.constant 0 : i32
    %c0_i32_1 = arith.constant 0 : i32
    return %arg0, %c0_i32, %c0_i32_0 : i32, i32, i32
  }
  func.func @transform_5(%arg0: i32) -> (i32, i32, i32) {
    %c0_i32 = arith.constant 0 : i32
    %c0_i32_0 = arith.constant 0 : i32
    %c0_i32_1 = arith.constant 0 : i32
    return %arg0, %c0_i32, %c0_i32_0 : i32, i32, i32
  }
  func.func @transform_6(%arg0: i32) -> (i32, i32, i32) {
    %c0_i32 = arith.constant 0 : i32
    %c0_i32_0 = arith.constant 0 : i32
    %c0_i32_1 = arith.constant 0 : i32
    return %arg0, %c0_i32, %c0_i32_0 : i32, i32, i32
  }
}

module attributes {stable_mosaic.version = 11 : i64} {
  func.func @_ln_qkv_kernel(%arg0: i32, %arg1: memref<16x32xf32, #tpu.memory_space<vmem>>, %arg2: memref<1x32xf32, #tpu.memory_space<vmem>>, %arg3: memref<1x32xf32, #tpu.memory_space<vmem>>, %arg4: memref<32x96xf32, #tpu.memory_space<vmem>>, %arg5: memref<1x96xf32, #tpu.memory_space<vmem>>, %arg6: memref<16x32xf32, #tpu.memory_space<vmem>>, %arg7: memref<16x32xf32, #tpu.memory_space<vmem>>, %arg8: memref<16x32xf32, #tpu.memory_space<vmem>>) attributes {dimension_semantics = [#tpu.dimension_semantics<parallel>], iteration_bounds = array<i64: 1>, scalar_prefetch = 0 : i64, scratch_operands = 0 : i64, tpu.core_type = #tpu.core_type<tc>, window_params = [{transform_indices = @transform_0, window_bounds = array<i64: 16, 32>}, {pipeline_mode = #tpu.pipeline_mode<synchronous>, transform_indices = @transform_1, window_bounds = array<i64: 1, 32>}, {pipeline_mode = #tpu.pipeline_mode<synchronous>, transform_indices = @transform_2, window_bounds = array<i64: 1, 32>}, {pipeline_mode = #tpu.pipeline_mode<synchronous>, transform_indices = @transform_3, window_bounds = array<i64: 32, 96>}, {pipeline_mode = #tpu.pipeline_mode<synchronous>, transform_indices = @transform_4, window_bounds = array<i64: 1, 96>}, {transform_indices = @transform_5, window_bounds = array<i64: 16, 32>}, {transform_indices = @transform_6, window_bounds = array<i64: 16, 32>}, {transform_indices = @transform_7, window_bounds = array<i64: 16, 32>}]} {
    %c0 = arith.constant 0 : index
    %c0_0 = arith.constant 0 : index
    %0 = vector.load %arg1[%c0, %c0_0] : memref<16x32xf32, #tpu.memory_space<vmem>>, vector<16x32xf32>
    %c0_1 = arith.constant 0 : index
    %c0_2 = arith.constant 0 : index
    %1 = vector.load %arg2[%c0_1, %c0_2] : memref<1x32xf32, #tpu.memory_space<vmem>>, vector<1x32xf32>
    %c0_3 = arith.constant 0 : index
    %c0_4 = arith.constant 0 : index
    %2 = vector.load %arg3[%c0_3, %c0_4] : memref<1x32xf32, #tpu.memory_space<vmem>>, vector<1x32xf32>
    %cst = arith.constant dense<0.000000e+00> : vector<16xf32>
    %3 = vector.multi_reduction <add>, %0, %cst [1] : vector<16x32xf32> to vector<16xf32>
    %4 = vector.shape_cast %3 : vector<16xf32> to vector<16x1xf32>
    %cst_5 = arith.constant 3.200000e+01 : f32
    %5 = vector.broadcast %cst_5 : f32 to vector<16x1xf32>
    %6 = arith.divf %4, %5 : vector<16x1xf32>
    %7 = vector.broadcast %6 : vector<16x1xf32> to vector<16x32xf32>
    %8 = arith.subf %0, %7 : vector<16x32xf32>
    %9 = arith.mulf %8, %8 : vector<16x32xf32>
    %cst_6 = arith.constant dense<0.000000e+00> : vector<16xf32>
    %10 = vector.multi_reduction <add>, %9, %cst_6 [1] : vector<16x32xf32> to vector<16xf32>
    %11 = vector.shape_cast %10 : vector<16xf32> to vector<16x1xf32>
    %cst_7 = arith.constant 3.200000e+01 : f32
    %12 = vector.broadcast %cst_7 : f32 to vector<16x1xf32>
    %13 = arith.divf %11, %12 : vector<16x1xf32>
    %cst_8 = arith.constant 9.99999974E-6 : f32
    %14 = vector.broadcast %cst_8 : f32 to vector<16x1xf32>
    %15 = arith.addf %13, %14 : vector<16x1xf32>
    %16 = math.rsqrt %15 : vector<16x1xf32>
    %17 = vector.broadcast %16 : vector<16x1xf32> to vector<16x32xf32>
    %18 = arith.mulf %8, %17 : vector<16x32xf32>
    %19 = vector.broadcast %1 : vector<1x32xf32> to vector<16x32xf32>
    %20 = arith.mulf %18, %19 : vector<16x32xf32>
    %21 = vector.broadcast %2 : vector<1x32xf32> to vector<16x32xf32>
    %22 = arith.addf %20, %21 : vector<16x32xf32>
    %23 = arith.truncf %22 : vector<16x32xf32> to vector<16x32xbf16>
    %c0_9 = arith.constant 0 : index
    %c0_10 = arith.constant 0 : index
    %24 = vector.load %arg4[%c0_9, %c0_10] : memref<32x96xf32, #tpu.memory_space<vmem>>, vector<32x96xf32>
    %25 = arith.truncf %24 : vector<32x96xf32> to vector<32x96xbf16>
    %cst_11 = arith.constant dense<0.000000e+00> : vector<16x96xf32>
    %26 = tpu.matmul %23, %25, %cst_11 {dimension_numbers = #tpu.dot_dimension_numbers<[1], [0], [0], [1], [0, 0, 1, 1], [], []>} : vector<16x32xbf16>, vector<32x96xbf16>, vector<16x96xf32> -> vector<16x96xf32>
    %c0_12 = arith.constant 0 : index
    %c0_13 = arith.constant 0 : index
    %27 = vector.load %arg5[%c0_12, %c0_13] : memref<1x96xf32, #tpu.memory_space<vmem>>, vector<1x96xf32>
    %28 = vector.broadcast %27 : vector<1x96xf32> to vector<16x96xf32>
    %29 = arith.addf %26, %28 : vector<16x96xf32>
    %30 = vector.extract_strided_slice %29 {offsets = [0, 0], sizes = [16, 32], strides = [1, 1]} : vector<16x96xf32> to vector<16x32xf32>
    %c0_14 = arith.constant 0 : index
    %c0_15 = arith.constant 0 : index
    %31 = vector.load %arg6[%c0_14, %c0_15] : memref<16x32xf32, #tpu.memory_space<vmem>>, vector<16x32xf32>
    tpu.vector_store %arg6[%c0_14, %c0_15], %30 {strides = array<i32>} : memref<16x32xf32, #tpu.memory_space<vmem>>, vector<16x32xf32>,
    %32 = vector.extract_strided_slice %29 {offsets = [0, 32], sizes = [16, 32], strides = [1, 1]} : vector<16x96xf32> to vector<16x32xf32>
    %c0_16 = arith.constant 0 : index
    %c0_17 = arith.constant 0 : index
    %33 = vector.load %arg7[%c0_16, %c0_17] : memref<16x32xf32, #tpu.memory_space<vmem>>, vector<16x32xf32>
    tpu.vector_store %arg7[%c0_16, %c0_17], %32 {strides = array<i32>} : memref<16x32xf32, #tpu.memory_space<vmem>>, vector<16x32xf32>,
    %34 = vector.extract_strided_slice %29 {offsets = [0, 64], sizes = [16, 32], strides = [1, 1]} : vector<16x96xf32> to vector<16x32xf32>
    %c0_18 = arith.constant 0 : index
    %c0_19 = arith.constant 0 : index
    %35 = vector.load %arg8[%c0_18, %c0_19] : memref<16x32xf32, #tpu.memory_space<vmem>>, vector<16x32xf32>
    tpu.vector_store %arg8[%c0_18, %c0_19], %34 {strides = array<i32>} : memref<16x32xf32, #tpu.memory_space<vmem>>, vector<16x32xf32>,
    return
  }
  func.func @transform_0(%arg0: i32) -> (i32, i32) {
    %c0_i32 = arith.constant 0 : i32
    %c0_i32_0 = arith.constant 0 : i32
    return %arg0, %c0_i32 : i32, i32
  }
  func.func @transform_1(%arg0: i32) -> (i32, i32) {
    %c0_i32 = arith.constant 0 : i32
    %c0_i32_0 = arith.constant 0 : i32
    %c0_i32_1 = arith.constant 0 : i32
    return %c0_i32, %c0_i32_0 : i32, i32
  }
  func.func @transform_2(%arg0: i32) -> (i32, i32) {
    %c0_i32 = arith.constant 0 : i32
    %c0_i32_0 = arith.constant 0 : i32
    %c0_i32_1 = arith.constant 0 : i32
    return %c0_i32, %c0_i32_0 : i32, i32
  }
  func.func @transform_3(%arg0: i32) -> (i32, i32) {
    %c0_i32 = arith.constant 0 : i32
    %c0_i32_0 = arith.constant 0 : i32
    %c0_i32_1 = arith.constant 0 : i32
    return %c0_i32, %c0_i32_0 : i32, i32
  }
  func.func @transform_4(%arg0: i32) -> (i32, i32) {
    %c0_i32 = arith.constant 0 : i32
    %c0_i32_0 = arith.constant 0 : i32
    %c0_i32_1 = arith.constant 0 : i32
    return %c0_i32, %c0_i32_0 : i32, i32
  }
  func.func @transform_5(%arg0: i32) -> (i32, i32) {
    %c0_i32 = arith.constant 0 : i32
    %c0_i32_0 = arith.constant 0 : i32
    return %arg0, %c0_i32 : i32, i32
  }
  func.func @transform_6(%arg0: i32) -> (i32, i32) {
    %c0_i32 = arith.constant 0 : i32
    %c0_i32_0 = arith.constant 0 : i32
    return %arg0, %c0_i32 : i32, i32
  }
  func.func @transform_7(%arg0: i32) -> (i32, i32) {
    %c0_i32 = arith.constant 0 : i32
    %c0_i32_0 = arith.constant 0 : i32
    return %arg0, %c0_i32 : i32, i32
  }
}

module attributes {stable_mosaic.version = 11 : i64} {
  func.func @_proj_kv_kernel(%arg0: i32, %arg1: memref<32x32xf32, #tpu.memory_space<vmem>>, %arg2: memref<32x64xf32, #tpu.memory_space<vmem>>, %arg3: memref<1x64xf32, #tpu.memory_space<vmem>>, %arg4: memref<32x32xf32, #tpu.memory_space<vmem>>, %arg5: memref<32x32xf32, #tpu.memory_space<vmem>>) attributes {dimension_semantics = [#tpu.dimension_semantics<parallel>], iteration_bounds = array<i64: 1>, scalar_prefetch = 0 : i64, scratch_operands = 0 : i64, tpu.core_type = #tpu.core_type<tc>, window_params = [{transform_indices = @transform_0, window_bounds = array<i64: 32, 32>}, {pipeline_mode = #tpu.pipeline_mode<synchronous>, transform_indices = @transform_1, window_bounds = array<i64: 32, 64>}, {pipeline_mode = #tpu.pipeline_mode<synchronous>, transform_indices = @transform_2, window_bounds = array<i64: 1, 64>}, {transform_indices = @transform_3, window_bounds = array<i64: 32, 32>}, {transform_indices = @transform_4, window_bounds = array<i64: 32, 32>}]} {
    %c0 = arith.constant 0 : index
    %c0_0 = arith.constant 0 : index
    %0 = vector.load %arg1[%c0, %c0_0] : memref<32x32xf32, #tpu.memory_space<vmem>>, vector<32x32xf32>
    %1 = arith.truncf %0 : vector<32x32xf32> to vector<32x32xbf16>
    %c0_1 = arith.constant 0 : index
    %c0_2 = arith.constant 0 : index
    %2 = vector.load %arg2[%c0_1, %c0_2] : memref<32x64xf32, #tpu.memory_space<vmem>>, vector<32x64xf32>
    %3 = arith.truncf %2 : vector<32x64xf32> to vector<32x64xbf16>
    %cst = arith.constant dense<0.000000e+00> : vector<32x64xf32>
    %4 = tpu.matmul %1, %3, %cst {dimension_numbers = #tpu.dot_dimension_numbers<[1], [0], [0], [1], [0, 0, 1, 1], [], []>} : vector<32x32xbf16>, vector<32x64xbf16>, vector<32x64xf32> -> vector<32x64xf32>
    %c0_3 = arith.constant 0 : index
    %c0_4 = arith.constant 0 : index
    %5 = vector.load %arg3[%c0_3, %c0_4] : memref<1x64xf32, #tpu.memory_space<vmem>>, vector<1x64xf32>
    %6 = vector.broadcast %5 : vector<1x64xf32> to vector<32x64xf32>
    %7 = arith.addf %4, %6 : vector<32x64xf32>
    %8 = vector.extract_strided_slice %7 {offsets = [0, 0], sizes = [32, 32], strides = [1, 1]} : vector<32x64xf32> to vector<32x32xf32>
    %c0_5 = arith.constant 0 : index
    %c0_6 = arith.constant 0 : index
    %9 = vector.load %arg4[%c0_5, %c0_6] : memref<32x32xf32, #tpu.memory_space<vmem>>, vector<32x32xf32>
    tpu.vector_store %arg4[%c0_5, %c0_6], %8 {strides = array<i32>} : memref<32x32xf32, #tpu.memory_space<vmem>>, vector<32x32xf32>,
    %10 = vector.extract_strided_slice %7 {offsets = [0, 32], sizes = [32, 32], strides = [1, 1]} : vector<32x64xf32> to vector<32x32xf32>
    %c0_7 = arith.constant 0 : index
    %c0_8 = arith.constant 0 : index
    %11 = vector.load %arg5[%c0_7, %c0_8] : memref<32x32xf32, #tpu.memory_space<vmem>>, vector<32x32xf32>
    tpu.vector_store %arg5[%c0_7, %c0_8], %10 {strides = array<i32>} : memref<32x32xf32, #tpu.memory_space<vmem>>, vector<32x32xf32>,
    return
  }
  func.func @transform_0(%arg0: i32) -> (i32, i32) {
    %c0_i32 = arith.constant 0 : i32
    %c0_i32_0 = arith.constant 0 : i32
    return %arg0, %c0_i32 : i32, i32
  }
  func.func @transform_1(%arg0: i32) -> (i32, i32) {
    %c0_i32 = arith.constant 0 : i32
    %c0_i32_0 = arith.constant 0 : i32
    %c0_i32_1 = arith.constant 0 : i32
    return %c0_i32, %c0_i32_0 : i32, i32
  }
  func.func @transform_2(%arg0: i32) -> (i32, i32) {
    %c0_i32 = arith.constant 0 : i32
    %c0_i32_0 = arith.constant 0 : i32
    %c0_i32_1 = arith.constant 0 : i32
    return %c0_i32, %c0_i32_0 : i32, i32
  }
  func.func @transform_3(%arg0: i32) -> (i32, i32) {
    %c0_i32 = arith.constant 0 : i32
    %c0_i32_0 = arith.constant 0 : i32
    return %arg0, %c0_i32 : i32, i32
  }
  func.func @transform_4(%arg0: i32) -> (i32, i32) {
    %c0_i32 = arith.constant 0 : i32
    %c0_i32_0 = arith.constant 0 : i32
    return %arg0, %c0_i32 : i32, i32
  }
}

module attributes {stable_mosaic.version = 11 : i64} {
  func.func @_proj_add_ln_q_kernel(%arg0: i32, %arg1: memref<16x32xf32, #tpu.memory_space<vmem>>, %arg2: memref<16x32xf32, #tpu.memory_space<vmem>>, %arg3: memref<32x32xf32, #tpu.memory_space<vmem>>, %arg4: memref<1x32xf32, #tpu.memory_space<vmem>>, %arg5: memref<1x32xf32, #tpu.memory_space<vmem>>, %arg6: memref<1x32xf32, #tpu.memory_space<vmem>>, %arg7: memref<32x32xf32, #tpu.memory_space<vmem>>, %arg8: memref<1x32xf32, #tpu.memory_space<vmem>>, %arg9: memref<16x32xf32, #tpu.memory_space<vmem>>, %arg10: memref<16x32xf32, #tpu.memory_space<vmem>>) attributes {dimension_semantics = [#tpu.dimension_semantics<parallel>], iteration_bounds = array<i64: 1>, scalar_prefetch = 0 : i64, scratch_operands = 0 : i64, tpu.core_type = #tpu.core_type<tc>, window_params = [{transform_indices = @transform_0, window_bounds = array<i64: 16, 32>}, {transform_indices = @transform_1, window_bounds = array<i64: 16, 32>}, {pipeline_mode = #tpu.pipeline_mode<synchronous>, transform_indices = @transform_2, window_bounds = array<i64: 32, 32>}, {pipeline_mode = #tpu.pipeline_mode<synchronous>, transform_indices = @transform_3, window_bounds = array<i64: 1, 32>}, {pipeline_mode = #tpu.pipeline_mode<synchronous>, transform_indices = @transform_4, window_bounds = array<i64: 1, 32>}, {pipeline_mode = #tpu.pipeline_mode<synchronous>, transform_indices = @transform_5, window_bounds = array<i64: 1, 32>}, {pipeline_mode = #tpu.pipeline_mode<synchronous>, transform_indices = @transform_6, window_bounds = array<i64: 32, 32>}, {pipeline_mode = #tpu.pipeline_mode<synchronous>, transform_indices = @transform_7, window_bounds = array<i64: 1, 32>}, {transform_indices = @transform_8, window_bounds = array<i64: 16, 32>}, {transform_indices = @transform_9, window_bounds = array<i64: 16, 32>}]} {
    %c0 = arith.constant 0 : index
    %c0_0 = arith.constant 0 : index
    %0 = vector.load %arg1[%c0, %c0_0] : memref<16x32xf32, #tpu.memory_space<vmem>>, vector<16x32xf32>
    %1 = arith.truncf %0 : vector<16x32xf32> to vector<16x32xbf16>
    %c0_1 = arith.constant 0 : index
    %c0_2 = arith.constant 0 : index
    %2 = vector.load %arg3[%c0_1, %c0_2] : memref<32x32xf32, #tpu.memory_space<vmem>>, vector<32x32xf32>
    %3 = arith.truncf %2 : vector<32x32xf32> to vector<32x32xbf16>
    %cst = arith.constant dense<0.000000e+00> : vector<16x32xf32>
    %4 = tpu.matmul %1, %3, %cst {dimension_numbers = #tpu.dot_dimension_numbers<[1], [0], [0], [1], [0, 0, 1, 1], [], []>} : vector<16x32xbf16>, vector<32x32xbf16>, vector<16x32xf32> -> vector<16x32xf32>
    %c0_3 = arith.constant 0 : index
    %c0_4 = arith.constant 0 : index
    %5 = vector.load %arg4[%c0_3, %c0_4] : memref<1x32xf32, #tpu.memory_space<vmem>>, vector<1x32xf32>
    %6 = vector.broadcast %5 : vector<1x32xf32> to vector<16x32xf32>
    %7 = arith.addf %4, %6 : vector<16x32xf32>
    %c0_5 = arith.constant 0 : index
    %c0_6 = arith.constant 0 : index
    %8 = vector.load %arg2[%c0_5, %c0_6] : memref<16x32xf32, #tpu.memory_space<vmem>>, vector<16x32xf32>
    %9 = arith.addf %7, %8 : vector<16x32xf32>
    %c0_7 = arith.constant 0 : index
    %c0_8 = arith.constant 0 : index
    %10 = vector.load %arg9[%c0_7, %c0_8] : memref<16x32xf32, #tpu.memory_space<vmem>>, vector<16x32xf32>
    tpu.vector_store %arg9[%c0_7, %c0_8], %9 {strides = array<i32>} : memref<16x32xf32, #tpu.memory_space<vmem>>, vector<16x32xf32>,
    %c0_9 = arith.constant 0 : index
    %c0_10 = arith.constant 0 : index
    %11 = vector.load %arg5[%c0_9, %c0_10] : memref<1x32xf32, #tpu.memory_space<vmem>>, vector<1x32xf32>
    %c0_11 = arith.constant 0 : index
    %c0_12 = arith.constant 0 : index
    %12 = vector.load %arg6[%c0_11, %c0_12] : memref<1x32xf32, #tpu.memory_space<vmem>>, vector<1x32xf32>
    %cst_13 = arith.constant dense<0.000000e+00> : vector<16xf32>
    %13 = vector.multi_reduction <add>, %9, %cst_13 [1] : vector<16x32xf32> to vector<16xf32>
    %14 = vector.shape_cast %13 : vector<16xf32> to vector<16x1xf32>
    %cst_14 = arith.constant 3.200000e+01 : f32
    %15 = vector.broadcast %cst_14 : f32 to vector<16x1xf32>
    %16 = arith.divf %14, %15 : vector<16x1xf32>
    %17 = vector.broadcast %16 : vector<16x1xf32> to vector<16x32xf32>
    %18 = arith.subf %9, %17 : vector<16x32xf32>
    %19 = arith.mulf %18, %18 : vector<16x32xf32>
    %cst_15 = arith.constant dense<0.000000e+00> : vector<16xf32>
    %20 = vector.multi_reduction <add>, %19, %cst_15 [1] : vector<16x32xf32> to vector<16xf32>
    %21 = vector.shape_cast %20 : vector<16xf32> to vector<16x1xf32>
    %cst_16 = arith.constant 3.200000e+01 : f32
    %22 = vector.broadcast %cst_16 : f32 to vector<16x1xf32>
    %23 = arith.divf %21, %22 : vector<16x1xf32>
    %cst_17 = arith.constant 9.99999974E-6 : f32
    %24 = vector.broadcast %cst_17 : f32 to vector<16x1xf32>
    %25 = arith.addf %23, %24 : vector<16x1xf32>
    %26 = math.rsqrt %25 : vector<16x1xf32>
    %27 = vector.broadcast %26 : vector<16x1xf32> to vector<16x32xf32>
    %28 = arith.mulf %18, %27 : vector<16x32xf32>
    %29 = vector.broadcast %11 : vector<1x32xf32> to vector<16x32xf32>
    %30 = arith.mulf %28, %29 : vector<16x32xf32>
    %31 = vector.broadcast %12 : vector<1x32xf32> to vector<16x32xf32>
    %32 = arith.addf %30, %31 : vector<16x32xf32>
    %33 = arith.truncf %32 : vector<16x32xf32> to vector<16x32xbf16>
    %c0_18 = arith.constant 0 : index
    %c0_19 = arith.constant 0 : index
    %34 = vector.load %arg7[%c0_18, %c0_19] : memref<32x32xf32, #tpu.memory_space<vmem>>, vector<32x32xf32>
    %35 = arith.truncf %34 : vector<32x32xf32> to vector<32x32xbf16>
    %cst_20 = arith.constant dense<0.000000e+00> : vector<16x32xf32>
    %36 = tpu.matmul %33, %35, %cst_20 {dimension_numbers = #tpu.dot_dimension_numbers<[1], [0], [0], [1], [0, 0, 1, 1], [], []>} : vector<16x32xbf16>, vector<32x32xbf16>, vector<16x32xf32> -> vector<16x32xf32>
    %c0_21 = arith.constant 0 : index
    %c0_22 = arith.constant 0 : index
    %37 = vector.load %arg8[%c0_21, %c0_22] : memref<1x32xf32, #tpu.memory_space<vmem>>, vector<1x32xf32>
    %38 = vector.broadcast %37 : vector<1x32xf32> to vector<16x32xf32>
    %39 = arith.addf %36, %38 : vector<16x32xf32>
    %c0_23 = arith.constant 0 : index
    %c0_24 = arith.constant 0 : index
    %40 = vector.load %arg10[%c0_23, %c0_24] : memref<16x32xf32, #tpu.memory_space<vmem>>, vector<16x32xf32>
    tpu.vector_store %arg10[%c0_23, %c0_24], %39 {strides = array<i32>} : memref<16x32xf32, #tpu.memory_space<vmem>>, vector<16x32xf32>,
    return
  }
  func.func @transform_0(%arg0: i32) -> (i32, i32) {
    %c0_i32 = arith.constant 0 : i32
    %c0_i32_0 = arith.constant 0 : i32
    return %arg0, %c0_i32 : i32, i32
  }
  func.func @transform_1(%arg0: i32) -> (i32, i32) {
    %c0_i32 = arith.constant 0 : i32
    %c0_i32_0 = arith.constant 0 : i32
    return %arg0, %c0_i32 : i32, i32
  }
  func.func @transform_2(%arg0: i32) -> (i32, i32) {
    %c0_i32 = arith.constant 0 : i32
    %c0_i32_0 = arith.constant 0 : i32
    %c0_i32_1 = arith.constant 0 : i32
    return %c0_i32, %c0_i32_0 : i32, i32
  }
  func.func @transform_3(%arg0: i32) -> (i32, i32) {
    %c0_i32 = arith.constant 0 : i32
    %c0_i32_0 = arith.constant 0 : i32
    %c0_i32_1 = arith.constant 0 : i32
    return %c0_i32, %c0_i32_0 : i32, i32
  }
  func.func @transform_4(%arg0: i32) -> (i32, i32) {
    %c0_i32 = arith.constant 0 : i32
    %c0_i32_0 = arith.constant 0 : i32
    %c0_i32_1 = arith.constant 0 : i32
    return %c0_i32, %c0_i32_0 : i32, i32
  }
  func.func @transform_5(%arg0: i32) -> (i32, i32) {
    %c0_i32 = arith.constant 0 : i32
    %c0_i32_0 = arith.constant 0 : i32
    %c0_i32_1 = arith.constant 0 : i32
    return %c0_i32, %c0_i32_0 : i32, i32
  }
  func.func @transform_6(%arg0: i32) -> (i32, i32) {
    %c0_i32 = arith.constant 0 : i32
    %c0_i32_0 = arith.constant 0 : i32
    %c0_i32_1 = arith.constant 0 : i32
    return %c0_i32, %c0_i32_0 : i32, i32
  }
  func.func @transform_7(%arg0: i32) -> (i32, i32) {
    %c0_i32 = arith.constant 0 : i32
    %c0_i32_0 = arith.constant 0 : i32
    %c0_i32_1 = arith.constant 0 : i32
    return %c0_i32, %c0_i32_0 : i32, i32
  }
  func.func @transform_8(%arg0: i32) -> (i32, i32) {
    %c0_i32 = arith.constant 0 : i32
    %c0_i32_0 = arith.constant 0 : i32
    return %arg0, %c0_i32 : i32, i32
  }
  func.func @transform_9(%arg0: i32) -> (i32, i32) {
    %c0_i32 = arith.constant 0 : i32
    %c0_i32_0 = arith.constant 0 : i32
    return %arg0, %c0_i32 : i32, i32
  }
}

module attributes {stable_mosaic.version = 11 : i64} {
  func.func @_attn_kernel_nobias(%arg0: i32, %arg1: memref<1x8x32xf32, #tpu.memory_space<vmem>>, %arg2: memref<1x16x32xf32, #tpu.memory_space<vmem>>, %arg3: memref<1x16x32xf32, #tpu.memory_space<vmem>>, %arg4: memref<1x8x32xf32, #tpu.memory_space<vmem>>, %arg5: memref<1x8x16xf32, #tpu.memory_space<vmem>>) attributes {dimension_semantics = [#tpu.dimension_semantics<parallel>], iteration_bounds = array<i64: 2>, scalar_prefetch = 0 : i64, scratch_operands = 0 : i64, tpu.core_type = #tpu.core_type<tc>, window_params = [{transform_indices = @transform_0, window_bounds = array<i64: 1, 8, 32>}, {transform_indices = @transform_1, window_bounds = array<i64: 1, 16, 32>}, {transform_indices = @transform_2, window_bounds = array<i64: 1, 16, 32>}, {transform_indices = @transform_3, window_bounds = array<i64: 1, 8, 32>}, {transform_indices = @transform_4, window_bounds = array<i64: 1, 8, 16>}]} {
    %c0 = arith.constant 0 : index
    %c0_0 = arith.constant 0 : index
    %c0_1 = arith.constant 0 : index
    %0 = vector.load %arg1[%c0, %c0_0, %c0_1] : memref<1x8x32xf32, #tpu.memory_space<vmem>>, vector<1x8x32xf32>
    %1 = vector.shape_cast %0 : vector<1x8x32xf32> to vector<8x32xf32>
    %c0_2 = arith.constant 0 : index
    %c0_3 = arith.constant 0 : index
    %c0_4 = arith.constant 0 : index
    %2 = vector.load %arg2[%c0_2, %c0_3, %c0_4] : memref<1x16x32xf32, #tpu.memory_space<vmem>>, vector<1x16x32xf32>
    %3 = vector.shape_cast %2 : vector<1x16x32xf32> to vector<16x32xf32>
    %c0_5 = arith.constant 0 : index
    %c0_6 = arith.constant 0 : index
    %c0_7 = arith.constant 0 : index
    %4 = vector.load %arg3[%c0_5, %c0_6, %c0_7] : memref<1x16x32xf32, #tpu.memory_space<vmem>>, vector<1x16x32xf32>
    %5 = vector.shape_cast %4 : vector<1x16x32xf32> to vector<16x32xf32>
    %cst = arith.constant 0.000000e+00 : f32
    %6 = vector.broadcast %cst : f32 to vector<8x16xf32>
    %7 = vector.extract_strided_slice %1 {offsets = [0, 0], sizes = [8, 8], strides = [1, 1]} : vector<8x32xf32> to vector<8x8xf32>
    %8 = arith.truncf %7 : vector<8x8xf32> to vector<8x8xbf16>
    %9 = vector.extract_strided_slice %3 {offsets = [0, 0], sizes = [16, 8], strides = [1, 1]} : vector<16x32xf32> to vector<16x8xf32>
    %10 = arith.truncf %9 : vector<16x8xf32> to vector<16x8xbf16>
    %11 = vector.extract_strided_slice %5 {offsets = [0, 0], sizes = [16, 8], strides = [1, 1]} : vector<16x32xf32> to vector<16x8xf32>
    %12 = arith.truncf %11 : vector<16x8xf32> to vector<16x8xbf16>
    %cst_8 = arith.constant dense<0.000000e+00> : vector<8x16xf32>
    %13 = tpu.matmul %8, %10, %cst_8 {dimension_numbers = #tpu.dot_dimension_numbers<[1], [1], [0], [0], [0, 0, 1, 0], [], []>} : vector<8x8xbf16>, vector<16x8xbf16>, vector<8x16xf32> -> vector<8x16xf32>
    %cst_9 = arith.constant 0.353553385 : f32
    %14 = vector.broadcast %cst_9 : f32 to vector<8x16xf32>
    %15 = arith.mulf %13, %14 : vector<8x16xf32>
    %cst_10 = arith.constant dense<0xFF800000> : vector<8xf32>
    %16 = vector.multi_reduction <maximumf>, %15, %cst_10 [1] : vector<8x16xf32> to vector<8xf32>
    %17 = vector.shape_cast %16 : vector<8xf32> to vector<8x1xf32>
    %18 = vector.broadcast %17 : vector<8x1xf32> to vector<8x16xf32>
    %19 = arith.subf %15, %18 : vector<8x16xf32>
    %20 = math.exp %19 : vector<8x16xf32>
    %cst_11 = arith.constant dense<0.000000e+00> : vector<8xf32>
    %21 = vector.multi_reduction <add>, %20, %cst_11 [1] : vector<8x16xf32> to vector<8xf32>
    %22 = vector.shape_cast %21 : vector<8xf32> to vector<8x1xf32>
    %23 = tpu.reciprocal %22 {approx = true} : vector<8x1xf32> -> vector<8x1xf32>
    %24 = vector.broadcast %23 : vector<8x1xf32> to vector<8x16xf32>
    %25 = arith.mulf %20, %24 : vector<8x16xf32>
    %26 = arith.addf %6, %25 : vector<8x16xf32>
    %27 = arith.truncf %25 : vector<8x16xf32> to vector<8x16xbf16>
    %cst_12 = arith.constant dense<0.000000e+00> : vector<8x8xf32>
    %28 = tpu.matmul %27, %12, %cst_12 {dimension_numbers = #tpu.dot_dimension_numbers<[1], [0], [0], [1], [0, 0, 1, 1], [], []>} : vector<8x16xbf16>, vector<16x8xbf16>, vector<8x8xf32> -> vector<8x8xf32>
    %29 = vector.extract_strided_slice %1 {offsets = [0, 8], sizes = [8, 8], strides = [1, 1]} : vector<8x32xf32> to vector<8x8xf32>
    %30 = arith.truncf %29 : vector<8x8xf32> to vector<8x8xbf16>
    %31 = vector.extract_strided_slice %3 {offsets = [0, 8], sizes = [16, 8], strides = [1, 1]} : vector<16x32xf32> to vector<16x8xf32>
    %32 = arith.truncf %31 : vector<16x8xf32> to vector<16x8xbf16>
    %33 = vector.extract_strided_slice %5 {offsets = [0, 8], sizes = [16, 8], strides = [1, 1]} : vector<16x32xf32> to vector<16x8xf32>
    %34 = arith.truncf %33 : vector<16x8xf32> to vector<16x8xbf16>
    %cst_13 = arith.constant dense<0.000000e+00> : vector<8x16xf32>
    %35 = tpu.matmul %30, %32, %cst_13 {dimension_numbers = #tpu.dot_dimension_numbers<[1], [1], [0], [0], [0, 0, 1, 0], [], []>} : vector<8x8xbf16>, vector<16x8xbf16>, vector<8x16xf32> -> vector<8x16xf32>
    %cst_14 = arith.constant 0.353553385 : f32
    %36 = vector.broadcast %cst_14 : f32 to vector<8x16xf32>
    %37 = arith.mulf %35, %36 : vector<8x16xf32>
    %cst_15 = arith.constant dense<0xFF800000> : vector<8xf32>
    %38 = vector.multi_reduction <maximumf>, %37, %cst_15 [1] : vector<8x16xf32> to vector<8xf32>
    %39 = vector.shape_cast %38 : vector<8xf32> to vector<8x1xf32>
    %40 = vector.broadcast %39 : vector<8x1xf32> to vector<8x16xf32>
    %41 = arith.subf %37, %40 : vector<8x16xf32>
    %42 = math.exp %41 : vector<8x16xf32>
    %cst_16 = arith.constant dense<0.000000e+00> : vector<8xf32>
    %43 = vector.multi_reduction <add>, %42, %cst_16 [1] : vector<8x16xf32> to vector<8xf32>
    %44 = vector.shape_cast %43 : vector<8xf32> to vector<8x1xf32>
    %45 = tpu.reciprocal %44 {approx = true} : vector<8x1xf32> -> vector<8x1xf32>
    %46 = vector.broadcast %45 : vector<8x1xf32> to vector<8x16xf32>
    %47 = arith.mulf %42, %46 : vector<8x16xf32>
    %48 = arith.addf %26, %47 : vector<8x16xf32>
    %49 = arith.truncf %47 : vector<8x16xf32> to vector<8x16xbf16>
    %cst_17 = arith.constant dense<0.000000e+00> : vector<8x8xf32>
    %50 = tpu.matmul %49, %34, %cst_17 {dimension_numbers = #tpu.dot_dimension_numbers<[1], [0], [0], [1], [0, 0, 1, 1], [], []>} : vector<8x16xbf16>, vector<16x8xbf16>, vector<8x8xf32> -> vector<8x8xf32>
    %51 = vector.extract_strided_slice %1 {offsets = [0, 16], sizes = [8, 8], strides = [1, 1]} : vector<8x32xf32> to vector<8x8xf32>
    %52 = arith.truncf %51 : vector<8x8xf32> to vector<8x8xbf16>
    %53 = vector.extract_strided_slice %3 {offsets = [0, 16], sizes = [16, 8], strides = [1, 1]} : vector<16x32xf32> to vector<16x8xf32>
    %54 = arith.truncf %53 : vector<16x8xf32> to vector<16x8xbf16>
    %55 = vector.extract_strided_slice %5 {offsets = [0, 16], sizes = [16, 8], strides = [1, 1]} : vector<16x32xf32> to vector<16x8xf32>
    %56 = arith.truncf %55 : vector<16x8xf32> to vector<16x8xbf16>
    %cst_18 = arith.constant dense<0.000000e+00> : vector<8x16xf32>
    %57 = tpu.matmul %52, %54, %cst_18 {dimension_numbers = #tpu.dot_dimension_numbers<[1], [1], [0], [0], [0, 0, 1, 0], [], []>} : vector<8x8xbf16>, vector<16x8xbf16>, vector<8x16xf32> -> vector<8x16xf32>
    %cst_19 = arith.constant 0.353553385 : f32
    %58 = vector.broadcast %cst_19 : f32 to vector<8x16xf32>
    %59 = arith.mulf %57, %58 : vector<8x16xf32>
    %cst_20 = arith.constant dense<0xFF800000> : vector<8xf32>
    %60 = vector.multi_reduction <maximumf>, %59, %cst_20 [1] : vector<8x16xf32> to vector<8xf32>
    %61 = vector.shape_cast %60 : vector<8xf32> to vector<8x1xf32>
    %62 = vector.broadcast %61 : vector<8x1xf32> to vector<8x16xf32>
    %63 = arith.subf %59, %62 : vector<8x16xf32>
    %64 = math.exp %63 : vector<8x16xf32>
    %cst_21 = arith.constant dense<0.000000e+00> : vector<8xf32>
    %65 = vector.multi_reduction <add>, %64, %cst_21 [1] : vector<8x16xf32> to vector<8xf32>
    %66 = vector.shape_cast %65 : vector<8xf32> to vector<8x1xf32>
    %67 = tpu.reciprocal %66 {approx = true} : vector<8x1xf32> -> vector<8x1xf32>
    %68 = vector.broadcast %67 : vector<8x1xf32> to vector<8x16xf32>
    %69 = arith.mulf %64, %68 : vector<8x16xf32>
    %70 = arith.addf %48, %69 : vector<8x16xf32>
    %71 = arith.truncf %69 : vector<8x16xf32> to vector<8x16xbf16>
    %cst_22 = arith.constant dense<0.000000e+00> : vector<8x8xf32>
    %72 = tpu.matmul %71, %56, %cst_22 {dimension_numbers = #tpu.dot_dimension_numbers<[1], [0], [0], [1], [0, 0, 1, 1], [], []>} : vector<8x16xbf16>, vector<16x8xbf16>, vector<8x8xf32> -> vector<8x8xf32>
    %73 = vector.extract_strided_slice %1 {offsets = [0, 24], sizes = [8, 8], strides = [1, 1]} : vector<8x32xf32> to vector<8x8xf32>
    %74 = arith.truncf %73 : vector<8x8xf32> to vector<8x8xbf16>
    %75 = vector.extract_strided_slice %3 {offsets = [0, 24], sizes = [16, 8], strides = [1, 1]} : vector<16x32xf32> to vector<16x8xf32>
    %76 = arith.truncf %75 : vector<16x8xf32> to vector<16x8xbf16>
    %77 = vector.extract_strided_slice %5 {offsets = [0, 24], sizes = [16, 8], strides = [1, 1]} : vector<16x32xf32> to vector<16x8xf32>
    %78 = arith.truncf %77 : vector<16x8xf32> to vector<16x8xbf16>
    %cst_23 = arith.constant dense<0.000000e+00> : vector<8x16xf32>
    %79 = tpu.matmul %74, %76, %cst_23 {dimension_numbers = #tpu.dot_dimension_numbers<[1], [1], [0], [0], [0, 0, 1, 0], [], []>} : vector<8x8xbf16>, vector<16x8xbf16>, vector<8x16xf32> -> vector<8x16xf32>
    %cst_24 = arith.constant 0.353553385 : f32
    %80 = vector.broadcast %cst_24 : f32 to vector<8x16xf32>
    %81 = arith.mulf %79, %80 : vector<8x16xf32>
    %cst_25 = arith.constant dense<0xFF800000> : vector<8xf32>
    %82 = vector.multi_reduction <maximumf>, %81, %cst_25 [1] : vector<8x16xf32> to vector<8xf32>
    %83 = vector.shape_cast %82 : vector<8xf32> to vector<8x1xf32>
    %84 = vector.broadcast %83 : vector<8x1xf32> to vector<8x16xf32>
    %85 = arith.subf %81, %84 : vector<8x16xf32>
    %86 = math.exp %85 : vector<8x16xf32>
    %cst_26 = arith.constant dense<0.000000e+00> : vector<8xf32>
    %87 = vector.multi_reduction <add>, %86, %cst_26 [1] : vector<8x16xf32> to vector<8xf32>
    %88 = vector.shape_cast %87 : vector<8xf32> to vector<8x1xf32>
    %89 = tpu.reciprocal %88 {approx = true} : vector<8x1xf32> -> vector<8x1xf32>
    %90 = vector.broadcast %89 : vector<8x1xf32> to vector<8x16xf32>
    %91 = arith.mulf %86, %90 : vector<8x16xf32>
    %92 = arith.addf %70, %91 : vector<8x16xf32>
    %93 = arith.truncf %91 : vector<8x16xf32> to vector<8x16xbf16>
    %cst_27 = arith.constant dense<0.000000e+00> : vector<8x8xf32>
    %94 = tpu.matmul %93, %78, %cst_27 {dimension_numbers = #tpu.dot_dimension_numbers<[1], [0], [0], [1], [0, 0, 1, 1], [], []>} : vector<8x16xbf16>, vector<16x8xbf16>, vector<8x8xf32> -> vector<8x8xf32>
    %95 = tpu.concatenate %28, %50, %72, %94 in 1 : vector<8x8xf32>, vector<8x8xf32>, vector<8x8xf32>, vector<8x8xf32> -> vector<8x32xf32>
    %c0_28 = arith.constant 0 : index
    %c0_29 = arith.constant 0 : index
    %c0_30 = arith.constant 0 : index
    %96 = vector.load %arg4[%c0_28, %c0_29, %c0_30] : memref<1x8x32xf32, #tpu.memory_space<vmem>>, vector<1x8x32xf32>
    %97 = vector.shape_cast %96 : vector<1x8x32xf32> to vector<8x32xf32>
    %98 = vector.shape_cast %95 : vector<8x32xf32> to vector<1x8x32xf32>
    tpu.vector_store %arg4[%c0_28, %c0_29, %c0_30], %98 {strides = array<i32>} : memref<1x8x32xf32, #tpu.memory_space<vmem>>, vector<1x8x32xf32>,
    %cst_31 = arith.constant 2.500000e-01 : f32
    %99 = vector.broadcast %cst_31 : f32 to vector<8x16xf32>
    %100 = arith.mulf %92, %99 : vector<8x16xf32>
    %c0_32 = arith.constant 0 : index
    %c0_33 = arith.constant 0 : index
    %c0_34 = arith.constant 0 : index
    %101 = vector.load %arg5[%c0_32, %c0_33, %c0_34] : memref<1x8x16xf32, #tpu.memory_space<vmem>>, vector<1x8x16xf32>
    %102 = vector.shape_cast %101 : vector<1x8x16xf32> to vector<8x16xf32>
    %103 = vector.shape_cast %100 : vector<8x16xf32> to vector<1x8x16xf32>
    tpu.vector_store %arg5[%c0_32, %c0_33, %c0_34], %103 {strides = array<i32>} : memref<1x8x16xf32, #tpu.memory_space<vmem>>, vector<1x8x16xf32>,
    return
  }
  func.func @transform_0(%arg0: i32) -> (i32, i32, i32) {
    %c0_i32 = arith.constant 0 : i32
    %c0_i32_0 = arith.constant 0 : i32
    %c0_i32_1 = arith.constant 0 : i32
    return %arg0, %c0_i32, %c0_i32_0 : i32, i32, i32
  }
  func.func @transform_1(%arg0: i32) -> (i32, i32, i32) {
    %c0_i32 = arith.constant 0 : i32
    %c0_i32_0 = arith.constant 0 : i32
    %c0_i32_1 = arith.constant 0 : i32
    return %arg0, %c0_i32, %c0_i32_0 : i32, i32, i32
  }
  func.func @transform_2(%arg0: i32) -> (i32, i32, i32) {
    %c0_i32 = arith.constant 0 : i32
    %c0_i32_0 = arith.constant 0 : i32
    %c0_i32_1 = arith.constant 0 : i32
    return %arg0, %c0_i32, %c0_i32_0 : i32, i32, i32
  }
  func.func @transform_3(%arg0: i32) -> (i32, i32, i32) {
    %c0_i32 = arith.constant 0 : i32
    %c0_i32_0 = arith.constant 0 : i32
    %c0_i32_1 = arith.constant 0 : i32
    return %arg0, %c0_i32, %c0_i32_0 : i32, i32, i32
  }
  func.func @transform_4(%arg0: i32) -> (i32, i32, i32) {
    %c0_i32 = arith.constant 0 : i32
    %c0_i32_0 = arith.constant 0 : i32
    %c0_i32_1 = arith.constant 0 : i32
    return %arg0, %c0_i32, %c0_i32_0 : i32, i32, i32
  }
}

module attributes {stable_mosaic.version = 11 : i64} {
  func.func @_proj_add_kernel(%arg0: i32, %arg1: memref<16x32xf32, #tpu.memory_space<vmem>>, %arg2: memref<16x32xf32, #tpu.memory_space<vmem>>, %arg3: memref<32x32xf32, #tpu.memory_space<vmem>>, %arg4: memref<1x32xf32, #tpu.memory_space<vmem>>, %arg5: memref<16x32xf32, #tpu.memory_space<vmem>>) attributes {dimension_semantics = [#tpu.dimension_semantics<parallel>], iteration_bounds = array<i64: 1>, scalar_prefetch = 0 : i64, scratch_operands = 0 : i64, tpu.core_type = #tpu.core_type<tc>, window_params = [{transform_indices = @transform_0, window_bounds = array<i64: 16, 32>}, {transform_indices = @transform_1, window_bounds = array<i64: 16, 32>}, {pipeline_mode = #tpu.pipeline_mode<synchronous>, transform_indices = @transform_2, window_bounds = array<i64: 32, 32>}, {pipeline_mode = #tpu.pipeline_mode<synchronous>, transform_indices = @transform_3, window_bounds = array<i64: 1, 32>}, {transform_indices = @transform_4, window_bounds = array<i64: 16, 32>}]} {
    %c0 = arith.constant 0 : index
    %c0_0 = arith.constant 0 : index
    %0 = vector.load %arg1[%c0, %c0_0] : memref<16x32xf32, #tpu.memory_space<vmem>>, vector<16x32xf32>
    %1 = arith.truncf %0 : vector<16x32xf32> to vector<16x32xbf16>
    %c0_1 = arith.constant 0 : index
    %c0_2 = arith.constant 0 : index
    %2 = vector.load %arg3[%c0_1, %c0_2] : memref<32x32xf32, #tpu.memory_space<vmem>>, vector<32x32xf32>
    %3 = arith.truncf %2 : vector<32x32xf32> to vector<32x32xbf16>
    %cst = arith.constant dense<0.000000e+00> : vector<16x32xf32>
    %4 = tpu.matmul %1, %3, %cst {dimension_numbers = #tpu.dot_dimension_numbers<[1], [0], [0], [1], [0, 0, 1, 1], [], []>} : vector<16x32xbf16>, vector<32x32xbf16>, vector<16x32xf32> -> vector<16x32xf32>
    %c0_3 = arith.constant 0 : index
    %c0_4 = arith.constant 0 : index
    %5 = vector.load %arg4[%c0_3, %c0_4] : memref<1x32xf32, #tpu.memory_space<vmem>>, vector<1x32xf32>
    %6 = vector.broadcast %5 : vector<1x32xf32> to vector<16x32xf32>
    %7 = arith.addf %4, %6 : vector<16x32xf32>
    %c0_5 = arith.constant 0 : index
    %c0_6 = arith.constant 0 : index
    %8 = vector.load %arg2[%c0_5, %c0_6] : memref<16x32xf32, #tpu.memory_space<vmem>>, vector<16x32xf32>
    %9 = arith.addf %7, %8 : vector<16x32xf32>
    %c0_7 = arith.constant 0 : index
    %c0_8 = arith.constant 0 : index
    %10 = vector.load %arg5[%c0_7, %c0_8] : memref<16x32xf32, #tpu.memory_space<vmem>>, vector<16x32xf32>
    tpu.vector_store %arg5[%c0_7, %c0_8], %9 {strides = array<i32>} : memref<16x32xf32, #tpu.memory_space<vmem>>, vector<16x32xf32>,
    return
  }
  func.func @transform_0(%arg0: i32) -> (i32, i32) {
    %c0_i32 = arith.constant 0 : i32
    %c0_i32_0 = arith.constant 0 : i32
    return %arg0, %c0_i32 : i32, i32
  }
  func.func @transform_1(%arg0: i32) -> (i32, i32) {
    %c0_i32 = arith.constant 0 : i32
    %c0_i32_0 = arith.constant 0 : i32
    return %arg0, %c0_i32 : i32, i32
  }
  func.func @transform_2(%arg0: i32) -> (i32, i32) {
    %c0_i32 = arith.constant 0 : i32
    %c0_i32_0 = arith.constant 0 : i32
    %c0_i32_1 = arith.constant 0 : i32
    return %c0_i32, %c0_i32_0 : i32, i32
  }
  func.func @transform_3(%arg0: i32) -> (i32, i32) {
    %c0_i32 = arith.constant 0 : i32
    %c0_i32_0 = arith.constant 0 : i32
    %c0_i32_1 = arith.constant 0 : i32
    return %c0_i32, %c0_i32_0 : i32, i32
  }
  func.func @transform_4(%arg0: i32) -> (i32, i32) {
    %c0_i32 = arith.constant 0 : i32
    %c0_i32_0 = arith.constant 0 : i32
    return %arg0, %c0_i32 : i32, i32
  }
}

module attributes {stable_mosaic.version = 11 : i64} {
  func.func @_ffn_add_ln_kernel(%arg0: i32, %arg1: i32, %arg2: memref<16x32xf32, #tpu.memory_space<vmem>>, %arg3: memref<1x32xf32, #tpu.memory_space<vmem>>, %arg4: memref<1x32xf32, #tpu.memory_space<vmem>>, %arg5: memref<32x64xf32, #tpu.memory_space<vmem>>, %arg6: memref<1x64xf32, #tpu.memory_space<vmem>>, %arg7: memref<64x32xf32, #tpu.memory_space<vmem>>, %arg8: memref<1x32xf32, #tpu.memory_space<vmem>>, %arg9: memref<1x32xf32, #tpu.memory_space<vmem>>, %arg10: memref<1x32xf32, #tpu.memory_space<vmem>>, %arg11: memref<16x32xf32, #tpu.memory_space<vmem>>, %arg12: memref<16x32xf32, #tpu.memory_space<vmem>>) attributes {dimension_semantics = [#tpu.dimension_semantics<parallel>, #tpu.dimension_semantics<arbitrary>], iteration_bounds = array<i64: 1, 1>, scalar_prefetch = 0 : i64, scratch_operands = 1 : i64, tpu.core_type = #tpu.core_type<tc>, window_params = [{transform_indices = @transform_0, window_bounds = array<i64: 16, 32>}, {pipeline_mode = #tpu.pipeline_mode<synchronous>, transform_indices = @transform_1, window_bounds = array<i64: 1, 32>}, {pipeline_mode = #tpu.pipeline_mode<synchronous>, transform_indices = @transform_2, window_bounds = array<i64: 1, 32>}, {transform_indices = @transform_3, window_bounds = array<i64: 32, 64>}, {transform_indices = @transform_4, window_bounds = array<i64: 1, 64>}, {transform_indices = @transform_5, window_bounds = array<i64: 64, 32>}, {pipeline_mode = #tpu.pipeline_mode<synchronous>, transform_indices = @transform_6, window_bounds = array<i64: 1, 32>}, {pipeline_mode = #tpu.pipeline_mode<synchronous>, transform_indices = @transform_7, window_bounds = array<i64: 1, 32>}, {pipeline_mode = #tpu.pipeline_mode<synchronous>, transform_indices = @transform_8, window_bounds = array<i64: 1, 32>}, {transform_indices = @transform_9, window_bounds = array<i64: 16, 32>}]} {
    %c0 = arith.constant 0 : index
    %c0_0 = arith.constant 0 : index
    %0 = vector.load %arg2[%c0, %c0_0] : memref<16x32xf32, #tpu.memory_space<vmem>>, vector<16x32xf32>
    %c0_1 = arith.constant 0 : index
    %c0_2 = arith.constant 0 : index
    %1 = vector.load %arg3[%c0_1, %c0_2] : memref<1x32xf32, #tpu.memory_space<vmem>>, vector<1x32xf32>
    %c0_3 = arith.constant 0 : index
    %c0_4 = arith.constant 0 : index
    %2 = vector.load %arg4[%c0_3, %c0_4] : memref<1x32xf32, #tpu.memory_space<vmem>>, vector<1x32xf32>
    %cst = arith.constant dense<0.000000e+00> : vector<16xf32>
    %3 = vector.multi_reduction <add>, %0, %cst [1] : vector<16x32xf32> to vector<16xf32>
    %4 = vector.shape_cast %3 : vector<16xf32> to vector<16x1xf32>
    %cst_5 = arith.constant 3.200000e+01 : f32
    %5 = vector.broadcast %cst_5 : f32 to vector<16x1xf32>
    %6 = arith.divf %4, %5 : vector<16x1xf32>
    %7 = vector.broadcast %6 : vector<16x1xf32> to vector<16x32xf32>
    %8 = arith.subf %0, %7 : vector<16x32xf32>
    %9 = arith.mulf %8, %8 : vector<16x32xf32>
    %cst_6 = arith.constant dense<0.000000e+00> : vector<16xf32>
    %10 = vector.multi_reduction <add>, %9, %cst_6 [1] : vector<16x32xf32> to vector<16xf32>
    %11 = vector.shape_cast %10 : vector<16xf32> to vector<16x1xf32>
    %cst_7 = arith.constant 3.200000e+01 : f32
    %12 = vector.broadcast %cst_7 : f32 to vector<16x1xf32>
    %13 = arith.divf %11, %12 : vector<16x1xf32>
    %cst_8 = arith.constant 9.99999974E-6 : f32
    %14 = vector.broadcast %cst_8 : f32 to vector<16x1xf32>
    %15 = arith.addf %13, %14 : vector<16x1xf32>
    %16 = math.rsqrt %15 : vector<16x1xf32>
    %17 = vector.broadcast %16 : vector<16x1xf32> to vector<16x32xf32>
    %18 = arith.mulf %8, %17 : vector<16x32xf32>
    %19 = vector.broadcast %1 : vector<1x32xf32> to vector<16x32xf32>
    %20 = arith.mulf %18, %19 : vector<16x32xf32>
    %21 = vector.broadcast %2 : vector<1x32xf32> to vector<16x32xf32>
    %22 = arith.addf %20, %21 : vector<16x32xf32>
    %23 = arith.truncf %22 : vector<16x32xf32> to vector<16x32xbf16>
    %c0_9 = arith.constant 0 : index
    %c0_10 = arith.constant 0 : index
    %24 = vector.load %arg5[%c0_9, %c0_10] : memref<32x64xf32, #tpu.memory_space<vmem>>, vector<32x64xf32>
    %25 = arith.truncf %24 : vector<32x64xf32> to vector<32x64xbf16>
    %cst_11 = arith.constant dense<0.000000e+00> : vector<16x64xf32>
    %26 = tpu.matmul %23, %25, %cst_11 {dimension_numbers = #tpu.dot_dimension_numbers<[1], [0], [0], [1], [0, 0, 1, 1], [], []>} : vector<16x32xbf16>, vector<32x64xbf16>, vector<16x64xf32> -> vector<16x64xf32>
    %c0_12 = arith.constant 0 : index
    %c0_13 = arith.constant 0 : index
    %27 = vector.load %arg6[%c0_12, %c0_13] : memref<1x64xf32, #tpu.memory_space<vmem>>, vector<1x64xf32>
    %28 = vector.broadcast %27 : vector<1x64xf32> to vector<16x64xf32>
    %29 = arith.addf %26, %28 : vector<16x64xf32>
    %cst_14 = arith.constant 0.000000e+00 : f32
    %30 = vector.broadcast %cst_14 : f32 to vector<16x64xf32>
    %31 = arith.maximumf %29, %30 : vector<16x64xf32>
    %c0_i32 = arith.constant 0 : i32
    %32 = arith.cmpi eq, %arg1, %c0_i32 : i32
    %33 = arith.extui %32 : i1 to i32
    %c0_i32_15 = arith.constant 0 : i32
    %34 = arith.cmpi ne, %33, %c0_i32_15 : i32
    scf.if %34 {
      %cst_25 = arith.constant 0.000000e+00 : f32
      %45 = vector.broadcast %cst_25 : f32 to vector<16x32xf32>
      %c0_26 = arith.constant 0 : index
      %c0_27 = arith.constant 0 : index
      %46 = vector.load %arg12[%c0_26, %c0_27] : memref<16x32xf32, #tpu.memory_space<vmem>>, vector<16x32xf32>
      tpu.vector_store %arg12[%c0_26, %c0_27], %45 {strides = array<i32>} : memref<16x32xf32, #tpu.memory_space<vmem>>, vector<16x32xf32>,
    } else {
    }
    %c0_16 = arith.constant 0 : index
    %c0_17 = arith.constant 0 : index
    %35 = vector.load %arg12[%c0_16, %c0_17] : memref<16x32xf32, #tpu.memory_space<vmem>>, vector<16x32xf32>
    %36 = arith.truncf %31 : vector<16x64xf32> to vector<16x64xbf16>
    %c0_18 = arith.constant 0 : index
    %c0_19 = arith.constant 0 : index
    %37 = vector.load %arg7[%c0_18, %c0_19] : memref<64x32xf32, #tpu.memory_space<vmem>>, vector<64x32xf32>
    %38 = arith.truncf %37 : vector<64x32xf32> to vector<64x32xbf16>
    %cst_20 = arith.constant dense<0.000000e+00> : vector<16x32xf32>
    %39 = tpu.matmul %36, %38, %cst_20 {dimension_numbers = #tpu.dot_dimension_numbers<[1], [0], [0], [1], [0, 0, 1, 1], [], []>} : vector<16x64xbf16>, vector<64x32xbf16>, vector<16x32xf32> -> vector<16x32xf32>
    %40 = arith.addf %35, %39 : vector<16x32xf32>
    %c0_21 = arith.constant 0 : index
    %c0_22 = arith.constant 0 : index
    %41 = vector.load %arg12[%c0_21, %c0_22] : memref<16x32xf32, #tpu.memory_space<vmem>>, vector<16x32xf32>
    tpu.vector_store %arg12[%c0_21, %c0_22], %40 {strides = array<i32>} : memref<16x32xf32, #tpu.memory_space<vmem>>, vector<16x32xf32>,
    %c0_i32_23 = arith.constant 0 : i32
    %42 = arith.cmpi eq, %arg1, %c0_i32_23 : i32
    %43 = arith.extui %42 : i1 to i32
    %c0_i32_24 = arith.constant 0 : i32
    %44 = arith.cmpi ne, %43, %c0_i32_24 : i32
    scf.if %44 {
      %c0_25 = arith.constant 0 : index
      %c0_26 = arith.constant 0 : index
      %45 = vector.load %arg12[%c0_25, %c0_26] : memref<16x32xf32, #tpu.memory_space<vmem>>, vector<16x32xf32>
      %c0_27 = arith.constant 0 : index
      %c0_28 = arith.constant 0 : index
      %46 = vector.load %arg8[%c0_27, %c0_28] : memref<1x32xf32, #tpu.memory_space<vmem>>, vector<1x32xf32>
      %47 = vector.broadcast %46 : vector<1x32xf32> to vector<16x32xf32>
      %48 = arith.addf %45, %47 : vector<16x32xf32>
      %49 = arith.addf %48, %0 : vector<16x32xf32>
      %c0_29 = arith.constant 0 : index
      %c0_30 = arith.constant 0 : index
      %50 = vector.load %arg9[%c0_29, %c0_30] : memref<1x32xf32, #tpu.memory_space<vmem>>, vector<1x32xf32>
      %c0_31 = arith.constant 0 : index
      %c0_32 = arith.constant 0 : index
      %51 = vector.load %arg10[%c0_31, %c0_32] : memref<1x32xf32, #tpu.memory_space<vmem>>, vector<1x32xf32>
      %cst_33 = arith.constant dense<0.000000e+00> : vector<16xf32>
      %52 = vector.multi_reduction <add>, %49, %cst_33 [1] : vector<16x32xf32> to vector<16xf32>
      %53 = vector.shape_cast %52 : vector<16xf32> to vector<16x1xf32>
      %cst_34 = arith.constant 3.200000e+01 : f32
      %54 = vector.broadcast %cst_34 : f32 to vector<16x1xf32>
      %55 = arith.divf %53, %54 : vector<16x1xf32>
      %56 = vector.broadcast %55 : vector<16x1xf32> to vector<16x32xf32>
      %57 = arith.subf %49, %56 : vector<16x32xf32>
      %58 = arith.mulf %57, %57 : vector<16x32xf32>
      %cst_35 = arith.constant dense<0.000000e+00> : vector<16xf32>
      %59 = vector.multi_reduction <add>, %58, %cst_35 [1] : vector<16x32xf32> to vector<16xf32>
      %60 = vector.shape_cast %59 : vector<16xf32> to vector<16x1xf32>
      %cst_36 = arith.constant 3.200000e+01 : f32
      %61 = vector.broadcast %cst_36 : f32 to vector<16x1xf32>
      %62 = arith.divf %60, %61 : vector<16x1xf32>
      %cst_37 = arith.constant 9.99999974E-6 : f32
      %63 = vector.broadcast %cst_37 : f32 to vector<16x1xf32>
      %64 = arith.addf %62, %63 : vector<16x1xf32>
      %65 = math.rsqrt %64 : vector<16x1xf32>
      %66 = vector.broadcast %65 : vector<16x1xf32> to vector<16x32xf32>
      %67 = arith.mulf %57, %66 : vector<16x32xf32>
      %68 = vector.broadcast %50 : vector<1x32xf32> to vector<16x32xf32>
      %69 = arith.mulf %67, %68 : vector<16x32xf32>
      %70 = vector.broadcast %51 : vector<1x32xf32> to vector<16x32xf32>
      %71 = arith.addf %69, %70 : vector<16x32xf32>
      %c0_38 = arith.constant 0 : index
      %c0_39 = arith.constant 0 : index
      %72 = vector.load %arg11[%c0_38, %c0_39] : memref<16x32xf32, #tpu.memory_space<vmem>>, vector<16x32xf32>
      tpu.vector_store %arg11[%c0_38, %c0_39], %71 {strides = array<i32>} : memref<16x32xf32, #tpu.memory_space<vmem>>, vector<16x32xf32>,
    } else {
    }
    return
  }
  func.func @transform_0(%arg0: i32, %arg1: i32) -> (i32, i32) {
    %c0_i32 = arith.constant 0 : i32
    %c0_i32_0 = arith.constant 0 : i32
    return %arg0, %c0_i32 : i32, i32
  }
  func.func @transform_1(%arg0: i32, %arg1: i32) -> (i32, i32) {
    %c0_i32 = arith.constant 0 : i32
    %c0_i32_0 = arith.constant 0 : i32
    %c0_i32_1 = arith.constant 0 : i32
    return %c0_i32, %c0_i32_0 : i32, i32
  }
  func.func @transform_2(%arg0: i32, %arg1: i32) -> (i32, i32) {
    %c0_i32 = arith.constant 0 : i32
    %c0_i32_0 = arith.constant 0 : i32
    %c0_i32_1 = arith.constant 0 : i32
    return %c0_i32, %c0_i32_0 : i32, i32
  }
  func.func @transform_3(%arg0: i32, %arg1: i32) -> (i32, i32) {
    %c0_i32 = arith.constant 0 : i32
    %c0_i32_0 = arith.constant 0 : i32
    return %c0_i32, %arg1 : i32, i32
  }
  func.func @transform_4(%arg0: i32, %arg1: i32) -> (i32, i32) {
    %c0_i32 = arith.constant 0 : i32
    %c0_i32_0 = arith.constant 0 : i32
    return %c0_i32, %arg1 : i32, i32
  }
  func.func @transform_5(%arg0: i32, %arg1: i32) -> (i32, i32) {
    %c0_i32 = arith.constant 0 : i32
    %c0_i32_0 = arith.constant 0 : i32
    return %arg1, %c0_i32 : i32, i32
  }
  func.func @transform_6(%arg0: i32, %arg1: i32) -> (i32, i32) {
    %c0_i32 = arith.constant 0 : i32
    %c0_i32_0 = arith.constant 0 : i32
    %c0_i32_1 = arith.constant 0 : i32
    return %c0_i32, %c0_i32_0 : i32, i32
  }
  func.func @transform_7(%arg0: i32, %arg1: i32) -> (i32, i32) {
    %c0_i32 = arith.constant 0 : i32
    %c0_i32_0 = arith.constant 0 : i32
    %c0_i32_1 = arith.constant 0 : i32
    return %c0_i32, %c0_i32_0 : i32, i32
  }
  func.func @transform_8(%arg0: i32, %arg1: i32) -> (i32, i32) {
    %c0_i32 = arith.constant 0 : i32
    %c0_i32_0 = arith.constant 0 : i32
    %c0_i32_1 = arith.constant 0 : i32
    return %c0_i32, %c0_i32_0 : i32, i32
  }
  func.func @transform_9(%arg0: i32, %arg1: i32) -> (i32, i32) {
    %c0_i32 = arith.constant 0 : i32
    %c0_i32_0 = arith.constant 0 : i32
    return %arg0, %c0_i32 : i32, i32
  }
}

</mosaic_0001>

<llo_original>
// kernel: decoder_layer.7
$region0: #{decoder_layer.7}
  #allocation0 [shape = 'u32[]', space=smem, size = 0x4, offset = 0x4, fixed_abs, tag = 'smem constant byte address 0x4 - core index']
  #allocation1 [shape = 'u32[144,128]{1,0:T(1,128)}', space=vmem, size = 0x12000, scoped, tag = 'internal scratch']
  %s0 = inlined_call_operand.hbm [shape: f32[16,32], index: 0, kind: input, shape index: {}]
  %s1 = inlined_call_operand.hbm [shape: f32[1,32], index: 1, kind: input, shape index: {}]
  %s2 = inlined_call_operand.hbm [shape: f32[1,32], index: 2, kind: input, shape index: {}]
  %s3 = inlined_call_operand.hbm [shape: f32[32,96], index: 3, kind: input, shape index: {}]
  %s4 = inlined_call_operand.hbm [shape: f32[1,96], index: 4, kind: input, shape index: {}]
  %s5 = inlined_call_operand.hbm [shape: f32[16,32], index: 5, kind: output, shape index: {0}]
  %s6 = inlined_call_operand.hbm [shape: f32[16,32], index: 6, kind: output, shape index: {1}]
  %s7 = inlined_call_operand.hbm [shape: f32[16,32], index: 7, kind: output, shape index: {2}]
  %8 = xla_tuple %s5, %s6, %s7
  %s9 = sld [smem:[#allocation0]]
  $region66: #{decoder_layer.7} parent=0
    _
  %s11 = ssub.s32 1, %s9
  %s12 = scalar_select 0, %s11, %s9
  $region1: #{decoder_layer.7} parent=0
    #allocation2 [shape = 'u8[8192]{0}', space=vmem, size = 0x2000, scoped, tag = 'input window, operand 0, single buffered']
    #allocation3 [shape = 's32[1]{0}', space=sflag, size = 0x4, scoped, tag = 'scoped memory for decoder_layer.7']
    #allocation4 [shape = 's32[1]{0}', space=sflag, size = 0x4, scoped, tag = 'scoped memory for decoder_layer.7']
    #allocation5 [shape = 'u8[512]{0}', space=vmem, size = 0x400, scoped, tag = 'input window, operand 1, single buffered']
    #allocation6 [shape = 's32[1]{0}', space=sflag, size = 0x4, scoped, tag = 'scoped memory for decoder_layer.7']
    #allocation7 [shape = 'u8[512]{0}', space=vmem, size = 0x400, scoped, tag = 'input window, operand 2, single buffered']
    #allocation8 [shape = 'u8[16384]{0}', space=vmem, size = 0x4000, scoped, tag = 'input window, operand 3, single buffered']
    #allocation9 [shape = 's32[1]{0}', space=sflag, size = 0x4, scoped, tag = 'scoped memory for decoder_layer.7']
    #allocation10 [shape = 'u8[512]{0}', space=vmem, size = 0x400, scoped, tag = 'input window, operand 4, single buffered']
    #allocation11 [shape = 'u8[8192]{0}', space=vmem, size = 0x2000, scoped, tag = 'output window, operand 0, single buffered']
    #allocation12 [shape = 'u8[8192]{0}', space=vmem, size = 0x2000, scoped, tag = 'output window, operand 1, single buffered']
    #allocation13 [shape = 's32[1]{0}', space=sflag, size = 0x4, scoped, tag = 'scoped memory for decoder_layer.7']
    #allocation14 [shape = 'u8[8192]{0}', space=vmem, size = 0x2000, scoped, tag = 'output window, operand 2, single buffered']
    %13 = vsyncpa [#allocation3], 0
    %14 = vsyncpa [#allocation6], 0
    %15 = vsyncpa [#allocation9], 0
    %16 = vsyncpa [#allocation4], 0
    %17 = vsyncpa [#allocation13], 0
    // Predicated region
    $region2: #{decoder_layer.7} parent=1 // pred_check
      _
    $region3: #{decoder_layer.7} parent=1 // pred_check_branch
      %19 = sbr.rel (0) target = $region5
    $region4: #{decoder_layer.7} parent=1 // pred_region
      %s21 = ssub.s32 256, 256
      %22 = vsyncadd [#allocation3], %s21
      %s23 = sshll.u32 [#allocation2], 4
      %s24 = int_to_ptr.vmem [resolvable:$true] %s23
      %29 = dma.hbm_to_vmem [thread:$0]  %s0, 256, %s24, [#allocation3], 128, 128, 8
    $region5: #{decoder_layer.7} parent=1 // pred_fallthru
      _
    // Predicated region
    $region6: #{decoder_layer.7} parent=1 // pred_check
      _
    $region7: #{decoder_layer.7} parent=1 // pred_check_branch
      %31 = sbr.rel (0) target = $region9
    $region8: #{decoder_layer.7} parent=1 // pred_region
      %s33 = ssub.s32 16, 16
      %34 = vsyncadd [#allocation6], %s33
      %s36 = sshll.u32 [#allocation5], 4
      %s37 = int_to_ptr.vmem [resolvable:$true] %s36
      %39 = dma.hbm_to_vmem [thread:$0]  %s1, 16, %s37, [#allocation6]
    $region9: #{decoder_layer.7} parent=1 // pred_fallthru
      _
    // Predicated region
    $region10: #{decoder_layer.7} parent=1 // pred_check
      _
    $region11: #{decoder_layer.7} parent=1 // pred_check_branch
      %41 = sbr.rel (0) target = $region13
    $region12: #{decoder_layer.7} parent=1 // pred_region
      %s43 = ssub.s32 16, 16
      %44 = vsyncadd [#allocation6], %s43
      %s46 = sshll.u32 [#allocation7], 4
      %s47 = int_to_ptr.vmem [resolvable:$true] %s46
      %49 = dma.hbm_to_vmem [thread:$0]  %s2, 16, %s47, [#allocation6]
    $region13: #{decoder_layer.7} parent=1 // pred_fallthru
      _
    // Predicated region
    $region14: #{decoder_layer.7} parent=1 // pred_check
      _
    $region15: #{decoder_layer.7} parent=1 // pred_check_branch
      %51 = sbr.rel (0) target = $region17
    $region16: #{decoder_layer.7} parent=1 // pred_region
      %s53 = ssub.s32 512, 512
      %54 = vsyncadd [#allocation9], %s53
      %s55 = sshll.u32 [#allocation8], 4
      %s56 = int_to_ptr.vmem [resolvable:$true] %s55
      %61 = dma.hbm_to_vmem [thread:$0]  %s3, 512, %s56, [#allocation9], 128, 128, 8
    $region17: #{decoder_layer.7} parent=1 // pred_fallthru
      _
    // Predicated region
    $region18: #{decoder_layer.7} parent=1 // pred_check
      _
    $region19: #{decoder_layer.7} parent=1 // pred_check_branch
      %63 = sbr.rel (0) target = $region21
    $region20: #{decoder_layer.7} parent=1 // pred_region
      %s65 = ssub.s32 16, 16
      %66 = vsyncadd [#allocation9], %s65
      %s68 = sshll.u32 [#allocation10], 4
      %s69 = int_to_ptr.vmem [resolvable:$true] %s68
      %71 = dma.hbm_to_vmem [thread:$0]  %s4, 16, %s69, [#allocation9]
    $region21: #{decoder_layer.7} parent=1 // pred_fallthru
      _
    // Predicated region
    $region22: #{decoder_layer.7} parent=1 // pred_check
      _
    $region23: #{decoder_layer.7} parent=1 // pred_check_branch
      %73 = sbr.rel (0) target = $region25
    $region24: #{decoder_layer.7} parent=1 // pred_region
      %74 = dma.done [#allocation3], 256
    $region25: #{decoder_layer.7} parent=1 // pred_fallthru
      _
    // Predicated region
    $region26: #{decoder_layer.7} parent=1 // pred_check
      _
    $region27: #{decoder_layer.7} parent=1 // pred_check_branch
      %76 = sbr.rel (0) target = $region29
    $region28: #{decoder_layer.7} parent=1 // pred_region
      %77 = dma.done [#allocation6], 16
    $region29: #{decoder_layer.7} parent=1 // pred_fallthru
      _
    // Predicated region
    $region30: #{decoder_layer.7} parent=1 // pred_check
      _
    $region31: #{decoder_layer.7} parent=1 // pred_check_branch
      %79 = sbr.rel (0) target = $region33
    $region32: #{decoder_layer.7} parent=1 // pred_region
      %80 = dma.done [#allocation6], 16
    $region33: #{decoder_layer.7} parent=1 // pred_fallthru
      _
    // Predicated region
    $region34: #{decoder_layer.7} parent=1 // pred_check
      _
    $region35: #{decoder_layer.7} parent=1 // pred_check_branch
      %82 = sbr.rel (0) target = $region37
    $region36: #{decoder_layer.7} parent=1 // pred_region
      %83 = dma.done [#allocation9], 512
    $region37: #{decoder_layer.7} parent=1 // pred_fallthru
      _
    // Predicated region
    $region38: #{decoder_layer.7} parent=1 // pred_check
      _
    $region39: #{decoder_layer.7} parent=1 // pred_check_branch
      %85 = sbr.rel (0) target = $region41
    $region40: #{decoder_layer.7} parent=1 // pred_region
      %86 = dma.done [#allocation9], 16
    $region41: #{decoder_layer.7} parent=1 // pred_fallthru
      _
    %v88 = vld [vmem:[#allocation2] sm:$0xff]
    %v89 = vld [vmem:[#allocation2 + $0x8] sm:$0xff]
    %v90 = vld [vmem:[#allocation5] sm:$0x1]
    %v91 = vld [vmem:[#allocation7] sm:$0x1]
    %vm92 = vcmask 261120
    %v93 = vsel %vm92, %v88, 0.0
    %94 = vadd.xlane.f32.xlu0 %v93
    %v95 = vpop.xlane.xlu0 %94
    %v96 = vsel %vm92, %v89, 0.0
    %97 = vadd.xlane.f32.xlu0 %v96
    %v98 = vpop.xlane.xlu0 %97
    %v99 = vrcp.pop 32.0
    %v100 = vmul.f32 %v95, %v99
    %v101 = vmul.f32 %v98, %v99
    %v102 = vsub.f32 %v88, %v100
    %v103 = vsub.f32 %v89, %v101
    %v104 = vmul.f32 %v102, %v102
    %v105 = vmul.f32 %v103, %v103
    %v106 = vsel %vm92, %v104, 0.0
    %107 = vadd.xlane.f32.xlu0 %v106
    %v108 = vpop.xlane.xlu0 %107
    %v109 = vsel %vm92, %v105, 0.0
    %110 = vadd.xlane.f32.xlu0 %v109
    %v111 = vpop.xlane.xlu0 %110
    %v112 = vmul.f32 %v108, %v99
    %v113 = vmul.f32 %v111, %v99
    %v114 = vadd.f32 %v112, 1e-05
    %v115 = vadd.f32 %v113, 1e-05
    %v116 = vrsqrt.pop %v114
    %v117 = vrsqrt.pop %v115
    %v118 = vmul.f32 %v102, %v116
    %v119 = vmul.f32 %v103, %v117
    %v121 = vlaneseq
    %v122 = vshrl.u32 %v121, 7
    %v123 = vsub.s32 0, %v122
    %v124 = vrot.slane %v90, %v123
    %v126 = vmul.f32 %v118, %v124
    %v127 = vmul.f32 %v119, %v124
    %v129 = vlaneseq
    %v130 = vshrl.u32 %v129, 7
    %v131 = vsub.s32 0, %v130
    %v132 = vrot.slane %v91, %v131
    %v134 = vadd.f32 %v126, %v132
    %v135 = vadd.f32 %v127, %v132
    %v136 = vpack.c.bf16 %v135, %v134
    %v137 = vld [vmem:[#allocation8] sm:$0xff]
    %v138 = vld [vmem:[#allocation8 + $0x8] sm:$0xff]
    %v139 = vld [vmem:[#allocation8 + $0x10] sm:$0xff]
    %v140 = vld [vmem:[#allocation8 + $0x18] sm:$0xff]
    %v141 = vpack.c.bf16 %v138, %v137
    %v142 = vpack.c.bf16 %v140, %v139
    %v143 = vld [vmem:[#allocation10] sm:$0x1]
    %v145 = vlaneseq
    %v146 = vshrl.u32 %v145, 7
    %v147 = vsub.s32 0, %v146
    %v148 = vrot.slane %v143, %v147
    %v151 = vsel %vm92, %v136, 0
    %153 = vmatprep.subr.bf16.mxu0 0
    %154 = vmatpush1.bf16.msra.mxu0 %v141
    %155 = vmatprep.subr.bf16.mxu0 0
    %156 = vmatpush1.bf16.msra.mxu0 %v142
    %157 = vmatprep.subr.bf16.mxu0 0
    %158 = vmatpush1.bf16.msra.mxu0 0
    %159 = vmatprep.subr.bf16.mxu0 0
    %160 = vmatpush1.bf16.msra.mxu0 0
    %161 = vmatprep.subr.bf16.mxu0 0
    %162 = vmatpush1.bf16.msra.mxu0 0
    %163 = vmatprep.subr.bf16.mxu0 0
    %164 = vmatpush1.bf16.msra.mxu0 0
    %165 = vmatprep.subr.bf16.mxu0 0
    %166 = vmatpush1.bf16.msra.mxu0 0
    %167 = vmatprep.subr.bf16.mxu0 0
    %168 = vmatpush1.bf16.msra.mxu0 0
    %169 = vmatprep.subr.bf16.mxu0 0
    %170 = vmatpush1.bf16.msra.mxu0 0
    %171 = vmatprep.subr.bf16.mxu0 0
    %172 = vmatpush1.bf16.msra.mxu0 0
    %173 = vmatprep.subr.bf16.mxu0 0
    %174 = vmatpush1.bf16.msra.mxu0 0
    %175 = vmatprep.subr.bf16.mxu0 0
    %176 = vmatpush1.bf16.msra.mxu0 0
    %177 = vmatprep.subr.bf16.mxu0 0
    %178 = vmatpush1.bf16.msra.mxu0 0
    %179 = vmatprep.subr.bf16.mxu0 0
    %180 = vmatpush1.bf16.msra.mxu0 0
    %181 = vmatprep.subr.bf16.mxu0 0
    %182 = vmatpush1.bf16.msra.mxu0 0
    %183 = vmatprep.subr.bf16.mxu0 0
    %184 = vmatpush1.bf16.msra.mxu0 0
    %185 = vmatprep.mubr.bf16.mxu0 0
    %186 = vmatmul.mubr.bf16.gmra.mrb[0].mxu0 %v151
    %v187 = vpop.f32.mrb[0].mxu0
    %v188 = vadd.f32 %v148, %v187
    %v189 = vpop.f32.mrb[0].mxu0
    %v190 = vpop.f32.mrb[0].mxu0
    %v191 = vadd.f32 %v148, %v190
    %v192 = vpop.f32.mrb[0].mxu0
    %193 = vdwg.mxu0
    %194 = vst.msk [vmem:[#allocation11] sm:$0xff] %vm92, %v188
    %195 = vst.msk [vmem:[#allocation11 + $0x8] sm:$0xff] %vm92, %v191
    %198 = vrot.lane.b32.xlu0 %v188, 96
    %v199 = vpop.permute.xlu0 %198
    %200 = vrot.lane.b32.xlu0 %v191, 96
    %v201 = vpop.permute.xlu0 %200
    %204 = vst.msk [vmem:[#allocation12] sm:$0xff] %vm92, %v199
    %205 = vst.msk [vmem:[#allocation12 + $0x8] sm:$0xff] %vm92, %v201
    %206 = vrot.lane.b32.xlu0 %v188, 64
    %v207 = vpop.permute.xlu0 %206
    %208 = vrot.lane.b32.xlu0 %v191, 64
    %v209 = vpop.permute.xlu0 %208
    %212 = vst.msk [vmem:[#allocation14] sm:$0xff] %vm92, %v207
    %213 = vst.msk [vmem:[#allocation14 + $0x8] sm:$0xff] %vm92, %v209
    // Predicated region
    $region42: #{decoder_layer.7} parent=1 // pred_check
      _
    $region43: #{decoder_layer.7} parent=1 // pred_check_branch
      %215 = sbr.rel (0) target = $region45
    $region44: #{decoder_layer.7} parent=1 // pred_region
      %s217 = ssub.s32 256, 256
      %218 = vsyncadd [#allocation4], %s217
      %s219 = sshll.u32 [#allocation11], 4
      %s220 = int_to_ptr.vmem [resolvable:$true] %s219
      %225 = dma.vmem_to_hbm [thread:$0]  %s220, 256, %s5, [#allocation4], 128, 128, 8
    $region45: #{decoder_layer.7} parent=1 // pred_fallthru
      _
    // Predicated region
    $region46: #{decoder_layer.7} parent=1 // pred_check
      _
    $region47: #{decoder_layer.7} parent=1 // pred_check_branch
      %227 = sbr.rel (0) target = $region49
    $region48: #{decoder_layer.7} parent=1 // pred_region
      %s229 = ssub.s32 256, 256
      %230 = vsyncadd [#allocation13], %s229
      %s231 = sshll.u32 [#allocation12], 4
      %s232 = int_to_ptr.vmem [resolvable:$true] %s231
      %237 = dma.vmem_to_hbm [thread:$0]  %s232, 256, %s6, [#allocation13], 128, 128, 8
    $region49: #{decoder_layer.7} parent=1 // pred_fallthru
      _
    // Predicated region
    $region50: #{decoder_layer.7} parent=1 // pred_check
      _
    $region51: #{decoder_layer.7} parent=1 // pred_check_branch
      %239 = sbr.rel (0) target = $region53
    $region52: #{decoder_layer.7} parent=1 // pred_region
      %s241 = ssub.s32 256, 256
      %242 = vsyncadd [#allocation13], %s241
      %s243 = sshll.u32 [#allocation14], 4
      %s244 = int_to_ptr.vmem [resolvable:$true] %s243
      %249 = dma.vmem_to_hbm [thread:$0]  %s244, 256, %s7, [#allocation13], 128, 128, 8
    $region53: #{decoder_layer.7} parent=1 // pred_fallthru
      _
    // Predicated region
    $region54: #{decoder_layer.7} parent=1 // pred_check
      _
    $region55: #{decoder_layer.7} parent=1 // pred_check_branch
      %251 = sbr.rel (0) target = $region57
    $region56: #{decoder_layer.7} parent=1 // pred_region
      %252 = dma.done [#allocation4], 256
    $region57: #{decoder_layer.7} parent=1 // pred_fallthru
      _
    // Predicated region
    $region58: #{decoder_layer.7} parent=1 // pred_check
      _
    $region59: #{decoder_layer.7} parent=1 // pred_check_branch
      %254 = sbr.rel (0) target = $region61
    $region60: #{decoder_layer.7} parent=1 // pred_region
      %255 = dma.done [#allocation13], 256
    $region61: #{decoder_layer.7} parent=1 // pred_fallthru
      _
    // Predicated region
    $region62: #{decoder_layer.7} parent=1 // pred_check
      _
    $region63: #{decoder_layer.7} parent=1 // pred_check_branch
      %257 = sbr.rel (0) target = $region65
    $region64: #{decoder_layer.7} parent=1 // pred_region
      %258 = dma.done [#allocation13], 256
    $region65: #{decoder_layer.7} parent=1 // pred_fallthru
      _
    %259 = vsyncpa [#allocation3], 1
    %260 = vsyncpa [#allocation6], 1
    %261 = vsyncpa [#allocation9], 1
    %262 = vsyncpa [#allocation4], 1
    %263 = vsyncpa [#allocation13], 1

// kernel: decoder_layer.8
$region0: #{decoder_layer.8}
  #allocation0 [shape = 'u32[]', space=smem, size = 0x4, offset = 0x4, fixed_abs, tag = 'smem constant byte address 0x4 - core index']
  #allocation1 [shape = 'u32[144,128]{1,0:T(1,128)}', space=vmem, size = 0x12000, scoped, tag = 'internal scratch']
  %s0 = inlined_call_operand.hbm [shape: f32[2,8,32], index: 0, kind: input, shape index: {}]
  %s1 = inlined_call_operand.hbm [shape: f32[2,8,32], index: 1, kind: input, shape index: {}]
  %s2 = inlined_call_operand.hbm [shape: f32[2,8,32], index: 2, kind: input, shape index: {}]
  %s3 = inlined_call_operand.hbm [shape: f32[8,8], index: 3, kind: input, shape index: {}]
  %s4 = inlined_call_operand.hbm [shape: f32[2,1,8], index: 4, kind: input, shape index: {}]
  %s5 = inlined_call_operand.hbm [shape: f32[2,8,32], index: 5, kind: output, shape index: {0}]
  %s6 = inlined_call_operand.hbm [shape: f32[2,8,8], index: 6, kind: output, shape index: {1}]
  %7 = xla_tuple %s5, %s6
  %s8 = sld [smem:[#allocation0]]
  $region81: #{decoder_layer.8} parent=0
    _
  %s10 = ssub.s32 1, %s8
  %s11 = scalar_select 0, %s10, %s8
  $region1: #{decoder_layer.8} parent=0
    #allocation2 [shape = 'u8[8192]{0}', space=vmem, size = 0x2000, scoped, tag = 'input window, operand 0']
    #allocation3 [shape = 's32[2]{0}', space=sflag, size = 0x8, scoped, tag = 'scoped memory for decoder_layer.8']
    #allocation4 [shape = 's32[2]{0}', space=sflag, size = 0x8, scoped, tag = 'scoped memory for decoder_layer.8']
    #allocation5 [shape = 'u8[8192]{0}', space=vmem, size = 0x2000, scoped, tag = 'input window, operand 1']
    #allocation6 [shape = 's32[2]{0}', space=sflag, size = 0x8, scoped, tag = 'scoped memory for decoder_layer.8']
    #allocation7 [shape = 'u8[8192]{0}', space=vmem, size = 0x2000, scoped, tag = 'input window, operand 2']
    #allocation8 [shape = 'u8[4096]{0}', space=vmem, size = 0x1000, scoped, tag = 'input window, operand 3, single buffered']
    #allocation9 [shape = 's32[1]{0}', space=sflag, size = 0x4, scoped, tag = 'scoped memory for decoder_layer.8']
    #allocation10 [shape = 'u8[1024]{0}', space=vmem, size = 0x400, scoped, tag = 'input window, operand 4']
    #allocation11 [shape = 'u8[8192]{0}', space=vmem, size = 0x2000, scoped, tag = 'output window, operand 0']
    #allocation12 [shape = 'u8[8192]{0}', space=vmem, size = 0x2000, scoped, tag = 'output window, operand 1']
    #allocation13 [shape = 's32[2]{0}', space=sflag, size = 0x8, scoped, tag = 'scoped memory for decoder_layer.8']
    %12 = vsyncpa [#allocation3], 0
    %s13 = scalar_lea.sflag [#allocation3], 1
    %14 = vsyncpa %s13, 0
    %15 = vsyncpa [#allocation6], 0
    %s16 = scalar_lea.sflag [#allocation6], 1
    %17 = vsyncpa %s16, 0
    %18 = vsyncpa [#allocation9], 0
    %19 = vsyncpa [#allocation4], 0
    %s20 = scalar_lea.sflag [#allocation4], 1
    %21 = vsyncpa %s20, 0
    %22 = vsyncpa [#allocation13], 0
    %s23 = scalar_lea.sflag [#allocation13], 1
    %24 = vsyncpa %s23, 0
    loop: start=0, step=1, limit=4
    $region2: #{decoder_layer.8} parent=1 // loop_pre_header
      _
    $region3: #{decoder_layer.8} parent=1 // loop_header
      %s26 = sphi 0, %s30
      %p27 = scmp.ge.s32.totalorder %s26, 4
      %s36 = sphi 0, %s38
      %s39 = sphi 0, %s36
      %s40 = sphi 0, %s39
      %s56 = sphi 0, %s40
      %s62 = sphi 0, %s64
      %s65 = sphi 0, %s62
      %s66 = sphi 0, %s65
      %s82 = sphi 0, %s66
      %s88 = sphi 0, %s90
      %s91 = sphi 0, %s88
      %s92 = sphi 0, %s91
      %s108 = sphi 0, %s92
      %s112 = sphi 0, %s112
      %s114 = sphi 0, %s112
      %s115 = sphi 0, %s114
      %s129 = sphi 0, %s115
      %s135 = sphi 0, %s137
      %s138 = sphi 0, %s135
      %s139 = sphi 0, %s138
      %s155 = sphi 0, %s139
      %s161 = sphi 0, %s163
      %s164 = sphi 0, %s161
      %s165 = sphi 0, %s164
      %s181 = sphi 0, %s165
      %s187 = sphi 0, %s189
      %s190 = sphi 0, %s187
      %s191 = sphi 0, %s190
      %s207 = sphi 0, %s191
    $region4: #{decoder_layer.8} parent=1 // loop_header_branch
      %29 = sbr.rel (%p27) target = $region8
    $region5: #{decoder_layer.8} parent=1 // loop_body
      %s31 = ssub.s32 %s26, 1
      %s32 = ssub.s32 %s26, 2
      %s33 = sadd.s32 %s26, 1
      %s34 = ssub.s32 %s26, %s33
      %p35 = scmp.eq.s32.totalorder %s34, 0
      %s37 = sadd.s32 %s36, 1
      %s38 = scalar_select %p35, %s36, %s37
      %p41 = pneg %p35
      %p42 = scmp.eq.s32.totalorder %s26, 1
      %p43 = por %p41, %p42
      %p44 = scmp.ne.s32.totalorder %s36, %s39
      %p45 = scmp.eq.s32.totalorder %s26, 0
      %p46 = por %p44, %p45
      %p47 = scmp.ne.s32.totalorder %s36, %s39
      %p48 = scmp.eq.s32.totalorder %s31, 1
      %p49 = por %p47, %p48
      %p50 = scmp.ne.s32.totalorder %s39, %s40
      %p51 = scmp.eq.s32.totalorder %s31, 0
      %p52 = por %p50, %p51
      %p53 = scmp.ne.s32.totalorder %s39, %s40
      %p54 = scmp.eq.s32.totalorder %s32, 1
      %p55 = por %p53, %p54
      %p57 = scmp.ne.s32.totalorder %s40, %s56
      %p58 = scmp.eq.s32.totalorder %s32, 0
      %p59 = por %p57, %p58
      %s60 = ssub.s32 %s26, %s33
      %p61 = scmp.eq.s32.totalorder %s60, 0
      %s63 = sadd.s32 %s62, 1
      %s64 = scalar_select %p61, %s62, %s63
      %p67 = pneg %p61
      %p68 = scmp.eq.s32.totalorder %s26, 1
      %p69 = por %p67, %p68
      %p70 = scmp.ne.s32.totalorder %s62, %s65
      %p71 = scmp.eq.s32.totalorder %s26, 0
      %p72 = por %p70, %p71
      %p73 = scmp.ne.s32.totalorder %s62, %s65
      %p74 = scmp.eq.s32.totalorder %s31, 1
      %p75 = por %p73, %p74
      %p76 = scmp.ne.s32.totalorder %s65, %s66
      %p77 = scmp.eq.s32.totalorder %s31, 0
      %p78 = por %p76, %p77
      %p79 = scmp.ne.s32.totalorder %s65, %s66
      %p80 = scmp.eq.s32.totalorder %s32, 1
      %p81 = por %p79, %p80
      %p83 = scmp.ne.s32.totalorder %s66, %s82
      %p84 = scmp.eq.s32.totalorder %s32, 0
      %p85 = por %p83, %p84
      %s86 = ssub.s32 %s26, %s33
      %p87 = scmp.eq.s32.totalorder %s86, 0
      %s89 = sadd.s32 %s88, 1
      %s90 = scalar_select %p87, %s88, %s89
      %p93 = pneg %p87
      %p94 = scmp.eq.s32.totalorder %s26, 1
      %p95 = por %p93, %p94
      %p96 = scmp.ne.s32.totalorder %s88, %s91
      %p97 = scmp.eq.s32.totalorder %s26, 0
      %p98 = por %p96, %p97
      %p99 = scmp.ne.s32.totalorder %s88, %s91
      %p100 = scmp.eq.s32.totalorder %s31, 1
      %p101 = por %p99, %p100
      %p102 = scmp.ne.s32.totalorder %s91, %s92
      %p103 = scmp.eq.s32.totalorder %s31, 0
      %p104 = por %p102, %p103
      %p105 = scmp.ne.s32.totalorder %s91, %s92
      %p106 = scmp.eq.s32.totalorder %s32, 1
      %p107 = por %p105, %p106
      %p109 = scmp.ne.s32.totalorder %s92, %s108
      %p110 = scmp.eq.s32.totalorder %s32, 0
      %p111 = por %p109, %p110
      %s113 = sadd.s32 %s112, 1
      %p116 = scmp.eq.s32.totalorder %s26, 1
      %p117 = scmp.ne.s32.totalorder %s112, %s114
      %p118 = scmp.eq.s32.totalorder %s26, 0
      %p119 = por %p117, %p118
      %p120 = scmp.ne.s32.totalorder %s112, %s114
      %p121 = scmp.eq.s32.totalorder %s31, 1
      %p122 = por %p120, %p121
      %p123 = scmp.ne.s32.totalorder %s114, %s115
      %p124 = scmp.eq.s32.totalorder %s31, 0
      %p125 = por %p123, %p124
      %p126 = scmp.ne.s32.totalorder %s114, %s115
      %p127 = scmp.eq.s32.totalorder %s32, 1
      %p128 = por %p126, %p127
      %p130 = scmp.ne.s32.totalorder %s115, %s129
      %p131 = scmp.eq.s32.totalorder %s32, 0
      %p132 = por %p130, %p131
      %s133 = ssub.s32 %s26, %s33
      %p134 = scmp.eq.s32.totalorder %s133, 0
      %s136 = sadd.s32 %s135, 1
      %s137 = scalar_select %p134, %s135, %s136
      %p140 = pneg %p134
      %p141 = scmp.eq.s32.totalorder %s26, 1
      %p142 = por %p140, %p141
      %p143 = scmp.ne.s32.totalorder %s135, %s138
      %p144 = scmp.eq.s32.totalorder %s26, 0
      %p145 = por %p143, %p144
      %p146 = scmp.ne.s32.totalorder %s135, %s138
      %p147 = scmp.eq.s32.totalorder %s31, 1
      %p148 = por %p146, %p147
      %p149 = scmp.ne.s32.totalorder %s138, %s139
      %p150 = scmp.eq.s32.totalorder %s31, 0
      %p151 = por %p149, %p150
      %p152 = scmp.ne.s32.totalorder %s138, %s139
      %p153 = scmp.eq.s32.totalorder %s32, 1
      %p154 = por %p152, %p153
      %p156 = scmp.ne.s32.totalorder %s139, %s155
      %p157 = scmp.eq.s32.totalorder %s32, 0
      %p158 = por %p156, %p157
      %s159 = ssub.s32 %s26, %s33
      %p160 = scmp.eq.s32.totalorder %s159, 0
      %s162 = sadd.s32 %s161, 1
      %s163 = scalar_select %p160, %s161, %s162
      %p166 = pneg %p160
      %p167 = scmp.eq.s32.totalorder %s26, 1
      %p168 = por %p166, %p167
      %p169 = scmp.ne.s32.totalorder %s161, %s164
      %p170 = scmp.eq.s32.totalorder %s26, 0
      %p171 = por %p169, %p170
      %p172 = scmp.ne.s32.totalorder %s161, %s164
      %p173 = scmp.eq.s32.totalorder %s31, 1
      %p174 = por %p172, %p173
      %p175 = scmp.ne.s32.totalorder %s164, %s165
      %p176 = scmp.eq.s32.totalorder %s31, 0
      %p177 = por %p175, %p176
      %p178 = scmp.ne.s32.totalorder %s164, %s165
      %p179 = scmp.eq.s32.totalorder %s32, 1
      %p180 = por %p178, %p179
      %p182 = scmp.ne.s32.totalorder %s165, %s181
      %p183 = scmp.eq.s32.totalorder %s32, 0
      %p184 = por %p182, %p183
      %s185 = ssub.s32 %s26, %s33
      %p186 = scmp.eq.s32.totalorder %s185, 0
      %s188 = sadd.s32 %s187, 1
      %s189 = scalar_select %p186, %s187, %s188
      %p192 = pneg %p186
      %p193 = scmp.eq.s32.totalorder %s26, 1
      %p194 = por %p192, %p193
      %p195 = scmp.ne.s32.totalorder %s187, %s190
      %p196 = scmp.eq.s32.totalorder %s26, 0
      %p197 = por %p195, %p196
      %p198 = scmp.ne.s32.totalorder %s187, %s190
      %p199 = scmp.eq.s32.totalorder %s31, 1
      %p200 = por %p198, %p199
      %p201 = scmp.ne.s32.totalorder %s190, %s191
      %p202 = scmp.eq.s32.totalorder %s31, 0
      %p203 = por %p201, %p202
      %p204 = scmp.ne.s32.totalorder %s190, %s191
      %p205 = scmp.eq.s32.totalorder %s32, 1
      %p206 = por %p204, %p205
      %p208 = scmp.ne.s32.totalorder %s191, %s207
      %p209 = scmp.eq.s32.totalorder %s32, 0
      %p210 = por %p208, %p209
      %p211 = scmp.le.s32.totalorder 1, %s26
      %p212 = scmp.lt.s32.totalorder %s26, 3
      %p213 = pnand %p211, %p212
      %p214 = pneg %p213
      // Predicated region
      $region9: #{decoder_layer.8} parent=5 // pred_check
        _
      $region10: #{decoder_layer.8} parent=5 // pred_check_branch
        %216 = sbr.rel (%p213) target = $region12
      $region11: #{decoder_layer.8} parent=5 // pred_region
        %s217 = ssub.s32 %s26, 1
        // Predicated region
        $region13: #{decoder_layer.8} parent=11 // pred_check
          %p218 = pneg %p125
        $region14: #{decoder_layer.8} parent=11 // pred_check_branch
          %220 = sbr.rel (%p218) target = $region16
        $region15: #{decoder_layer.8} parent=11 // pred_region
          %s222 = ssub.s32 128, 128
          %223 = vsyncadd [#allocation9], %s222
          %s225 = sshll.u32 [#allocation8], 4
          %s226 = int_to_ptr.vmem [resolvable:$true] %s225
          %228 = dma.hbm_to_vmem [thread:$0]  %s3, 128, %s226, [#allocation9]
        $region16: #{decoder_layer.8} parent=11 // pred_fallthru
          _
      $region12: #{decoder_layer.8} parent=5 // pred_fallthru
        _
      %p229 = scmp.lt.s32.totalorder %s26, 2
      // Predicated region
      $region17: #{decoder_layer.8} parent=5 // pred_check
        %p230 = pneg %p229
      $region18: #{decoder_layer.8} parent=5 // pred_check_branch
        %232 = sbr.rel (%p230) target = $region20
      $region19: #{decoder_layer.8} parent=5 // pred_region
        // Predicated region
        $region21: #{decoder_layer.8} parent=19 // pred_check
          %p233 = pneg %p46
        $region22: #{decoder_layer.8} parent=19 // pred_check_branch
          %235 = sbr.rel (%p233) target = $region24
        $region23: #{decoder_layer.8} parent=19 // pred_region
          %s236 = sand.u32 %s26, 1
          %s237 = scalar_lea.sflag [#allocation3], %s236
          %s238 = sand.u32 %s36, 1
          %s239 = smul.addr %s238, 8
          %s240 = scalar_lea.vmem [#allocation2], %s239
          %s242 = ssub.s32 128, 128
          %243 = vsyncadd %s237, %s242
          %s244 = smul.addr %s26, 128
          %s245 = scalar_lea.hbm %s0, %s244
          %s247 = sshll.u32 %s240, 4
          %s248 = int_to_ptr.vmem [resolvable:$true] %s247
          %250 = dma.hbm_to_vmem [thread:$0]  %s245, 128, %s248, %s237
        $region24: #{decoder_layer.8} parent=19 // pred_fallthru
          _
        // Predicated region
        $region25: #{decoder_layer.8} parent=19 // pred_check
          %p251 = pneg %p72
        $region26: #{decoder_layer.8} parent=19 // pred_check_branch
          %253 = sbr.rel (%p251) target = $region28
        $region27: #{decoder_layer.8} parent=19 // pred_region
          %s254 = sand.u32 %s26, 1
          %s255 = scalar_lea.sflag [#allocation6], %s254
          %s256 = sand.u32 %s62, 1
          %s257 = smul.addr %s256, 8
          %s258 = scalar_lea.vmem [#allocation5], %s257
          %s260 = ssub.s32 128, 128
          %261 = vsyncadd %s255, %s260
          %s262 = smul.addr %s26, 128
          %s263 = scalar_lea.hbm %s1, %s262
          %s265 = sshll.u32 %s258, 4
          %s266 = int_to_ptr.vmem [resolvable:$true] %s265
          %268 = dma.hbm_to_vmem [thread:$0]  %s263, 128, %s266, %s255
        $region28: #{decoder_layer.8} parent=19 // pred_fallthru
          _
        // Predicated region
        $region29: #{decoder_layer.8} parent=19 // pred_check
          %p269 = pneg %p98
        $region30: #{decoder_layer.8} parent=19 // pred_check_branch
          %271 = sbr.rel (%p269) target = $region32
        $region31: #{decoder_layer.8} parent=19 // pred_region
          %s272 = sand.u32 %s26, 1
          %s273 = scalar_lea.sflag [#allocation6], %s272
          %s274 = sand.u32 %s88, 1
          %s275 = smul.addr %s274, 8
          %s276 = scalar_lea.vmem [#allocation7], %s275
          %s278 = ssub.s32 128, 128
          %279 = vsyncadd %s273, %s278
          %s280 = smul.addr %s26, 128
          %s281 = scalar_lea.hbm %s2, %s280
          %s283 = sshll.u32 %s276, 4
          %s284 = int_to_ptr.vmem [resolvable:$true] %s283
          %286 = dma.hbm_to_vmem [thread:$0]  %s281, 128, %s284, %s273
        $region32: #{decoder_layer.8} parent=19 // pred_fallthru
          _
        // Predicated region
        $region33: #{decoder_layer.8} parent=19 // pred_check
          %p287 = pneg %p145
        $region34: #{decoder_layer.8} parent=19 // pred_check_branch
          %289 = sbr.rel (%p287) target = $region36
        $region35: #{decoder_layer.8} parent=19 // pred_region
          %s290 = sand.u32 %s26, 1
          %s291 = scalar_lea.sflag [#allocation3], %s290
          %s292 = sand.u32 %s135, 1
          %s293 = scalar_lea.vmem [#allocation10], %s292
          %s295 = ssub.s32 16, 16
          %296 = vsyncadd %s291, %s295
          %s297 = smul.addr %s26, 16
          %s298 = scalar_lea.hbm %s4, %s297
          %s300 = sshll.u32 %s293, 4
          %s301 = int_to_ptr.vmem [resolvable:$true] %s300
          %303 = dma.hbm_to_vmem [thread:$0]  %s298, 16, %s301, %s291
        $region36: #{decoder_layer.8} parent=19 // pred_fallthru
          _
      $region20: #{decoder_layer.8} parent=5 // pred_fallthru
        _
      %p304 = scmp.le.s32.totalorder 1, %s26
      %p305 = scmp.lt.s32.totalorder %s26, 3
      %p306 = pnand %p304, %p305
      %p307 = pneg %p306
      // Predicated region
      $region37: #{decoder_layer.8} parent=5 // pred_check
        _
      $region38: #{decoder_layer.8} parent=5 // pred_check_branch
        %309 = sbr.rel (%p306) target = $region40
      $region39: #{decoder_layer.8} parent=5 // pred_region
        %s310 = ssub.s32 %s26, 1
        %s311 = sand.u32 %s31, 1
        %s312 = scalar_lea.sflag [#allocation3], %s311
        %s313 = sand.u32 %s39, 1
        %s314 = smul.addr %s313, 8
        %s315 = scalar_lea.vmem [#allocation2], %s314
        // Predicated region
        $region41: #{decoder_layer.8} parent=39 // pred_check
          %p316 = pneg %p52
        $region42: #{decoder_layer.8} parent=39 // pred_check_branch
          %318 = sbr.rel (%p316) target = $region44
        $region43: #{decoder_layer.8} parent=39 // pred_region
          %319 = dma.done %s312, 128
        $region44: #{decoder_layer.8} parent=39 // pred_fallthru
          _
        %s320 = sand.u32 %s31, 1
        %s321 = scalar_lea.sflag [#allocation6], %s320
        %s322 = sand.u32 %s65, 1
        %s323 = smul.addr %s322, 8
        %s324 = scalar_lea.vmem [#allocation5], %s323
        // Predicated region
        $region45: #{decoder_layer.8} parent=39 // pred_check
          %p325 = pneg %p78
        $region46: #{decoder_layer.8} parent=39 // pred_check_branch
          %327 = sbr.rel (%p325) target = $region48
        $region47: #{decoder_layer.8} parent=39 // pred_region
          %328 = dma.done %s321, 128
        $region48: #{decoder_layer.8} parent=39 // pred_fallthru
          _
        %s329 = sand.u32 %s31, 1
        %s330 = scalar_lea.sflag [#allocation6], %s329
        %s331 = sand.u32 %s91, 1
        %s332 = smul.addr %s331, 8
        %s333 = scalar_lea.vmem [#allocation7], %s332
        // Predicated region
        $region49: #{decoder_layer.8} parent=39 // pred_check
          %p334 = pneg %p104
        $region50: #{decoder_layer.8} parent=39 // pred_check_branch
          %336 = sbr.rel (%p334) target = $region52
        $region51: #{decoder_layer.8} parent=39 // pred_region
          %337 = dma.done %s330, 128
        $region52: #{decoder_layer.8} parent=39 // pred_fallthru
          _
        // Predicated region
        $region53: #{decoder_layer.8} parent=39 // pred_check
          %p338 = pneg %p125
        $region54: #{decoder_layer.8} parent=39 // pred_check_branch
          %340 = sbr.rel (%p338) target = $region56
        $region55: #{decoder_layer.8} parent=39 // pred_region
          %341 = dma.done [#allocation9], 128
        $region56: #{decoder_layer.8} parent=39 // pred_fallthru
          _
        %s342 = sand.u32 %s31, 1
        %s343 = scalar_lea.sflag [#allocation3], %s342
        %s344 = sand.u32 %s138, 1
        %s345 = scalar_lea.vmem [#allocation10], %s344
        // Predicated region
        $region57: #{decoder_layer.8} parent=39 // pred_check
          %p346 = pneg %p151
        $region58: #{decoder_layer.8} parent=39 // pred_check_branch
          %348 = sbr.rel (%p346) target = $region60
        $region59: #{decoder_layer.8} parent=39 // pred_region
          %349 = dma.done %s343, 16
        $region60: #{decoder_layer.8} parent=39 // pred_fallthru
          _
        %s350 = sand.u32 %s31, 1
        %s351 = scalar_lea.sflag [#allocation3], %s350
        %s352 = sand.u32 %s39, 1
        %s353 = smul.addr %s352, 8
        %s354 = scalar_lea.vmem [#allocation2], %s353
        %p355 = pneg %p52
        %p356 = pneg %p49
        %s357 = sand.u32 %s31, 1
        %s358 = scalar_lea.sflag [#allocation6], %s357
        %s359 = sand.u32 %s65, 1
        %s360 = smul.addr %s359, 8
        %s361 = scalar_lea.vmem [#allocation5], %s360
        %p362 = pneg %p78
        %p363 = pneg %p75
        %s364 = sand.u32 %s31, 1
        %s365 = scalar_lea.sflag [#allocation6], %s364
        %s366 = sand.u32 %s91, 1
        %s367 = smul.addr %s366, 8
        %s368 = scalar_lea.vmem [#allocation7], %s367
        %p369 = pneg %p104
        %p370 = pneg %p101
        %p371 = pneg %p125
        %p372 = pneg %p122
        %s373 = sand.u32 %s31, 1
        %s374 = scalar_lea.sflag [#allocation3], %s373
        %s375 = sand.u32 %s138, 1
        %s376 = scalar_lea.vmem [#allocation10], %s375
        %p377 = pneg %p151
        %p378 = pneg %p148
        %p379 = pneg %p177
        %p380 = pneg %p174
        %s381 = sand.u32 %s164, 1
        %s382 = scalar_lea.sflag [#allocation4], %s381
        %s383 = sand.u32 %s164, 1
        %s384 = smul.addr %s383, 8
        %s385 = scalar_lea.vmem [#allocation11], %s384
        %p386 = pneg %p203
        %p387 = pneg %p200
        %s388 = sand.u32 %s190, 1
        %s389 = scalar_lea.sflag [#allocation13], %s388
        %s390 = sand.u32 %s190, 1
        %s391 = smul.addr %s390, 8
        %s392 = scalar_lea.vmem [#allocation12], %s391
        %v394 = vld [vmem:[#allocation8] sm:$0xff]
        %v395 = vld [vmem:[%s345] sm:$0x1]
        %v397 = vlaneseq
        %v398 = vshrl.u32 %v397, 7
        %v399 = vsub.s32 0, %v398
        %v400 = vrot.slane %v395, %v399
        %v402 = vadd.f32 %v394, %v400
        %v403 = vld [vmem:[%s315] sm:$0xff]
        %v404 = vld [vmem:[%s324] sm:$0xff]
        %v405 = vld [vmem:[%s333] sm:$0xff]
        %v406 = vpack.c.bf16 %v403, %v403
        %v407 = vpack.c.bf16 %v404, %v404
        %v408 = vpack.c.bf16 %v405, %v405
        %vm409 = vcmask 64512
        %v411 = vsel %vm409, %v406, 0
        %v414 = vsel %vm409, %v407, 0
        %416 = vmatprep.subr.bf16.mxu0 0
        %417 = vmatpush1.bf16.xpose.msra.mxu0 %v414
        %418 = vmatprep.subr.bf16.mxu0 0
        %419 = vmatpush1.bf16.xpose.msra.mxu0 0
        %420 = vmatprep.subr.bf16.mxu0 0
        %421 = vmatpush1.bf16.xpose.msra.mxu0 0
        %422 = vmatprep.subr.bf16.mxu0 0
        %423 = vmatpush1.bf16.xpose.msra.mxu0 0
        %424 = vmatprep.subr.bf16.mxu0 0
        %425 = vmatpush1.bf16.xpose.msra.mxu0 0
        %426 = vmatprep.subr.bf16.mxu0 0
        %427 = vmatpush1.bf16.xpose.msra.mxu0 0
        %428 = vmatprep.subr.bf16.mxu0 0
        %429 = vmatpush1.bf16.xpose.msra.mxu0 0
        %430 = vmatprep.subr.bf16.mxu0 0
        %431 = vmatpush1.bf16.xpose.msra.mxu0 0
        %432 = vmatprep.subr.bf16.mxu0 0
        %433 = vmatpush1.bf16.xpose.msra.mxu0 0
        %434 = vmatprep.subr.bf16.mxu0 0
        %435 = vmatpush1.bf16.xpose.msra.mxu0 0
        %436 = vmatprep.subr.bf16.mxu0 0
        %437 = vmatpush1.bf16.xpose.msra.mxu0 0
        %438 = vmatprep.subr.bf16.mxu0 0
        %439 = vmatpush1.bf16.xpose.msra.mxu0 0
        %440 = vmatprep.subr.bf16.mxu0 0
        %441 = vmatpush1.bf16.xpose.msra.mxu0 0
        %442 = vmatprep.subr.bf16.mxu0 0
        %443 = vmatpush1.bf16.xpose.msra.mxu0 0
        %444 = vmatprep.subr.bf16.mxu0 0
        %445 = vmatpush1.bf16.xpose.msra.mxu0 0
        %446 = vmatprep.subr.bf16.mxu0 0
        %447 = vmatpush1.bf16.xpose.msra.mxu0 0
        %448 = vmatprep.mubr.bf16.mxu0 0
        %449 = vmatmul.mubr.bf16.gmra.mrb[0].mxu0 %v411
        %v450 = vpop.f32.mrb[0].mxu0
        %v451 = vadd.f32 0.0, %v450
        %v452 = vpop.f32.mrb[0].mxu0
        %v453 = vpop.f32.mrb[0].mxu0
        %v454 = vpop.f32.mrb[0].mxu0
        %455 = vdwg.mxu0
        %v456 = vmul.f32 %v451, 0.35355338
        %v457 = vadd.f32 %v456, %v402
        %v458 = vsel %vm409, %v457, -inf
        %459 = vmax.xlane.f32.xlu0 %v458
        %v460 = vpop.xlane.xlu0 %459
        %v461 = vsub.f32 %v457, %v460
        %v462 = vmul.f32 %v461, 1.442695
        %v463 = vpow.pop %v462
        %v464 = vsel %vm409, %v463, 0.0
        %465 = vadd.xlane.f32.xlu0 %v464
        %v466 = vpop.xlane.xlu0 %465
        %v467 = vrcp.pop %v466
        %v468 = vmul.f32 %v463, %v467
        %v469 = vadd.f32 %v468, 0.0
        %v470 = vpack.c.bf16 %v468, %v468
        %v472 = vsel %vm409, %v470, 0
        %vm474 = vcmask 1043456
        %v476 = vsel %vm474, %v408, 0
        %478 = vmatprep.subr.bf16.mxu0 0
        %479 = vmatpush1.bf16.msra.mxu0 %v476
        %480 = vmatprep.subr.bf16.mxu0 0
        %481 = vmatpush1.bf16.msra.mxu0 0
        %482 = vmatprep.subr.bf16.mxu0 0
        %483 = vmatpush1.bf16.msra.mxu0 0
        %484 = vmatprep.subr.bf16.mxu0 0
        %485 = vmatpush1.bf16.msra.mxu0 0
        %486 = vmatprep.subr.bf16.mxu0 0
        %487 = vmatpush1.bf16.msra.mxu0 0
        %488 = vmatprep.subr.bf16.mxu0 0
        %489 = vmatpush1.bf16.msra.mxu0 0
        %490 = vmatprep.subr.bf16.mxu0 0
        %491 = vmatpush1.bf16.msra.mxu0 0
        %492 = vmatprep.subr.bf16.mxu0 0
        %493 = vmatpush1.bf16.msra.mxu0 0
        %494 = vmatprep.subr.bf16.mxu0 0
        %495 = vmatpush1.bf16.msra.mxu0 0
        %496 = vmatprep.subr.bf16.mxu0 0
        %497 = vmatpush1.bf16.msra.mxu0 0
        %498 = vmatprep.subr.bf16.mxu0 0
        %499 = vmatpush1.bf16.msra.mxu0 0
        %500 = vmatprep.subr.bf16.mxu0 0
        %501 = vmatpush1.bf16.msra.mxu0 0
        %502 = vmatprep.subr.bf16.mxu0 0
        %503 = vmatpush1.bf16.msra.mxu0 0
        %504 = vmatprep.subr.bf16.mxu0 0
        %505 = vmatpush1.bf16.msra.mxu0 0
        %506 = vmatprep.subr.bf16.mxu0 0
        %507 = vmatpush1.bf16.msra.mxu0 0
        %508 = vmatprep.subr.bf16.mxu0 0
        %509 = vmatpush1.bf16.msra.mxu0 0
        %510 = vmatprep.mubr.bf16.mxu0 0
        %511 = vmatmul.mubr.bf16.gmra.mrb[0].mxu0 %v472
        %v512 = vpop.f32.mrb[0].mxu0
        %v513 = vadd.f32 0.0, %v512
        %v514 = vpop.f32.mrb[0].mxu0
        %v515 = vpop.f32.mrb[0].mxu0
        %v516 = vpop.f32.mrb[0].mxu0
        %517 = vdwg.mxu0
        %519 = vrot.lane.b32.xlu0 %v406, 120
        %v520 = vpop.permute.xlu0 %519
        %522 = vrot.lane.b32.xlu0 %v407, 120
        %v523 = vpop.permute.xlu0 %522
        %v525 = vsel %vm409, %v520, 0
        %v528 = vsel %vm409, %v523, 0
        %530 = vmatprep.subr.bf16.mxu0 0
        %531 = vmatpush1.bf16.xpose.msra.mxu0 %v528
        %532 = vmatprep.subr.bf16.mxu0 0
        %533 = vmatpush1.bf16.xpose.msra.mxu0 0
        %534 = vmatprep.subr.bf16.mxu0 0
        %535 = vmatpush1.bf16.xpose.msra.mxu0 0
        %536 = vmatprep.subr.bf16.mxu0 0
        %537 = vmatpush1.bf16.xpose.msra.mxu0 0
        %538 = vmatprep.subr.bf16.mxu0 0
        %539 = vmatpush1.bf16.xpose.msra.mxu0 0
        %540 = vmatprep.subr.bf16.mxu0 0
        %541 = vmatpush1.bf16.xpose.msra.mxu0 0
        %542 = vmatprep.subr.bf16.mxu0 0
        %543 = vmatpush1.bf16.xpose.msra.mxu0 0
        %544 = vmatprep.subr.bf16.mxu0 0
        %545 = vmatpush1.bf16.xpose.msra.mxu0 0
        %546 = vmatprep.subr.bf16.mxu0 0
        %547 = vmatpush1.bf16.xpose.msra.mxu0 0
        %548 = vmatprep.subr.bf16.mxu0 0
        %549 = vmatpush1.bf16.xpose.msra.mxu0 0
        %550 = vmatprep.subr.bf16.mxu0 0
        %551 = vmatpush1.bf16.xpose.msra.mxu0 0
        %552 = vmatprep.subr.bf16.mxu0 0
        %553 = vmatpush1.bf16.xpose.msra.mxu0 0
        %554 = vmatprep.subr.bf16.mxu0 0
        %555 = vmatpush1.bf16.xpose.msra.mxu0 0
        %556 = vmatprep.subr.bf16.mxu0 0
        %557 = vmatpush1.bf16.xpose.msra.mxu0 0
        %558 = vmatprep.subr.bf16.mxu0 0
        %559 = vmatpush1.bf16.xpose.msra.mxu0 0
        %560 = vmatprep.subr.bf16.mxu0 0
        %561 = vmatpush1.bf16.xpose.msra.mxu0 0
        %562 = vmatprep.mubr.bf16.mxu0 0
        %563 = vmatmul.mubr.bf16.gmra.mrb[0].mxu0 %v525
        %v564 = vpop.f32.mrb[0].mxu0
        %v565 = vadd.f32 0.0, %v564
        %v566 = vpop.f32.mrb[0].mxu0
        %v567 = vpop.f32.mrb[0].mxu0
        %v568 = vpop.f32.mrb[0].mxu0
        %569 = vdwg.mxu0
        %v570 = vmul.f32 %v565, 0.35355338
        %v571 = vadd.f32 %v570, %v402
        %v572 = vsel %vm409, %v571, -inf
        %573 = vmax.xlane.f32.xlu0 %v572
        %v574 = vpop.xlane.xlu0 %573
        %v575 = vsub.f32 %v571, %v574
        %v576 = vmul.f32 %v575, 1.442695
        %v577 = vpow.pop %v576
        %v578 = vsel %vm409, %v577, 0.0
        %579 = vadd.xlane.f32.xlu0 %v578
        %v580 = vpop.xlane.xlu0 %579
        %v581 = vrcp.pop %v580
        %v582 = vmul.f32 %v577, %v581
        %v583 = vadd.f32 %v469, %v582
        %v584 = vpack.c.bf16 %v582, %v582
        %586 = vrot.lane.b32.xlu0 %v408, 120
        %v587 = vpop.permute.xlu0 %586
        %v589 = vsel %vm409, %v584, 0
        %v592 = vsel %vm474, %v587, 0
        %594 = vmatprep.subr.bf16.mxu0 0
        %595 = vmatpush1.bf16.msra.mxu0 %v592
        %596 = vmatprep.subr.bf16.mxu0 0
        %597 = vmatpush1.bf16.msra.mxu0 0
        %598 = vmatprep.subr.bf16.mxu0 0
        %599 = vmatpush1.bf16.msra.mxu0 0
        %600 = vmatprep.subr.bf16.mxu0 0
        %601 = vmatpush1.bf16.msra.mxu0 0
        %602 = vmatprep.subr.bf16.mxu0 0
        %603 = vmatpush1.bf16.msra.mxu0 0
        %604 = vmatprep.subr.bf16.mxu0 0
        %605 = vmatpush1.bf16.msra.mxu0 0
        %606 = vmatprep.subr.bf16.mxu0 0
        %607 = vmatpush1.bf16.msra.mxu0 0
        %608 = vmatprep.subr.bf16.mxu0 0
        %609 = vmatpush1.bf16.msra.mxu0 0
        %610 = vmatprep.subr.bf16.mxu0 0
        %611 = vmatpush1.bf16.msra.mxu0 0
        %612 = vmatprep.subr.bf16.mxu0 0
        %613 = vmatpush1.bf16.msra.mxu0 0
        %614 = vmatprep.subr.bf16.mxu0 0
        %615 = vmatpush1.bf16.msra.mxu0 0
        %616 = vmatprep.subr.bf16.mxu0 0
        %617 = vmatpush1.bf16.msra.mxu0 0
        %618 = vmatprep.subr.bf16.mxu0 0
        %619 = vmatpush1.bf16.msra.mxu0 0
        %620 = vmatprep.subr.bf16.mxu0 0
        %621 = vmatpush1.bf16.msra.mxu0 0
        %622 = vmatprep.subr.bf16.mxu0 0
        %623 = vmatpush1.bf16.msra.mxu0 0
        %624 = vmatprep.subr.bf16.mxu0 0
        %625 = vmatpush1.bf16.msra.mxu0 0
        %626 = vmatprep.mubr.bf16.mxu0 0
        %627 = vmatmul.mubr.bf16.gmra.mrb[0].mxu0 %v589
        %v628 = vpop.f32.mrb[0].mxu0
        %v629 = vadd.f32 0.0, %v628
        %v630 = vpop.f32.mrb[0].mxu0
        %v631 = vpop.f32.mrb[0].mxu0
        %v632 = vpop.f32.mrb[0].mxu0
        %633 = vdwg.mxu0
        %634 = vrot.lane.b32.xlu0 %v406, 112
        %v635 = vpop.permute.xlu0 %634
        %636 = vrot.lane.b32.xlu0 %v407, 112
        %v637 = vpop.permute.xlu0 %636
        %v639 = vsel %vm409, %v635, 0
        %v642 = vsel %vm409, %v637, 0
        %644 = vmatprep.subr.bf16.mxu0 0
        %645 = vmatpush1.bf16.xpose.msra.mxu0 %v642
        %646 = vmatprep.subr.bf16.mxu0 0
        %647 = vmatpush1.bf16.xpose.msra.mxu0 0
        %648 = vmatprep.subr.bf16.mxu0 0
        %649 = vmatpush1.bf16.xpose.msra.mxu0 0
        %650 = vmatprep.subr.bf16.mxu0 0
        %651 = vmatpush1.bf16.xpose.msra.mxu0 0
        %652 = vmatprep.subr.bf16.mxu0 0
        %653 = vmatpush1.bf16.xpose.msra.mxu0 0
        %654 = vmatprep.subr.bf16.mxu0 0
        %655 = vmatpush1.bf16.xpose.msra.mxu0 0
        %656 = vmatprep.subr.bf16.mxu0 0
        %657 = vmatpush1.bf16.xpose.msra.mxu0 0
        %658 = vmatprep.subr.bf16.mxu0 0
        %659 = vmatpush1.bf16.xpose.msra.mxu0 0
        %660 = vmatprep.subr.bf16.mxu0 0
        %661 = vmatpush1.bf16.xpose.msra.mxu0 0
        %662 = vmatprep.subr.bf16.mxu0 0
        %663 = vmatpush1.bf16.xpose.msra.mxu0 0
        %664 = vmatprep.subr.bf16.mxu0 0
        %665 = vmatpush1.bf16.xpose.msra.mxu0 0
        %666 = vmatprep.subr.bf16.mxu0 0
        %667 = vmatpush1.bf16.xpose.msra.mxu0 0
        %668 = vmatprep.subr.bf16.mxu0 0
        %669 = vmatpush1.bf16.xpose.msra.mxu0 0
        %670 = vmatprep.subr.bf16.mxu0 0
        %671 = vmatpush1.bf16.xpose.msra.mxu0 0
        %672 = vmatprep.subr.bf16.mxu0 0
        %673 = vmatpush1.bf16.xpose.msra.mxu0 0
        %674 = vmatprep.subr.bf16.mxu0 0
        %675 = vmatpush1.bf16.xpose.msra.mxu0 0
        %676 = vmatprep.mubr.bf16.mxu0 0
        %677 = vmatmul.mubr.bf16.gmra.mrb[0].mxu0 %v639
        %v678 = vpop.f32.mrb[0].mxu0
        %v679 = vadd.f32 0.0, %v678
        %v680 = vpop.f32.mrb[0].mxu0
        %v681 = vpop.f32.mrb[0].mxu0
        %v682 = vpop.f32.mrb[0].mxu0
        %683 = vdwg.mxu0
        %v684 = vmul.f32 %v679, 0.35355338
        %v685 = vadd.f32 %v684, %v402
        %v686 = vsel %vm409, %v685, -inf
        %687 = vmax.xlane.f32.xlu0 %v686
        %v688 = vpop.xlane.xlu0 %687
        %v689 = vsub.f32 %v685, %v688
        %v690 = vmul.f32 %v689, 1.442695
        %v691 = vpow.pop %v690
        %v692 = vsel %vm409, %v691, 0.0
        %693 = vadd.xlane.f32.xlu0 %v692
        %v694 = vpop.xlane.xlu0 %693
        %v695 = vrcp.pop %v694
        %v696 = vmul.f32 %v691, %v695
        %v697 = vadd.f32 %v583, %v696
        %v698 = vpack.c.bf16 %v696, %v696
        %699 = vrot.lane.b32.xlu0 %v408, 112
        %v700 = vpop.permute.xlu0 %699
        %v702 = vsel %vm409, %v698, 0
        %v705 = vsel %vm474, %v700, 0
        %707 = vmatprep.subr.bf16.mxu0 0
        %708 = vmatpush1.bf16.msra.mxu0 %v705
        %709 = vmatprep.subr.bf16.mxu0 0
        %710 = vmatpush1.bf16.msra.mxu0 0
        %711 = vmatprep.subr.bf16.mxu0 0
        %712 = vmatpush1.bf16.msra.mxu0 0
        %713 = vmatprep.subr.bf16.mxu0 0
        %714 = vmatpush1.bf16.msra.mxu0 0
        %715 = vmatprep.subr.bf16.mxu0 0
        %716 = vmatpush1.bf16.msra.mxu0 0
        %717 = vmatprep.subr.bf16.mxu0 0
        %718 = vmatpush1.bf16.msra.mxu0 0
        %719 = vmatprep.subr.bf16.mxu0 0
        %720 = vmatpush1.bf16.msra.mxu0 0
        %721 = vmatprep.subr.bf16.mxu0 0
        %722 = vmatpush1.bf16.msra.mxu0 0
        %723 = vmatprep.subr.bf16.mxu0 0
        %724 = vmatpush1.bf16.msra.mxu0 0
        %725 = vmatprep.subr.bf16.mxu0 0
        %726 = vmatpush1.bf16.msra.mxu0 0
        %727 = vmatprep.subr.bf16.mxu0 0
        %728 = vmatpush1.bf16.msra.mxu0 0
        %729 = vmatprep.subr.bf16.mxu0 0
        %730 = vmatpush1.bf16.msra.mxu0 0
        %731 = vmatprep.subr.bf16.mxu0 0
        %732 = vmatpush1.bf16.msra.mxu0 0
        %733 = vmatprep.subr.bf16.mxu0 0
        %734 = vmatpush1.bf16.msra.mxu0 0
        %735 = vmatprep.subr.bf16.mxu0 0
        %736 = vmatpush1.bf16.msra.mxu0 0
        %737 = vmatprep.subr.bf16.mxu0 0
        %738 = vmatpush1.bf16.msra.mxu0 0
        %739 = vmatprep.mubr.bf16.mxu0 0
        %740 = vmatmul.mubr.bf16.gmra.mrb[0].mxu0 %v702
        %v741 = vpop.f32.mrb[0].mxu0
        %v742 = vadd.f32 0.0, %v741
        %v743 = vpop.f32.mrb[0].mxu0
        %v744 = vpop.f32.mrb[0].mxu0
        %v745 = vpop.f32.mrb[0].mxu0
        %746 = vdwg.mxu0
        %747 = vrot.lane.b32.xlu0 %v406, 104
        %v748 = vpop.permute.xlu0 %747
        %749 = vrot.lane.b32.xlu0 %v407, 104
        %v750 = vpop.permute.xlu0 %749
        %v752 = vsel %vm409, %v748, 0
        %v755 = vsel %vm409, %v750, 0
        %757 = vmatprep.subr.bf16.mxu0 0
        %758 = vmatpush1.bf16.xpose.msra.mxu0 %v755
        %759 = vmatprep.subr.bf16.mxu0 0
        %760 = vmatpush1.bf16.xpose.msra.mxu0 0
        %761 = vmatprep.subr.bf16.mxu0 0
        %762 = vmatpush1.bf16.xpose.msra.mxu0 0
        %763 = vmatprep.subr.bf16.mxu0 0
        %764 = vmatpush1.bf16.xpose.msra.mxu0 0
        %765 = vmatprep.subr.bf16.mxu0 0
        %766 = vmatpush1.bf16.xpose.msra.mxu0 0
        %767 = vmatprep.subr.bf16.mxu0 0
        %768 = vmatpush1.bf16.xpose.msra.mxu0 0
        %769 = vmatprep.subr.bf16.mxu0 0
        %770 = vmatpush1.bf16.xpose.msra.mxu0 0
        %771 = vmatprep.subr.bf16.mxu0 0
        %772 = vmatpush1.bf16.xpose.msra.mxu0 0
        %773 = vmatprep.subr.bf16.mxu0 0
        %774 = vmatpush1.bf16.xpose.msra.mxu0 0
        %775 = vmatprep.subr.bf16.mxu0 0
        %776 = vmatpush1.bf16.xpose.msra.mxu0 0
        %777 = vmatprep.subr.bf16.mxu0 0
        %778 = vmatpush1.bf16.xpose.msra.mxu0 0
        %779 = vmatprep.subr.bf16.mxu0 0
        %780 = vmatpush1.bf16.xpose.msra.mxu0 0
        %781 = vmatprep.subr.bf16.mxu0 0
        %782 = vmatpush1.bf16.xpose.msra.mxu0 0
        %783 = vmatprep.subr.bf16.mxu0 0
        %784 = vmatpush1.bf16.xpose.msra.mxu0 0
        %785 = vmatprep.subr.bf16.mxu0 0
        %786 = vmatpush1.bf16.xpose.msra.mxu0 0
        %787 = vmatprep.subr.bf16.mxu0 0
        %788 = vmatpush1.bf16.xpose.msra.mxu0 0
        %789 = vmatprep.mubr.bf16.mxu0 0
        %790 = vmatmul.mubr.bf16.gmra.mrb[0].mxu0 %v752
        %v791 = vpop.f32.mrb[0].mxu0
        %v792 = vadd.f32 0.0, %v791
        %v793 = vpop.f32.mrb[0].mxu0
        %v794 = vpop.f32.mrb[0].mxu0
        %v795 = vpop.f32.mrb[0].mxu0
        %796 = vdwg.mxu0
        %v797 = vmul.f32 %v792, 0.35355338
        %v798 = vadd.f32 %v797, %v402
        %v799 = vsel %vm409, %v798, -inf
        %800 = vmax.xlane.f32.xlu0 %v799
        %v801 = vpop.xlane.xlu0 %800
        %v802 = vsub.f32 %v798, %v801
        %v803 = vmul.f32 %v802, 1.442695
        %v804 = vpow.pop %v803
        %v805 = vsel %vm409, %v804, 0.0
        %806 = vadd.xlane.f32.xlu0 %v805
        %v807 = vpop.xlane.xlu0 %806
        %v808 = vrcp.pop %v807
        %v809 = vmul.f32 %v804, %v808
        %v810 = vadd.f32 %v697, %v809
        %v811 = vpack.c.bf16 %v809, %v809
        %812 = vrot.lane.b32.xlu0 %v408, 104
        %v813 = vpop.permute.xlu0 %812
        %v815 = vsel %vm409, %v811, 0
        %v818 = vsel %vm474, %v813, 0
        %820 = vmatprep.subr.bf16.mxu0 0
        %821 = vmatpush1.bf16.msra.mxu0 %v818
        %822 = vmatprep.subr.bf16.mxu0 0
        %823 = vmatpush1.bf16.msra.mxu0 0
        %824 = vmatprep.subr.bf16.mxu0 0
        %825 = vmatpush1.bf16.msra.mxu0 0
        %826 = vmatprep.subr.bf16.mxu0 0
        %827 = vmatpush1.bf16.msra.mxu0 0
        %828 = vmatprep.subr.bf16.mxu0 0
        %829 = vmatpush1.bf16.msra.mxu0 0
        %830 = vmatprep.subr.bf16.mxu0 0
        %831 = vmatpush1.bf16.msra.mxu0 0
        %832 = vmatprep.subr.bf16.mxu0 0
        %833 = vmatpush1.bf16.msra.mxu0 0
        %834 = vmatprep.subr.bf16.mxu0 0
        %835 = vmatpush1.bf16.msra.mxu0 0
        %836 = vmatprep.subr.bf16.mxu0 0
        %837 = vmatpush1.bf16.msra.mxu0 0
        %838 = vmatprep.subr.bf16.mxu0 0
        %839 = vmatpush1.bf16.msra.mxu0 0
        %840 = vmatprep.subr.bf16.mxu0 0
        %841 = vmatpush1.bf16.msra.mxu0 0
        %842 = vmatprep.subr.bf16.mxu0 0
        %843 = vmatpush1.bf16.msra.mxu0 0
        %844 = vmatprep.subr.bf16.mxu0 0
        %845 = vmatpush1.bf16.msra.mxu0 0
        %846 = vmatprep.subr.bf16.mxu0 0
        %847 = vmatpush1.bf16.msra.mxu0 0
        %848 = vmatprep.subr.bf16.mxu0 0
        %849 = vmatpush1.bf16.msra.mxu0 0
        %850 = vmatprep.subr.bf16.mxu0 0
        %851 = vmatpush1.bf16.msra.mxu0 0
        %852 = vmatprep.mubr.bf16.mxu0 0
        %853 = vmatmul.mubr.bf16.gmra.mrb[0].mxu0 %v815
        %v854 = vpop.f32.mrb[0].mxu0
        %v855 = vadd.f32 0.0, %v854
        %v856 = vpop.f32.mrb[0].mxu0
        %v857 = vpop.f32.mrb[0].mxu0
        %v858 = vpop.f32.mrb[0].mxu0
        %859 = vdwg.mxu0
        %861 = vrot.lane.b32.xlu0 %v629, 8
        %v862 = vpop.permute.xlu0 %861
        %865 = vrot.lane.b32.xlu0 %v742, 16
        %v866 = vpop.permute.xlu0 %865
        %869 = vrot.lane.b32.xlu0 %v855, 24
        %v870 = vpop.permute.xlu0 %869
        %v872 = vsel %vm409, %v513, %v862
        %vm873 = vcmask 130048
        %v874 = vsel %vm873, %v872, %v866
        %vm875 = vcmask 195584
        %v876 = vsel %vm875, %v874, %v870
        %vm877 = vcmask 261120
        %878 = vst.msk [vmem:[%s385] sm:$0xff] %vm877, %v876
        %v879 = vmul.f32 %v810, 0.25
        %880 = vst.msk [vmem:[%s392] sm:$0xff] %vm409, %v879
        %s881 = sand.u32 %s164, 1
        %s882 = scalar_lea.sflag [#allocation4], %s881
        %s883 = sand.u32 %s164, 1
        %s884 = smul.addr %s883, 8
        %s885 = scalar_lea.vmem [#allocation11], %s884
        %s886 = sand.u32 %s190, 1
        %s887 = scalar_lea.sflag [#allocation13], %s886
        %s888 = sand.u32 %s190, 1
        %s889 = smul.addr %s888, 8
        %s890 = scalar_lea.vmem [#allocation12], %s889
        // Predicated region
        $region61: #{decoder_layer.8} parent=39 // pred_check
          %p891 = pneg %p174
        $region62: #{decoder_layer.8} parent=39 // pred_check_branch
          %893 = sbr.rel (%p891) target = $region64
        $region63: #{decoder_layer.8} parent=39 // pred_region
          %s895 = ssub.s32 128, 128
          %896 = vsyncadd %s882, %s895
          %s897 = smul.addr %s31, 128
          %s898 = scalar_lea.hbm %s5, %s897
          %s900 = sshll.u32 %s885, 4
          %s901 = int_to_ptr.vmem [resolvable:$true] %s900
          %903 = dma.vmem_to_hbm [thread:$0]  %s901, 128, %s898, %s882
        $region64: #{decoder_layer.8} parent=39 // pred_fallthru
          _
        // Predicated region
        $region65: #{decoder_layer.8} parent=39 // pred_check
          %p904 = pneg %p200
        $region66: #{decoder_layer.8} parent=39 // pred_check_branch
          %906 = sbr.rel (%p904) target = $region68
        $region67: #{decoder_layer.8} parent=39 // pred_region
          %s908 = ssub.s32 128, 128
          %909 = vsyncadd %s887, %s908
          %s910 = smul.addr %s31, 128
          %s911 = scalar_lea.hbm %s6, %s910
          %s913 = sshll.u32 %s890, 4
          %s914 = int_to_ptr.vmem [resolvable:$true] %s913
          %916 = dma.vmem_to_hbm [thread:$0]  %s914, 128, %s911, %s887
        $region68: #{decoder_layer.8} parent=39 // pred_fallthru
          _
      $region40: #{decoder_layer.8} parent=5 // pred_fallthru
        _
      %p917 = scmp.le.s32.totalorder 2, %s26
      // Predicated region
      $region69: #{decoder_layer.8} parent=5 // pred_check
        %p918 = pneg %p917
      $region70: #{decoder_layer.8} parent=5 // pred_check_branch
        %920 = sbr.rel (%p918) target = $region72
      $region71: #{decoder_layer.8} parent=5 // pred_region
        %s921 = ssub.s32 %s26, 2
        // Predicated region
        $region73: #{decoder_layer.8} parent=71 // pred_check
          %p922 = pneg %p180
        $region74: #{decoder_layer.8} parent=71 // pred_check_branch
          %924 = sbr.rel (%p922) target = $region76
        $region75: #{decoder_layer.8} parent=71 // pred_region
          %s925 = sand.u32 %s165, 1
          %s926 = scalar_lea.sflag [#allocation4], %s925
          %s927 = sand.u32 %s165, 1
          %s928 = smul.addr %s927, 8
          %s929 = scalar_lea.vmem [#allocation11], %s928
          %930 = dma.done %s926, 128
        $region76: #{decoder_layer.8} parent=71 // pred_fallthru
          _
        // Predicated region
        $region77: #{decoder_layer.8} parent=71 // pred_check
          %p931 = pneg %p206
        $region78: #{decoder_layer.8} parent=71 // pred_check_branch
          %933 = sbr.rel (%p931) target = $region80
        $region79: #{decoder_layer.8} parent=71 // pred_region
          %s934 = sand.u32 %s191, 1
          %s935 = scalar_lea.sflag [#allocation13], %s934
          %s936 = sand.u32 %s191, 1
          %s937 = smul.addr %s936, 8
          %s938 = scalar_lea.vmem [#allocation12], %s937
          %939 = dma.done %s935, 128
        $region80: #{decoder_layer.8} parent=71 // pred_fallthru
          _
      $region72: #{decoder_layer.8} parent=5 // pred_fallthru
        _
    $region6: #{decoder_layer.8} parent=1 // loop_footer
      %s30 = sadd.s32 1, %s26
    $region7: #{decoder_layer.8} parent=1 // loop_footer_branch
      %25 = sbr.rel target = $region3
    $region8: #{decoder_layer.8} parent=1 // loop_exit
      _
    %940 = vsyncpa [#allocation3], 1
    %s941 = scalar_lea.sflag [#allocation3], 1
    %942 = vsyncpa %s941, 1
    %943 = vsyncpa [#allocation6], 1
    %s944 = scalar_lea.sflag [#allocation6], 1
    %945 = vsyncpa %s944, 1
    %946 = vsyncpa [#allocation9], 1
    %947 = vsyncpa [#allocation4], 1
    %s948 = scalar_lea.sflag [#allocation4], 1
    %949 = vsyncpa %s948, 1
    %950 = vsyncpa [#allocation13], 1
    %s951 = scalar_lea.sflag [#allocation13], 1
    %952 = vsyncpa %s951, 1

// kernel: decoder_layer.10
$region0: #{decoder_layer.10}
  #allocation0 [shape = 'u32[]', space=smem, size = 0x4, offset = 0x4, fixed_abs, tag = 'smem constant byte address 0x4 - core index']
  #allocation1 [shape = 'u32[144,128]{1,0:T(1,128)}', space=vmem, size = 0x12000, scoped, tag = 'internal scratch']
  %s0 = inlined_call_operand.hbm [shape: f32[32,32], index: 0, kind: input, shape index: {}]
  %s1 = inlined_call_operand.hbm [shape: f32[32,64], index: 1, kind: input, shape index: {}]
  %s2 = inlined_call_operand.hbm [shape: f32[1,64], index: 2, kind: input, shape index: {}]
  %s3 = inlined_call_operand.hbm [shape: f32[32,32], index: 3, kind: output, shape index: {0}]
  %s4 = inlined_call_operand.hbm [shape: f32[32,32], index: 4, kind: output, shape index: {1}]
  %5 = xla_tuple %s3, %s4
  %s6 = sld [smem:[#allocation0]]
  $region42: #{decoder_layer.10} parent=0
    _
  %s8 = ssub.s32 1, %s6
  %s9 = scalar_select 0, %s8, %s6
  $region1: #{decoder_layer.10} parent=0
    #allocation2 [shape = 'u8[16384]{0}', space=vmem, size = 0x4000, scoped, tag = 'input window, operand 0, single buffered']
    #allocation3 [shape = 's32[1]{0}', space=sflag, size = 0x4, scoped, tag = 'scoped memory for decoder_layer.10']
    #allocation4 [shape = 's32[1]{0}', space=sflag, size = 0x4, scoped, tag = 'scoped memory for decoder_layer.10']
    #allocation5 [shape = 'u8[16384]{0}', space=vmem, size = 0x4000, scoped, tag = 'input window, operand 1, single buffered']
    #allocation6 [shape = 's32[1]{0}', space=sflag, size = 0x4, scoped, tag = 'scoped memory for decoder_layer.10']
    #allocation7 [shape = 'u8[512]{0}', space=vmem, size = 0x400, scoped, tag = 'input window, operand 2, single buffered']
    #allocation8 [shape = 'u8[16384]{0}', space=vmem, size = 0x4000, scoped, tag = 'output window, operand 0, single buffered']
    #allocation9 [shape = 'u8[16384]{0}', space=vmem, size = 0x4000, scoped, tag = 'output window, operand 1, single buffered']
    #allocation10 [shape = 's32[1]{0}', space=sflag, size = 0x4, scoped, tag = 'scoped memory for decoder_layer.10']
    %10 = vsyncpa [#allocation3], 0
    %11 = vsyncpa [#allocation6], 0
    %12 = vsyncpa [#allocation4], 0
    %13 = vsyncpa [#allocation10], 0
    // Predicated region
    $region2: #{decoder_layer.10} parent=1 // pred_check
      _
    $region3: #{decoder_layer.10} parent=1 // pred_check_branch
      %15 = sbr.rel (0) target = $region5
    $region4: #{decoder_layer.10} parent=1 // pred_region
      %s17 = ssub.s32 512, 512
      %18 = vsyncadd [#allocation3], %s17
      %s19 = sshll.u32 [#allocation2], 4
      %s20 = int_to_ptr.vmem [resolvable:$true] %s19
      %25 = dma.hbm_to_vmem [thread:$0]  %s0, 512, %s20, [#allocation3], 128, 128, 8
    $region5: #{decoder_layer.10} parent=1 // pred_fallthru
      _
    // Predicated region
    $region6: #{decoder_layer.10} parent=1 // pred_check
      _
    $region7: #{decoder_layer.10} parent=1 // pred_check_branch
      %27 = sbr.rel (0) target = $region9
    $region8: #{decoder_layer.10} parent=1 // pred_region
      %s29 = ssub.s32 512, 512
      %30 = vsyncadd [#allocation6], %s29
      %s31 = sshll.u32 [#allocation5], 4
      %s32 = int_to_ptr.vmem [resolvable:$true] %s31
      %37 = dma.hbm_to_vmem [thread:$0]  %s1, 512, %s32, [#allocation6], 128, 128, 8
    $region9: #{decoder_layer.10} parent=1 // pred_fallthru
      _
    // Predicated region
    $region10: #{decoder_layer.10} parent=1 // pred_check
      _
    $region11: #{decoder_layer.10} parent=1 // pred_check_branch
      %39 = sbr.rel (0) target = $region13
    $region12: #{decoder_layer.10} parent=1 // pred_region
      %s41 = ssub.s32 16, 16
      %42 = vsyncadd [#allocation6], %s41
      %s44 = sshll.u32 [#allocation7], 4
      %s45 = int_to_ptr.vmem [resolvable:$true] %s44
      %47 = dma.hbm_to_vmem [thread:$0]  %s2, 16, %s45, [#allocation6]
    $region13: #{decoder_layer.10} parent=1 // pred_fallthru
      _
    // Predicated region
    $region14: #{decoder_layer.10} parent=1 // pred_check
      _
    $region15: #{decoder_layer.10} parent=1 // pred_check_branch
      %49 = sbr.rel (0) target = $region17
    $region16: #{decoder_layer.10} parent=1 // pred_region
      %50 = dma.done [#allocation3], 512
    $region17: #{decoder_layer.10} parent=1 // pred_fallthru
      _
    // Predicated region
    $region18: #{decoder_layer.10} parent=1 // pred_check
      _
    $region19: #{decoder_layer.10} parent=1 // pred_check_branch
      %52 = sbr.rel (0) target = $region21
    $region20: #{decoder_layer.10} parent=1 // pred_region
      %53 = dma.done [#allocation6], 512
    $region21: #{decoder_layer.10} parent=1 // pred_fallthru
      _
    // Predicated region
    $region22: #{decoder_layer.10} parent=1 // pred_check
      _
    $region23: #{decoder_layer.10} parent=1 // pred_check_branch
      %55 = sbr.rel (0) target = $region25
    $region24: #{decoder_layer.10} parent=1 // pred_region
      %56 = dma.done [#allocation6], 16
    $region25: #{decoder_layer.10} parent=1 // pred_fallthru
      _
    %v58 = vld [vmem:[#allocation2] sm:$0xff]
    %v59 = vld [vmem:[#allocation2 + $0x8] sm:$0xff]
    %v60 = vld [vmem:[#allocation2 + $0x10] sm:$0xff]
    %v61 = vld [vmem:[#allocation2 + $0x18] sm:$0xff]
    %v62 = vpack.c.bf16 %v59, %v58
    %v63 = vpack.c.bf16 %v61, %v60
    %v64 = vld [vmem:[#allocation5] sm:$0xff]
    %v65 = vld [vmem:[#allocation5 + $0x8] sm:$0xff]
    %v66 = vld [vmem:[#allocation5 + $0x10] sm:$0xff]
    %v67 = vld [vmem:[#allocation5 + $0x18] sm:$0xff]
    %v68 = vpack.c.bf16 %v65, %v64
    %v69 = vpack.c.bf16 %v67, %v66
    %v70 = vld [vmem:[#allocation7] sm:$0x1]
    %v72 = vlaneseq
    %v73 = vshrl.u32 %v72, 7
    %v74 = vsub.s32 0, %v73
    %v75 = vrot.slane %v70, %v74
    %vm77 = vcmask 261120
    %v79 = vsel %vm77, %v62, 0
    %v82 = vsel %vm77, %v63, 0
    %84 = vmatprep.subr.bf16.mxu0 0
    %85 = vmatpush1.bf16.msra.mxu0 %v68
    %86 = vmatprep.subr.bf16.mxu0 0
    %87 = vmatpush1.bf16.msra.mxu0 %v69
    %88 = vmatprep.subr.bf16.mxu0 0
    %89 = vmatpush1.bf16.msra.mxu0 0
    %90 = vmatprep.subr.bf16.mxu0 0
    %91 = vmatpush1.bf16.msra.mxu0 0
    %92 = vmatprep.subr.bf16.mxu0 0
    %93 = vmatpush1.bf16.msra.mxu0 0
    %94 = vmatprep.subr.bf16.mxu0 0
    %95 = vmatpush1.bf16.msra.mxu0 0
    %96 = vmatprep.subr.bf16.mxu0 0
    %97 = vmatpush1.bf16.msra.mxu0 0
    %98 = vmatprep.subr.bf16.mxu0 0
    %99 = vmatpush1.bf16.msra.mxu0 0
    %100 = vmatprep.subr.bf16.mxu0 0
    %101 = vmatpush1.bf16.msra.mxu0 0
    %102 = vmatprep.subr.bf16.mxu0 0
    %103 = vmatpush1.bf16.msra.mxu0 0
    %104 = vmatprep.subr.bf16.mxu0 0
    %105 = vmatpush1.bf16.msra.mxu0 0
    %106 = vmatprep.subr.bf16.mxu0 0
    %107 = vmatpush1.bf16.msra.mxu0 0
    %108 = vmatprep.subr.bf16.mxu0 0
    %109 = vmatpush1.bf16.msra.mxu0 0
    %110 = vmatprep.subr.bf16.mxu0 0
    %111 = vmatpush1.bf16.msra.mxu0 0
    %112 = vmatprep.subr.bf16.mxu0 0
    %113 = vmatpush1.bf16.msra.mxu0 0
    %114 = vmatprep.subr.bf16.mxu0 0
    %115 = vmatpush1.bf16.msra.mxu0 0
    %116 = vmatprep.mubr.bf16.mxu0 0
    %117 = vmatmul.mubr.bf16.gmra.mrb[0].mxu0 %v79
    %v118 = vpop.f32.mrb[0].mxu0
    %v119 = vadd.f32 %v75, %v118
    %v120 = vpop.f32.mrb[0].mxu0
    %v121 = vpop.f32.mrb[0].mxu0
    %v122 = vadd.f32 %v75, %v121
    %v123 = vpop.f32.mrb[0].mxu0
    %124 = vmatprep.mubr.bf16.mxu0 0
    %125 = vmatmul.mubr.bf16.gmra.mrb[0].mxu0 %v82
    %v126 = vpop.f32.mrb[0].mxu0
    %v127 = vadd.f32 %v75, %v126
    %v128 = vpop.f32.mrb[0].mxu0
    %v129 = vpop.f32.mrb[0].mxu0
    %v130 = vadd.f32 %v75, %v129
    %v131 = vpop.f32.mrb[0].mxu0
    %132 = vdwg.mxu0
    %133 = vst.msk [vmem:[#allocation8] sm:$0xff] %vm77, %v119
    %134 = vst.msk [vmem:[#allocation8 + $0x8] sm:$0xff] %vm77, %v122
    %135 = vst.msk [vmem:[#allocation8 + $0x10] sm:$0xff] %vm77, %v127
    %136 = vst.msk [vmem:[#allocation8 + $0x18] sm:$0xff] %vm77, %v130
    %141 = vrot.lane.b32.xlu0 %v119, 96
    %v142 = vpop.permute.xlu0 %141
    %143 = vrot.lane.b32.xlu0 %v122, 96
    %v144 = vpop.permute.xlu0 %143
    %145 = vrot.lane.b32.xlu0 %v127, 96
    %v146 = vpop.permute.xlu0 %145
    %147 = vrot.lane.b32.xlu0 %v130, 96
    %v148 = vpop.permute.xlu0 %147
    %153 = vst.msk [vmem:[#allocation9] sm:$0xff] %vm77, %v142
    %154 = vst.msk [vmem:[#allocation9 + $0x8] sm:$0xff] %vm77, %v144
    %155 = vst.msk [vmem:[#allocation9 + $0x10] sm:$0xff] %vm77, %v146
    %156 = vst.msk [vmem:[#allocation9 + $0x18] sm:$0xff] %vm77, %v148
    // Predicated region
    $region26: #{decoder_layer.10} parent=1 // pred_check
      _
    $region27: #{decoder_layer.10} parent=1 // pred_check_branch
      %158 = sbr.rel (0) target = $region29
    $region28: #{decoder_layer.10} parent=1 // pred_region
      %s160 = ssub.s32 512, 512
      %161 = vsyncadd [#allocation4], %s160
      %s162 = sshll.u32 [#allocation8], 4
      %s163 = int_to_ptr.vmem [resolvable:$true] %s162
      %168 = dma.vmem_to_hbm [thread:$0]  %s163, 512, %s3, [#allocation4], 128, 128, 8
    $region29: #{decoder_layer.10} parent=1 // pred_fallthru
      _
    // Predicated region
    $region30: #{decoder_layer.10} parent=1 // pred_check
      _
    $region31: #{decoder_layer.10} parent=1 // pred_check_branch
      %170 = sbr.rel (0) target = $region33
    $region32: #{decoder_layer.10} parent=1 // pred_region
      %s172 = ssub.s32 512, 512
      %173 = vsyncadd [#allocation10], %s172
      %s174 = sshll.u32 [#allocation9], 4
      %s175 = int_to_ptr.vmem [resolvable:$true] %s174
      %180 = dma.vmem_to_hbm [thread:$0]  %s175, 512, %s4, [#allocation10], 128, 128, 8
    $region33: #{decoder_layer.10} parent=1 // pred_fallthru
      _
    // Predicated region
    $region34: #{decoder_layer.10} parent=1 // pred_check
      _
    $region35: #{decoder_layer.10} parent=1 // pred_check_branch
      %182 = sbr.rel (0) target = $region37
    $region36: #{decoder_layer.10} parent=1 // pred_region
      %183 = dma.done [#allocation4], 512
    $region37: #{decoder_layer.10} parent=1 // pred_fallthru
      _
    // Predicated region
    $region38: #{decoder_layer.10} parent=1 // pred_check
      _
    $region39: #{decoder_layer.10} parent=1 // pred_check_branch
      %185 = sbr.rel (0) target = $region41
    $region40: #{decoder_layer.10} parent=1 // pred_region
      %186 = dma.done [#allocation10], 512
    $region41: #{decoder_layer.10} parent=1 // pred_fallthru
      _
    %187 = vsyncpa [#allocation3], 1
    %188 = vsyncpa [#allocation6], 1
    %189 = vsyncpa [#allocation4], 1
    %190 = vsyncpa [#allocation10], 1

// kernel: decoder_layer.9
$region0: #{decoder_layer.9}
  #allocation0 [shape = 'u32[]', space=smem, size = 0x4, offset = 0x4, fixed_abs, tag = 'smem constant byte address 0x4 - core index']
  #allocation1 [shape = 'u32[144,128]{1,0:T(1,128)}', space=vmem, size = 0x12000, scoped, tag = 'internal scratch']
  %s0 = inlined_call_operand.hbm [shape: f32[16,32], index: 0, kind: input, shape index: {}]
  %s1 = inlined_call_operand.hbm [shape: f32[16,32], index: 1, kind: input, shape index: {}]
  %s2 = inlined_call_operand.hbm [shape: f32[32,32], index: 2, kind: input, shape index: {}]
  %s3 = inlined_call_operand.hbm [shape: f32[1,32], index: 3, kind: input, shape index: {}]
  %s4 = inlined_call_operand.hbm [shape: f32[1,32], index: 4, kind: input, shape index: {}]
  %s5 = inlined_call_operand.hbm [shape: f32[1,32], index: 5, kind: input, shape index: {}]
  %s6 = inlined_call_operand.hbm [shape: f32[32,32], index: 6, kind: input, shape index: {}]
  %s7 = inlined_call_operand.hbm [shape: f32[1,32], index: 7, kind: input, shape index: {}]
  %s8 = inlined_call_operand.hbm [shape: f32[16,32], index: 8, kind: output, shape index: {0}]
  %s9 = inlined_call_operand.hbm [shape: f32[16,32], index: 9, kind: output, shape index: {1}]
  %10 = xla_tuple %s8, %s9
  %s11 = sld [smem:[#allocation0]]
  $region82: #{decoder_layer.9} parent=0
    _
  %s13 = ssub.s32 1, %s11
  %s14 = scalar_select 0, %s13, %s11
  $region1: #{decoder_layer.9} parent=0
    #allocation2 [shape = 'u8[8192]{0}', space=vmem, size = 0x2000, scoped, tag = 'input window, operand 0, single buffered']
    #allocation3 [shape = 's32[1]{0}', space=sflag, size = 0x4, scoped, tag = 'scoped memory for decoder_layer.9']
    #allocation4 [shape = 's32[1]{0}', space=sflag, size = 0x4, scoped, tag = 'scoped memory for decoder_layer.9']
    #allocation5 [shape = 'u8[8192]{0}', space=vmem, size = 0x2000, scoped, tag = 'input window, operand 1, single buffered']
    #allocation6 [shape = 's32[1]{0}', space=sflag, size = 0x4, scoped, tag = 'scoped memory for decoder_layer.9']
    #allocation7 [shape = 'u8[16384]{0}', space=vmem, size = 0x4000, scoped, tag = 'input window, operand 2, single buffered']
    #allocation8 [shape = 'u8[512]{0}', space=vmem, size = 0x400, scoped, tag = 'input window, operand 3, single buffered']
    #allocation9 [shape = 's32[1]{0}', space=sflag, size = 0x4, scoped, tag = 'scoped memory for decoder_layer.9']
    #allocation10 [shape = 'u8[512]{0}', space=vmem, size = 0x400, scoped, tag = 'input window, operand 4, single buffered']
    #allocation11 [shape = 'u8[512]{0}', space=vmem, size = 0x400, scoped, tag = 'input window, operand 5, single buffered']
    #allocation12 [shape = 's32[1]{0}', space=sflag, size = 0x4, scoped, tag = 'scoped memory for decoder_layer.9']
    #allocation13 [shape = 'u8[16384]{0}', space=vmem, size = 0x4000, scoped, tag = 'input window, operand 6, single buffered']
    #allocation14 [shape = 'u8[512]{0}', space=vmem, size = 0x400, scoped, tag = 'input window, operand 7, single buffered']
    #allocation15 [shape = 's32[1]{0}', space=sflag, size = 0x4, scoped, tag = 'scoped memory for decoder_layer.9']
    #allocation16 [shape = 'u8[8192]{0}', space=vmem, size = 0x2000, scoped, tag = 'output window, operand 0, single buffered']
    #allocation17 [shape = 'u8[8192]{0}', space=vmem, size = 0x2000, scoped, tag = 'output window, operand 1, single buffered']
    #allocation18 [shape = 's32[1]{0}', space=sflag, size = 0x4, scoped, tag = 'scoped memory for decoder_layer.9']
    %15 = vsyncpa [#allocation3], 0
    %16 = vsyncpa [#allocation6], 0
    %17 = vsyncpa [#allocation9], 0
    %18 = vsyncpa [#allocation12], 0
    %19 = vsyncpa [#allocation15], 0
    %20 = vsyncpa [#allocation4], 0
    %21 = vsyncpa [#allocation18], 0
    // Predicated region
    $region2: #{decoder_layer.9} parent=1 // pred_check
      _
    $region3: #{decoder_layer.9} parent=1 // pred_check_branch
      %23 = sbr.rel (0) target = $region5
    $region4: #{decoder_layer.9} parent=1 // pred_region
      %s25 = ssub.s32 256, 256
      %26 = vsyncadd [#allocation3], %s25
      %s27 = sshll.u32 [#allocation2], 4
      %s28 = int_to_ptr.vmem [resolvable:$true] %s27
      %33 = dma.hbm_to_vmem [thread:$0]  %s0, 256, %s28, [#allocation3], 128, 128, 8
    $region5: #{decoder_layer.9} parent=1 // pred_fallthru
      _
    // Predicated region
    $region6: #{decoder_layer.9} parent=1 // pred_check
      _
    $region7: #{decoder_layer.9} parent=1 // pred_check_branch
      %35 = sbr.rel (0) target = $region9
    $region8: #{decoder_layer.9} parent=1 // pred_region
      %s37 = ssub.s32 256, 256
      %38 = vsyncadd [#allocation6], %s37
      %s39 = sshll.u32 [#allocation5], 4
      %s40 = int_to_ptr.vmem [resolvable:$true] %s39
      %45 = dma.hbm_to_vmem [thread:$0]  %s1, 256, %s40, [#allocation6], 128, 128, 8
    $region9: #{decoder_layer.9} parent=1 // pred_fallthru
      _
    // Predicated region
    $region10: #{decoder_layer.9} parent=1 // pred_check
      _
    $region11: #{decoder_layer.9} parent=1 // pred_check_branch
      %47 = sbr.rel (0) target = $region13
    $region12: #{decoder_layer.9} parent=1 // pred_region
      %s49 = ssub.s32 512, 512
      %50 = vsyncadd [#allocation6], %s49
      %s51 = sshll.u32 [#allocation7], 4
      %s52 = int_to_ptr.vmem [resolvable:$true] %s51
      %57 = dma.hbm_to_vmem [thread:$0]  %s2, 512, %s52, [#allocation6], 128, 128, 8
    $region13: #{decoder_layer.9} parent=1 // pred_fallthru
      _
    // Predicated region
    $region14: #{decoder_layer.9} parent=1 // pred_check
      _
    $region15: #{decoder_layer.9} parent=1 // pred_check_branch
      %59 = sbr.rel (0) target = $region17
    $region16: #{decoder_layer.9} parent=1 // pred_region
      %s61 = ssub.s32 16, 16
      %62 = vsyncadd [#allocation9], %s61
      %s64 = sshll.u32 [#allocation8], 4
      %s65 = int_to_ptr.vmem [resolvable:$true] %s64
      %67 = dma.hbm_to_vmem [thread:$0]  %s3, 16, %s65, [#allocation9]
    $region17: #{decoder_layer.9} parent=1 // pred_fallthru
      _
    // Predicated region
    $region18: #{decoder_layer.9} parent=1 // pred_check
      _
    $region19: #{decoder_layer.9} parent=1 // pred_check_branch
      %69 = sbr.rel (0) target = $region21
    $region20: #{decoder_layer.9} parent=1 // pred_region
      %s71 = ssub.s32 16, 16
      %72 = vsyncadd [#allocation9], %s71
      %s74 = sshll.u32 [#allocation10], 4
      %s75 = int_to_ptr.vmem [resolvable:$true] %s74
      %77 = dma.hbm_to_vmem [thread:$0]  %s4, 16, %s75, [#allocation9]
    $region21: #{decoder_layer.9} parent=1 // pred_fallthru
      _
    // Predicated region
    $region22: #{decoder_layer.9} parent=1 // pred_check
      _
    $region23: #{decoder_layer.9} parent=1 // pred_check_branch
      %79 = sbr.rel (0) target = $region25
    $region24: #{decoder_layer.9} parent=1 // pred_region
      %s81 = ssub.s32 16, 16
      %82 = vsyncadd [#allocation12], %s81
      %s84 = sshll.u32 [#allocation11], 4
      %s85 = int_to_ptr.vmem [resolvable:$true] %s84
      %87 = dma.hbm_to_vmem [thread:$0]  %s5, 16, %s85, [#allocation12]
    $region25: #{decoder_layer.9} parent=1 // pred_fallthru
      _
    // Predicated region
    $region26: #{decoder_layer.9} parent=1 // pred_check
      _
    $region27: #{decoder_layer.9} parent=1 // pred_check_branch
      %89 = sbr.rel (0) target = $region29
    $region28: #{decoder_layer.9} parent=1 // pred_region
      %s91 = ssub.s32 512, 512
      %92 = vsyncadd [#allocation12], %s91
      %s93 = sshll.u32 [#allocation13], 4
      %s94 = int_to_ptr.vmem [resolvable:$true] %s93
      %99 = dma.hbm_to_vmem [thread:$0]  %s6, 512, %s94, [#allocation12], 128, 128, 8
    $region29: #{decoder_layer.9} parent=1 // pred_fallthru
      _
    // Predicated region
    $region30: #{decoder_layer.9} parent=1 // pred_check
      _
    $region31: #{decoder_layer.9} parent=1 // pred_check_branch
      %101 = sbr.rel (0) target = $region33
    $region32: #{decoder_layer.9} parent=1 // pred_region
      %s103 = ssub.s32 16, 16
      %104 = vsyncadd [#allocation15], %s103
      %s106 = sshll.u32 [#allocation14], 4
      %s107 = int_to_ptr.vmem [resolvable:$true] %s106
      %109 = dma.hbm_to_vmem [thread:$0]  %s7, 16, %s107, [#allocation15]
    $region33: #{decoder_layer.9} parent=1 // pred_fallthru
      _
    // Predicated region
    $region34: #{decoder_layer.9} parent=1 // pred_check
      _
    $region35: #{decoder_layer.9} parent=1 // pred_check_branch
      %111 = sbr.rel (0) target = $region37
    $region36: #{decoder_layer.9} parent=1 // pred_region
      %112 = dma.done [#allocation3], 256
    $region37: #{decoder_layer.9} parent=1 // pred_fallthru
      _
    // Predicated region
    $region38: #{decoder_layer.9} parent=1 // pred_check
      _
    $region39: #{decoder_layer.9} parent=1 // pred_check_branch
      %114 = sbr.rel (0) target = $region41
    $region40: #{decoder_layer.9} parent=1 // pred_region
      %115 = dma.done [#allocation6], 256
    $region41: #{decoder_layer.9} parent=1 // pred_fallthru
      _
    // Predicated region
    $region42: #{decoder_layer.9} parent=1 // pred_check
      _
    $region43: #{decoder_layer.9} parent=1 // pred_check_branch
      %117 = sbr.rel (0) target = $region45
    $region44: #{decoder_layer.9} parent=1 // pred_region
      %118 = dma.done [#allocation6], 512
    $region45: #{decoder_layer.9} parent=1 // pred_fallthru
      _
    // Predicated region
    $region46: #{decoder_layer.9} parent=1 // pred_check
      _
    $region47: #{decoder_layer.9} parent=1 // pred_check_branch
      %120 = sbr.rel (0) target = $region49
    $region48: #{decoder_layer.9} parent=1 // pred_region
      %121 = dma.done [#allocation9], 16
    $region49: #{decoder_layer.9} parent=1 // pred_fallthru
      _
    // Predicated region
    $region50: #{decoder_layer.9} parent=1 // pred_check
      _
    $region51: #{decoder_layer.9} parent=1 // pred_check_branch
      %123 = sbr.rel (0) target = $region53
    $region52: #{decoder_layer.9} parent=1 // pred_region
      %124 = dma.done [#allocation9], 16
    $region53: #{decoder_layer.9} parent=1 // pred_fallthru
      _
    // Predicated region
    $region54: #{decoder_layer.9} parent=1 // pred_check
      _
    $region55: #{decoder_layer.9} parent=1 // pred_check_branch
      %126 = sbr.rel (0) target = $region57
    $region56: #{decoder_layer.9} parent=1 // pred_region
      %127 = dma.done [#allocation12], 16
    $region57: #{decoder_layer.9} parent=1 // pred_fallthru
      _
    // Predicated region
    $region58: #{decoder_layer.9} parent=1 // pred_check
      _
    $region59: #{decoder_layer.9} parent=1 // pred_check_branch
      %129 = sbr.rel (0) target = $region61
    $region60: #{decoder_layer.9} parent=1 // pred_region
      %130 = dma.done [#allocation12], 512
    $region61: #{decoder_layer.9} parent=1 // pred_fallthru
      _
    // Predicated region
    $region62: #{decoder_layer.9} parent=1 // pred_check
      _
    $region63: #{decoder_layer.9} parent=1 // pred_check_branch
      %132 = sbr.rel (0) target = $region65
    $region64: #{decoder_layer.9} parent=1 // pred_region
      %133 = dma.done [#allocation15], 16
    $region65: #{decoder_layer.9} parent=1 // pred_fallthru
      _
    %v135 = vld [vmem:[#allocation2] sm:$0xff]
    %v136 = vld [vmem:[#allocation2 + $0x8] sm:$0xff]
    %v137 = vpack.c.bf16 %v136, %v135
    %v138 = vld [vmem:[#allocation7] sm:$0xff]
    %v139 = vld [vmem:[#allocation7 + $0x8] sm:$0xff]
    %v140 = vld [vmem:[#allocation7 + $0x10] sm:$0xff]
    %v141 = vld [vmem:[#allocation7 + $0x18] sm:$0xff]
    %v142 = vpack.c.bf16 %v139, %v138
    %v143 = vpack.c.bf16 %v141, %v140
    %v144 = vld [vmem:[#allocation8] sm:$0x1]
    %v146 = vlaneseq
    %v147 = vshrl.u32 %v146, 7
    %v148 = vsub.s32 0, %v147
    %v149 = vrot.slane %v144, %v148
    %vm151 = vcmask 261120
    %v153 = vsel %vm151, %v137, 0
    %155 = vmatprep.subr.bf16.mxu0 0
    %156 = vmatpush1.bf16.msra.mxu0 %v142
    %157 = vmatprep.subr.bf16.mxu0 0
    %158 = vmatpush1.bf16.msra.mxu0 %v143
    %159 = vmatprep.subr.bf16.mxu0 0
    %160 = vmatpush1.bf16.msra.mxu0 0
    %161 = vmatprep.subr.bf16.mxu0 0
    %162 = vmatpush1.bf16.msra.mxu0 0
    %163 = vmatprep.subr.bf16.mxu0 0
    %164 = vmatpush1.bf16.msra.mxu0 0
    %165 = vmatprep.subr.bf16.mxu0 0
    %166 = vmatpush1.bf16.msra.mxu0 0
    %167 = vmatprep.subr.bf16.mxu0 0
    %168 = vmatpush1.bf16.msra.mxu0 0
    %169 = vmatprep.subr.bf16.mxu0 0
    %170 = vmatpush1.bf16.msra.mxu0 0
    %171 = vmatprep.subr.bf16.mxu0 0
    %172 = vmatpush1.bf16.msra.mxu0 0
    %173 = vmatprep.subr.bf16.mxu0 0
    %174 = vmatpush1.bf16.msra.mxu0 0
    %175 = vmatprep.subr.bf16.mxu0 0
    %176 = vmatpush1.bf16.msra.mxu0 0
    %177 = vmatprep.subr.bf16.mxu0 0
    %178 = vmatpush1.bf16.msra.mxu0 0
    %179 = vmatprep.subr.bf16.mxu0 0
    %180 = vmatpush1.bf16.msra.mxu0 0
    %181 = vmatprep.subr.bf16.mxu0 0
    %182 = vmatpush1.bf16.msra.mxu0 0
    %183 = vmatprep.subr.bf16.mxu0 0
    %184 = vmatpush1.bf16.msra.mxu0 0
    %185 = vmatprep.subr.bf16.mxu0 0
    %186 = vmatpush1.bf16.msra.mxu0 0
    %187 = vmatprep.mubr.bf16.mxu0 0
    %188 = vmatmul.mubr.bf16.gmra.mrb[0].mxu0 %v153
    %v189 = vpop.f32.mrb[0].mxu0
    %v190 = vadd.f32 %v149, %v189
    %v191 = vpop.f32.mrb[0].mxu0
    %v192 = vpop.f32.mrb[0].mxu0
    %v193 = vadd.f32 %v149, %v192
    %v194 = vpop.f32.mrb[0].mxu0
    %195 = vdwg.mxu0
    %v196 = vld [vmem:[#allocation5] sm:$0xff]
    %v197 = vld [vmem:[#allocation5 + $0x8] sm:$0xff]
    %v198 = vadd.f32 %v190, %v196
    %v199 = vadd.f32 %v193, %v197
    %200 = vst.msk [vmem:[#allocation16] sm:$0xff] %vm151, %v198
    %201 = vst.msk [vmem:[#allocation16 + $0x8] sm:$0xff] %vm151, %v199
    %v202 = vld [vmem:[#allocation10] sm:$0x1]
    %v203 = vld [vmem:[#allocation11] sm:$0x1]
    %v204 = vsel %vm151, %v198, 0.0
    %205 = vadd.xlane.f32.xlu0 %v204
    %v206 = vpop.xlane.xlu0 %205
    %v207 = vsel %vm151, %v199, 0.0
    %208 = vadd.xlane.f32.xlu0 %v207
    %v209 = vpop.xlane.xlu0 %208
    %v210 = vrcp.pop 32.0
    %v211 = vmul.f32 %v206, %v210
    %v212 = vmul.f32 %v209, %v210
    %v213 = vsub.f32 %v198, %v211
    %v214 = vsub.f32 %v199, %v212
    %v215 = vmul.f32 %v213, %v213
    %v216 = vmul.f32 %v214, %v214
    %v217 = vsel %vm151, %v215, 0.0
    %218 = vadd.xlane.f32.xlu0 %v217
    %v219 = vpop.xlane.xlu0 %218
    %v220 = vsel %vm151, %v216, 0.0
    %221 = vadd.xlane.f32.xlu0 %v220
    %v222 = vpop.xlane.xlu0 %221
    %v223 = vmul.f32 %v219, %v210
    %v224 = vmul.f32 %v222, %v210
    %v225 = vadd.f32 %v223, 1e-05
    %v226 = vadd.f32 %v224, 1e-05
    %v227 = vrsqrt.pop %v225
    %v228 = vrsqrt.pop %v226
    %v229 = vmul.f32 %v213, %v227
    %v230 = vmul.f32 %v214, %v228
    %v232 = vlaneseq
    %v233 = vshrl.u32 %v232, 7
    %v234 = vsub.s32 0, %v233
    %v235 = vrot.slane %v202, %v234
    %v237 = vmul.f32 %v229, %v235
    %v238 = vmul.f32 %v230, %v235
    %v240 = vlaneseq
    %v241 = vshrl.u32 %v240, 7
    %v242 = vsub.s32 0, %v241
    %v243 = vrot.slane %v203, %v242
    %v245 = vadd.f32 %v237, %v243
    %v246 = vadd.f32 %v238, %v243
    %v247 = vpack.c.bf16 %v246, %v245
    %v248 = vld [vmem:[#allocation13] sm:$0xff]
    %v249 = vld [vmem:[#allocation13 + $0x8] sm:$0xff]
    %v250 = vld [vmem:[#allocation13 + $0x10] sm:$0xff]
    %v251 = vld [vmem:[#allocation13 + $0x18] sm:$0xff]
    %v252 = vpack.c.bf16 %v249, %v248
    %v253 = vpack.c.bf16 %v251, %v250
    %v254 = vld [vmem:[#allocation14] sm:$0x1]
    %v256 = vlaneseq
    %v257 = vshrl.u32 %v256, 7
    %v258 = vsub.s32 0, %v257
    %v259 = vrot.slane %v254, %v258
    %v262 = vsel %vm151, %v247, 0
    %264 = vmatprep.subr.bf16.mxu0 0
    %265 = vmatpush1.bf16.msra.mxu0 %v252
    %266 = vmatprep.subr.bf16.mxu0 0
    %267 = vmatpush1.bf16.msra.mxu0 %v253
    %268 = vmatprep.subr.bf16.mxu0 0
    %269 = vmatpush1.bf16.msra.mxu0 0
    %270 = vmatprep.subr.bf16.mxu0 0
    %271 = vmatpush1.bf16.msra.mxu0 0
    %272 = vmatprep.subr.bf16.mxu0 0
    %273 = vmatpush1.bf16.msra.mxu0 0
    %274 = vmatprep.subr.bf16.mxu0 0
    %275 = vmatpush1.bf16.msra.mxu0 0
    %276 = vmatprep.subr.bf16.mxu0 0
    %277 = vmatpush1.bf16.msra.mxu0 0
    %278 = vmatprep.subr.bf16.mxu0 0
    %279 = vmatpush1.bf16.msra.mxu0 0
    %280 = vmatprep.subr.bf16.mxu0 0
    %281 = vmatpush1.bf16.msra.mxu0 0
    %282 = vmatprep.subr.bf16.mxu0 0
    %283 = vmatpush1.bf16.msra.mxu0 0
    %284 = vmatprep.subr.bf16.mxu0 0
    %285 = vmatpush1.bf16.msra.mxu0 0
    %286 = vmatprep.subr.bf16.mxu0 0
    %287 = vmatpush1.bf16.msra.mxu0 0
    %288 = vmatprep.subr.bf16.mxu0 0
    %289 = vmatpush1.bf16.msra.mxu0 0
    %290 = vmatprep.subr.bf16.mxu0 0
    %291 = vmatpush1.bf16.msra.mxu0 0
    %292 = vmatprep.subr.bf16.mxu0 0
    %293 = vmatpush1.bf16.msra.mxu0 0
    %294 = vmatprep.subr.bf16.mxu0 0
    %295 = vmatpush1.bf16.msra.mxu0 0
    %296 = vmatprep.mubr.bf16.mxu0 0
    %297 = vmatmul.mubr.bf16.gmra.mrb[0].mxu0 %v262
    %v298 = vpop.f32.mrb[0].mxu0
    %v299 = vadd.f32 %v259, %v298
    %v300 = vpop.f32.mrb[0].mxu0
    %v301 = vpop.f32.mrb[0].mxu0
    %v302 = vadd.f32 %v259, %v301
    %v303 = vpop.f32.mrb[0].mxu0
    %304 = vdwg.mxu0
    %305 = vst.msk [vmem:[#allocation17] sm:$0xff] %vm151, %v299
    %306 = vst.msk [vmem:[#allocation17 + $0x8] sm:$0xff] %vm151, %v302
    // Predicated region
    $region66: #{decoder_layer.9} parent=1 // pred_check
      _
    $region67: #{decoder_layer.9} parent=1 // pred_check_branch
      %308 = sbr.rel (0) target = $region69
    $region68: #{decoder_layer.9} parent=1 // pred_region
      %s310 = ssub.s32 256, 256
      %311 = vsyncadd [#allocation4], %s310
      %s312 = sshll.u32 [#allocation16], 4
      %s313 = int_to_ptr.vmem [resolvable:$true] %s312
      %318 = dma.vmem_to_hbm [thread:$0]  %s313, 256, %s8, [#allocation4], 128, 128, 8
    $region69: #{decoder_layer.9} parent=1 // pred_fallthru
      _
    // Predicated region
    $region70: #{decoder_layer.9} parent=1 // pred_check
      _
    $region71: #{decoder_layer.9} parent=1 // pred_check_branch
      %320 = sbr.rel (0) target = $region73
    $region72: #{decoder_layer.9} parent=1 // pred_region
      %s322 = ssub.s32 256, 256
      %323 = vsyncadd [#allocation18], %s322
      %s324 = sshll.u32 [#allocation17], 4
      %s325 = int_to_ptr.vmem [resolvable:$true] %s324
      %330 = dma.vmem_to_hbm [thread:$0]  %s325, 256, %s9, [#allocation18], 128, 128, 8
    $region73: #{decoder_layer.9} parent=1 // pred_fallthru
      _
    // Predicated region
    $region74: #{decoder_layer.9} parent=1 // pred_check
      _
    $region75: #{decoder_layer.9} parent=1 // pred_check_branch
      %332 = sbr.rel (0) target = $region77
    $region76: #{decoder_layer.9} parent=1 // pred_region
      %333 = dma.done [#allocation4], 256
    $region77: #{decoder_layer.9} parent=1 // pred_fallthru
      _
    // Predicated region
    $region78: #{decoder_layer.9} parent=1 // pred_check
      _
    $region79: #{decoder_layer.9} parent=1 // pred_check_branch
      %335 = sbr.rel (0) target = $region81
    $region80: #{decoder_layer.9} parent=1 // pred_region
      %336 = dma.done [#allocation18], 256
    $region81: #{decoder_layer.9} parent=1 // pred_fallthru
      _
    %337 = vsyncpa [#allocation3], 1
    %338 = vsyncpa [#allocation6], 1
    %339 = vsyncpa [#allocation9], 1
    %340 = vsyncpa [#allocation12], 1
    %341 = vsyncpa [#allocation15], 1
    %342 = vsyncpa [#allocation4], 1
    %343 = vsyncpa [#allocation18], 1

// kernel: decoder_layer.12
$region0: #{decoder_layer.12}
  #allocation0 [shape = 'u32[]', space=smem, size = 0x4, offset = 0x4, fixed_abs, tag = 'smem constant byte address 0x4 - core index']
  #allocation1 [shape = 'u32[144,128]{1,0:T(1,128)}', space=vmem, size = 0x12000, scoped, tag = 'internal scratch']
  %s0 = inlined_call_operand.hbm [shape: f32[16,32], index: 0, kind: input, shape index: {}]
  %s1 = inlined_call_operand.hbm [shape: f32[16,32], index: 1, kind: input, shape index: {}]
  %s2 = inlined_call_operand.hbm [shape: f32[32,32], index: 2, kind: input, shape index: {}]
  %s3 = inlined_call_operand.hbm [shape: f32[1,32], index: 3, kind: input, shape index: {}]
  %s4 = inlined_call_operand.hbm [shape: f32[16,32], index: 4, kind: output, shape index: {}]
  %s5 = sld [smem:[#allocation0]]
  $region42: #{decoder_layer.12} parent=0
    _
  %s7 = ssub.s32 1, %s5
  %s8 = scalar_select 0, %s7, %s5
  $region1: #{decoder_layer.12} parent=0
    #allocation2 [shape = 'u8[8192]{0}', space=vmem, size = 0x2000, scoped, tag = 'input window, operand 0, single buffered']
    #allocation3 [shape = 's32[1]{0}', space=sflag, size = 0x4, scoped, tag = 'scoped memory for decoder_layer.12']
    #allocation4 [shape = 's32[1]{0}', space=sflag, size = 0x4, scoped, tag = 'scoped memory for decoder_layer.12']
    #allocation5 [shape = 'u8[8192]{0}', space=vmem, size = 0x2000, scoped, tag = 'input window, operand 1, single buffered']
    #allocation6 [shape = 's32[1]{0}', space=sflag, size = 0x4, scoped, tag = 'scoped memory for decoder_layer.12']
    #allocation7 [shape = 'u8[16384]{0}', space=vmem, size = 0x4000, scoped, tag = 'input window, operand 2, single buffered']
    #allocation8 [shape = 'u8[512]{0}', space=vmem, size = 0x400, scoped, tag = 'input window, operand 3, single buffered']
    #allocation9 [shape = 's32[1]{0}', space=sflag, size = 0x4, scoped, tag = 'scoped memory for decoder_layer.12']
    #allocation10 [shape = 'u8[8192]{0}', space=vmem, size = 0x2000, scoped, tag = 'output window, operand 0, single buffered']
    %9 = vsyncpa [#allocation3], 0
    %10 = vsyncpa [#allocation6], 0
    %11 = vsyncpa [#allocation9], 0
    %12 = vsyncpa [#allocation4], 0
    // Predicated region
    $region2: #{decoder_layer.12} parent=1 // pred_check
      _
    $region3: #{decoder_layer.12} parent=1 // pred_check_branch
      %14 = sbr.rel (0) target = $region5
    $region4: #{decoder_layer.12} parent=1 // pred_region
      %s16 = ssub.s32 256, 256
      %17 = vsyncadd [#allocation3], %s16
      %s18 = sshll.u32 [#allocation2], 4
      %s19 = int_to_ptr.vmem [resolvable:$true] %s18
      %24 = dma.hbm_to_vmem [thread:$0]  %s0, 256, %s19, [#allocation3], 128, 128, 8
    $region5: #{decoder_layer.12} parent=1 // pred_fallthru
      _
    // Predicated region
    $region6: #{decoder_layer.12} parent=1 // pred_check
      _
    $region7: #{decoder_layer.12} parent=1 // pred_check_branch
      %26 = sbr.rel (0) target = $region9
    $region8: #{decoder_layer.12} parent=1 // pred_region
      %s28 = ssub.s32 256, 256
      %29 = vsyncadd [#allocation6], %s28
      %s30 = sshll.u32 [#allocation5], 4
      %s31 = int_to_ptr.vmem [resolvable:$true] %s30
      %36 = dma.hbm_to_vmem [thread:$0]  %s1, 256, %s31, [#allocation6], 128, 128, 8
    $region9: #{decoder_layer.12} parent=1 // pred_fallthru
      _
    // Predicated region
    $region10: #{decoder_layer.12} parent=1 // pred_check
      _
    $region11: #{decoder_layer.12} parent=1 // pred_check_branch
      %38 = sbr.rel (0) target = $region13
    $region12: #{decoder_layer.12} parent=1 // pred_region
      %s40 = ssub.s32 512, 512
      %41 = vsyncadd [#allocation6], %s40
      %s42 = sshll.u32 [#allocation7], 4
      %s43 = int_to_ptr.vmem [resolvable:$true] %s42
      %48 = dma.hbm_to_vmem [thread:$0]  %s2, 512, %s43, [#allocation6], 128, 128, 8
    $region13: #{decoder_layer.12} parent=1 // pred_fallthru
      _
    // Predicated region
    $region14: #{decoder_layer.12} parent=1 // pred_check
      _
    $region15: #{decoder_layer.12} parent=1 // pred_check_branch
      %50 = sbr.rel (0) target = $region17
    $region16: #{decoder_layer.12} parent=1 // pred_region
      %s52 = ssub.s32 16, 16
      %53 = vsyncadd [#allocation9], %s52
      %s55 = sshll.u32 [#allocation8], 4
      %s56 = int_to_ptr.vmem [resolvable:$true] %s55
      %58 = dma.hbm_to_vmem [thread:$0]  %s3, 16, %s56, [#allocation9]
    $region17: #{decoder_layer.12} parent=1 // pred_fallthru
      _
    // Predicated region
    $region18: #{decoder_layer.12} parent=1 // pred_check
      _
    $region19: #{decoder_layer.12} parent=1 // pred_check_branch
      %60 = sbr.rel (0) target = $region21
    $region20: #{decoder_layer.12} parent=1 // pred_region
      %61 = dma.done [#allocation3], 256
    $region21: #{decoder_layer.12} parent=1 // pred_fallthru
      _
    // Predicated region
    $region22: #{decoder_layer.12} parent=1 // pred_check
      _
    $region23: #{decoder_layer.12} parent=1 // pred_check_branch
      %63 = sbr.rel (0) target = $region25
    $region24: #{decoder_layer.12} parent=1 // pred_region
      %64 = dma.done [#allocation6], 256
    $region25: #{decoder_layer.12} parent=1 // pred_fallthru
      _
    // Predicated region
    $region26: #{decoder_layer.12} parent=1 // pred_check
      _
    $region27: #{decoder_layer.12} parent=1 // pred_check_branch
      %66 = sbr.rel (0) target = $region29
    $region28: #{decoder_layer.12} parent=1 // pred_region
      %67 = dma.done [#allocation6], 512
    $region29: #{decoder_layer.12} parent=1 // pred_fallthru
      _
    // Predicated region
    $region30: #{decoder_layer.12} parent=1 // pred_check
      _
    $region31: #{decoder_layer.12} parent=1 // pred_check_branch
      %69 = sbr.rel (0) target = $region33
    $region32: #{decoder_layer.12} parent=1 // pred_region
      %70 = dma.done [#allocation9], 16
    $region33: #{decoder_layer.12} parent=1 // pred_fallthru
      _
    %v72 = vld [vmem:[#allocation2] sm:$0xff]
    %v73 = vld [vmem:[#allocation2 + $0x8] sm:$0xff]
    %v74 = vpack.c.bf16 %v73, %v72
    %v75 = vld [vmem:[#allocation7] sm:$0xff]
    %v76 = vld [vmem:[#allocation7 + $0x8] sm:$0xff]
    %v77 = vld [vmem:[#allocation7 + $0x10] sm:$0xff]
    %v78 = vld [vmem:[#allocation7 + $0x18] sm:$0xff]
    %v79 = vpack.c.bf16 %v76, %v75
    %v80 = vpack.c.bf16 %v78, %v77
    %v81 = vld [vmem:[#allocation8] sm:$0x1]
    %v83 = vlaneseq
    %v84 = vshrl.u32 %v83, 7
    %v85 = vsub.s32 0, %v84
    %v86 = vrot.slane %v81, %v85
    %vm88 = vcmask 261120
    %v90 = vsel %vm88, %v74, 0
    %92 = vmatprep.subr.bf16.mxu0 0
    %93 = vmatpush1.bf16.msra.mxu0 %v79
    %94 = vmatprep.subr.bf16.mxu0 0
    %95 = vmatpush1.bf16.msra.mxu0 %v80
    %96 = vmatprep.subr.bf16.mxu0 0
    %97 = vmatpush1.bf16.msra.mxu0 0
    %98 = vmatprep.subr.bf16.mxu0 0
    %99 = vmatpush1.bf16.msra.mxu0 0
    %100 = vmatprep.subr.bf16.mxu0 0
    %101 = vmatpush1.bf16.msra.mxu0 0
    %102 = vmatprep.subr.bf16.mxu0 0
    %103 = vmatpush1.bf16.msra.mxu0 0
    %104 = vmatprep.subr.bf16.mxu0 0
    %105 = vmatpush1.bf16.msra.mxu0 0
    %106 = vmatprep.subr.bf16.mxu0 0
    %107 = vmatpush1.bf16.msra.mxu0 0
    %108 = vmatprep.subr.bf16.mxu0 0
    %109 = vmatpush1.bf16.msra.mxu0 0
    %110 = vmatprep.subr.bf16.mxu0 0
    %111 = vmatpush1.bf16.msra.mxu0 0
    %112 = vmatprep.subr.bf16.mxu0 0
    %113 = vmatpush1.bf16.msra.mxu0 0
    %114 = vmatprep.subr.bf16.mxu0 0
    %115 = vmatpush1.bf16.msra.mxu0 0
    %116 = vmatprep.subr.bf16.mxu0 0
    %117 = vmatpush1.bf16.msra.mxu0 0
    %118 = vmatprep.subr.bf16.mxu0 0
    %119 = vmatpush1.bf16.msra.mxu0 0
    %120 = vmatprep.subr.bf16.mxu0 0
    %121 = vmatpush1.bf16.msra.mxu0 0
    %122 = vmatprep.subr.bf16.mxu0 0
    %123 = vmatpush1.bf16.msra.mxu0 0
    %124 = vmatprep.mubr.bf16.mxu0 0
    %125 = vmatmul.mubr.bf16.gmra.mrb[0].mxu0 %v90
    %v126 = vpop.f32.mrb[0].mxu0
    %v127 = vadd.f32 %v86, %v126
    %v128 = vpop.f32.mrb[0].mxu0
    %v129 = vpop.f32.mrb[0].mxu0
    %v130 = vadd.f32 %v86, %v129
    %v131 = vpop.f32.mrb[0].mxu0
    %132 = vdwg.mxu0
    %v133 = vld [vmem:[#allocation5] sm:$0xff]
    %v134 = vld [vmem:[#allocation5 + $0x8] sm:$0xff]
    %v135 = vadd.f32 %v127, %v133
    %v136 = vadd.f32 %v130, %v134
    %137 = vst.msk [vmem:[#allocation10] sm:$0xff] %vm88, %v135
    %138 = vst.msk [vmem:[#allocation10 + $0x8] sm:$0xff] %vm88, %v136
    // Predicated region
    $region34: #{decoder_layer.12} parent=1 // pred_check
      _
    $region35: #{decoder_layer.12} parent=1 // pred_check_branch
      %140 = sbr.rel (0) target = $region37
    $region36: #{decoder_layer.12} parent=1 // pred_region
      %s142 = ssub.s32 256, 256
      %143 = vsyncadd [#allocation4], %s142
      %s144 = sshll.u32 [#allocation10], 4
      %s145 = int_to_ptr.vmem [resolvable:$true] %s144
      %150 = dma.vmem_to_hbm [thread:$0]  %s145, 256, %s4, [#allocation4], 128, 128, 8
    $region37: #{decoder_layer.12} parent=1 // pred_fallthru
      _
    // Predicated region
    $region38: #{decoder_layer.12} parent=1 // pred_check
      _
    $region39: #{decoder_layer.12} parent=1 // pred_check_branch
      %152 = sbr.rel (0) target = $region41
    $region40: #{decoder_layer.12} parent=1 // pred_region
      %153 = dma.done [#allocation4], 256
    $region41: #{decoder_layer.12} parent=1 // pred_fallthru
      _
    %154 = vsyncpa [#allocation3], 1
    %155 = vsyncpa [#allocation6], 1
    %156 = vsyncpa [#allocation9], 1
    %157 = vsyncpa [#allocation4], 1

// kernel: decoder_layer.11
$region0: #{decoder_layer.11}
  #allocation0 [shape = 'u32[]', space=smem, size = 0x4, offset = 0x4, fixed_abs, tag = 'smem constant byte address 0x4 - core index']
  #allocation1 [shape = 'u32[144,128]{1,0:T(1,128)}', space=vmem, size = 0x12000, scoped, tag = 'internal scratch']
  %s0 = inlined_call_operand.hbm [shape: f32[2,8,32], index: 0, kind: input, shape index: {}]
  %s1 = inlined_call_operand.hbm [shape: f32[2,16,32], index: 1, kind: input, shape index: {}]
  %s2 = inlined_call_operand.hbm [shape: f32[2,16,32], index: 2, kind: input, shape index: {}]
  %s3 = inlined_call_operand.hbm [shape: f32[2,8,32], index: 3, kind: output, shape index: {0}]
  %s4 = inlined_call_operand.hbm [shape: f32[2,8,16], index: 4, kind: output, shape index: {1}]
  %5 = xla_tuple %s3, %s4
  %s6 = sld [smem:[#allocation0]]
  $region65: #{decoder_layer.11} parent=0
    _
  %s8 = ssub.s32 1, %s6
  %s9 = scalar_select 0, %s8, %s6
  $region1: #{decoder_layer.11} parent=0
    #allocation2 [shape = 'u8[8192]{0}', space=vmem, size = 0x2000, scoped, tag = 'input window, operand 0']
    #allocation3 [shape = 's32[2]{0}', space=sflag, size = 0x8, scoped, tag = 'scoped memory for decoder_layer.11']
    #allocation4 [shape = 's32[2]{0}', space=sflag, size = 0x8, scoped, tag = 'scoped memory for decoder_layer.11']
    #allocation5 [shape = 'u8[16384]{0}', space=vmem, size = 0x4000, scoped, tag = 'input window, operand 1']
    #allocation6 [shape = 's32[2]{0}', space=sflag, size = 0x8, scoped, tag = 'scoped memory for decoder_layer.11']
    #allocation7 [shape = 'u8[16384]{0}', space=vmem, size = 0x4000, scoped, tag = 'input window, operand 2']
    #allocation8 [shape = 'u8[8192]{0}', space=vmem, size = 0x2000, scoped, tag = 'output window, operand 0']
    #allocation9 [shape = 'u8[8192]{0}', space=vmem, size = 0x2000, scoped, tag = 'output window, operand 1']
    #allocation10 [shape = 's32[2]{0}', space=sflag, size = 0x8, scoped, tag = 'scoped memory for decoder_layer.11']
    %10 = vsyncpa [#allocation3], 0
    %s11 = scalar_lea.sflag [#allocation3], 1
    %12 = vsyncpa %s11, 0
    %13 = vsyncpa [#allocation6], 0
    %s14 = scalar_lea.sflag [#allocation6], 1
    %15 = vsyncpa %s14, 0
    %16 = vsyncpa [#allocation4], 0
    %s17 = scalar_lea.sflag [#allocation4], 1
    %18 = vsyncpa %s17, 0
    %19 = vsyncpa [#allocation10], 0
    %s20 = scalar_lea.sflag [#allocation10], 1
    %21 = vsyncpa %s20, 0
    loop: start=0, step=1, limit=4
    $region2: #{decoder_layer.11} parent=1 // loop_pre_header
      _
    $region3: #{decoder_layer.11} parent=1 // loop_header
      %s23 = sphi 0, %s27
      %p24 = scmp.ge.s32.totalorder %s23, 4
      %s33 = sphi 0, %s35
      %s36 = sphi 0, %s33
      %s37 = sphi 0, %s36
      %s53 = sphi 0, %s37
      %s59 = sphi 0, %s61
      %s62 = sphi 0, %s59
      %s63 = sphi 0, %s62
      %s79 = sphi 0, %s63
      %s85 = sphi 0, %s87
      %s88 = sphi 0, %s85
      %s89 = sphi 0, %s88
      %s105 = sphi 0, %s89
      %s111 = sphi 0, %s113
      %s114 = sphi 0, %s111
      %s115 = sphi 0, %s114
      %s131 = sphi 0, %s115
      %s137 = sphi 0, %s139
      %s140 = sphi 0, %s137
      %s141 = sphi 0, %s140
      %s157 = sphi 0, %s141
    $region4: #{decoder_layer.11} parent=1 // loop_header_branch
      %26 = sbr.rel (%p24) target = $region8
    $region5: #{decoder_layer.11} parent=1 // loop_body
      %s28 = ssub.s32 %s23, 1
      %s29 = ssub.s32 %s23, 2
      %s30 = sadd.s32 %s23, 1
      %s31 = ssub.s32 %s23, %s30
      %p32 = scmp.eq.s32.totalorder %s31, 0
      %s34 = sadd.s32 %s33, 1
      %s35 = scalar_select %p32, %s33, %s34
      %p38 = pneg %p32
      %p39 = scmp.eq.s32.totalorder %s23, 1
      %p40 = por %p38, %p39
      %p41 = scmp.ne.s32.totalorder %s33, %s36
      %p42 = scmp.eq.s32.totalorder %s23, 0
      %p43 = por %p41, %p42
      %p44 = scmp.ne.s32.totalorder %s33, %s36
      %p45 = scmp.eq.s32.totalorder %s28, 1
      %p46 = por %p44, %p45
      %p47 = scmp.ne.s32.totalorder %s36, %s37
      %p48 = scmp.eq.s32.totalorder %s28, 0
      %p49 = por %p47, %p48
      %p50 = scmp.ne.s32.totalorder %s36, %s37
      %p51 = scmp.eq.s32.totalorder %s29, 1
      %p52 = por %p50, %p51
      %p54 = scmp.ne.s32.totalorder %s37, %s53
      %p55 = scmp.eq.s32.totalorder %s29, 0
      %p56 = por %p54, %p55
      %s57 = ssub.s32 %s23, %s30
      %p58 = scmp.eq.s32.totalorder %s57, 0
      %s60 = sadd.s32 %s59, 1
      %s61 = scalar_select %p58, %s59, %s60
      %p64 = pneg %p58
      %p65 = scmp.eq.s32.totalorder %s23, 1
      %p66 = por %p64, %p65
      %p67 = scmp.ne.s32.totalorder %s59, %s62
      %p68 = scmp.eq.s32.totalorder %s23, 0
      %p69 = por %p67, %p68
      %p70 = scmp.ne.s32.totalorder %s59, %s62
      %p71 = scmp.eq.s32.totalorder %s28, 1
      %p72 = por %p70, %p71
      %p73 = scmp.ne.s32.totalorder %s62, %s63
      %p74 = scmp.eq.s32.totalorder %s28, 0
      %p75 = por %p73, %p74
      %p76 = scmp.ne.s32.totalorder %s62, %s63
      %p77 = scmp.eq.s32.totalorder %s29, 1
      %p78 = por %p76, %p77
      %p80 = scmp.ne.s32.totalorder %s63, %s79
      %p81 = scmp.eq.s32.totalorder %s29, 0
      %p82 = por %p80, %p81
      %s83 = ssub.s32 %s23, %s30
      %p84 = scmp.eq.s32.totalorder %s83, 0
      %s86 = sadd.s32 %s85, 1
      %s87 = scalar_select %p84, %s85, %s86
      %p90 = pneg %p84
      %p91 = scmp.eq.s32.totalorder %s23, 1
      %p92 = por %p90, %p91
      %p93 = scmp.ne.s32.totalorder %s85, %s88
      %p94 = scmp.eq.s32.totalorder %s23, 0
      %p95 = por %p93, %p94
      %p96 = scmp.ne.s32.totalorder %s85, %s88
      %p97 = scmp.eq.s32.totalorder %s28, 1
      %p98 = por %p96, %p97
      %p99 = scmp.ne.s32.totalorder %s88, %s89
      %p100 = scmp.eq.s32.totalorder %s28, 0
      %p101 = por %p99, %p100
      %p102 = scmp.ne.s32.totalorder %s88, %s89
      %p103 = scmp.eq.s32.totalorder %s29, 1
      %p104 = por %p102, %p103
      %p106 = scmp.ne.s32.totalorder %s89, %s105
      %p107 = scmp.eq.s32.totalorder %s29, 0
      %p108 = por %p106, %p107
      %s109 = ssub.s32 %s23, %s30
      %p110 = scmp.eq.s32.totalorder %s109, 0
      %s112 = sadd.s32 %s111, 1
      %s113 = scalar_select %p110, %s111, %s112
      %p116 = pneg %p110
      %p117 = scmp.eq.s32.totalorder %s23, 1
      %p118 = por %p116, %p117
      %p119 = scmp.ne.s32.totalorder %s111, %s114
      %p120 = scmp.eq.s32.totalorder %s23, 0
      %p121 = por %p119, %p120
      %p122 = scmp.ne.s32.totalorder %s111, %s114
      %p123 = scmp.eq.s32.totalorder %s28, 1
      %p124 = por %p122, %p123
      %p125 = scmp.ne.s32.totalorder %s114, %s115
      %p126 = scmp.eq.s32.totalorder %s28, 0
      %p127 = por %p125, %p126
      %p128 = scmp.ne.s32.totalorder %s114, %s115
      %p129 = scmp.eq.s32.totalorder %s29, 1
      %p130 = por %p128, %p129
      %p132 = scmp.ne.s32.totalorder %s115, %s131
      %p133 = scmp.eq.s32.totalorder %s29, 0
      %p134 = por %p132, %p133
      %s135 = ssub.s32 %s23, %s30
      %p136 = scmp.eq.s32.totalorder %s135, 0
      %s138 = sadd.s32 %s137, 1
      %s139 = scalar_select %p136, %s137, %s138
      %p142 = pneg %p136
      %p143 = scmp.eq.s32.totalorder %s23, 1
      %p144 = por %p142, %p143
      %p145 = scmp.ne.s32.totalorder %s137, %s140
      %p146 = scmp.eq.s32.totalorder %s23, 0
      %p147 = por %p145, %p146
      %p148 = scmp.ne.s32.totalorder %s137, %s140
      %p149 = scmp.eq.s32.totalorder %s28, 1
      %p150 = por %p148, %p149
      %p151 = scmp.ne.s32.totalorder %s140, %s141
      %p152 = scmp.eq.s32.totalorder %s28, 0
      %p153 = por %p151, %p152
      %p154 = scmp.ne.s32.totalorder %s140, %s141
      %p155 = scmp.eq.s32.totalorder %s29, 1
      %p156 = por %p154, %p155
      %p158 = scmp.ne.s32.totalorder %s141, %s157
      %p159 = scmp.eq.s32.totalorder %s29, 0
      %p160 = por %p158, %p159
      %p161 = scmp.le.s32.totalorder 1, %s23
      %p162 = scmp.lt.s32.totalorder %s23, 3
      %p163 = pnand %p161, %p162
      %p164 = pneg %p163
      // Predicated region
      $region9: #{decoder_layer.11} parent=5 // pred_check
        _
      $region10: #{decoder_layer.11} parent=5 // pred_check_branch
        %166 = sbr.rel (%p163) target = $region12
      $region11: #{decoder_layer.11} parent=5 // pred_region
        %s167 = ssub.s32 %s23, 1
      $region12: #{decoder_layer.11} parent=5 // pred_fallthru
        _
      %p168 = scmp.lt.s32.totalorder %s23, 2
      // Predicated region
      $region13: #{decoder_layer.11} parent=5 // pred_check
        %p169 = pneg %p168
      $region14: #{decoder_layer.11} parent=5 // pred_check_branch
        %171 = sbr.rel (%p169) target = $region16
      $region15: #{decoder_layer.11} parent=5 // pred_region
        // Predicated region
        $region17: #{decoder_layer.11} parent=15 // pred_check
          %p172 = pneg %p43
        $region18: #{decoder_layer.11} parent=15 // pred_check_branch
          %174 = sbr.rel (%p172) target = $region20
        $region19: #{decoder_layer.11} parent=15 // pred_region
          %s175 = sand.u32 %s33, 1
          %s176 = scalar_lea.sflag [#allocation3], %s175
          %s177 = sand.u32 %s33, 1
          %s178 = smul.addr %s177, 8
          %s179 = scalar_lea.vmem [#allocation2], %s178
          %s181 = ssub.s32 128, 128
          %182 = vsyncadd %s176, %s181
          %s183 = smul.addr %s23, 128
          %s184 = scalar_lea.hbm %s0, %s183
          %s186 = sshll.u32 %s179, 4
          %s187 = int_to_ptr.vmem [resolvable:$true] %s186
          %189 = dma.hbm_to_vmem [thread:$0]  %s184, 128, %s187, %s176
        $region20: #{decoder_layer.11} parent=15 // pred_fallthru
          _
        // Predicated region
        $region21: #{decoder_layer.11} parent=15 // pred_check
          %p190 = pneg %p69
        $region22: #{decoder_layer.11} parent=15 // pred_check_branch
          %192 = sbr.rel (%p190) target = $region24
        $region23: #{decoder_layer.11} parent=15 // pred_region
          %s193 = sand.u32 %s23, 1
          %s194 = scalar_lea.sflag [#allocation6], %s193
          %s195 = sand.u32 %s59, 1
          %s196 = smul.addr %s195, 16
          %s197 = scalar_lea.vmem [#allocation5], %s196
          %s199 = ssub.s32 256, 256
          %200 = vsyncadd %s194, %s199
          %s201 = smul.addr %s23, 2
          %s202 = smul.addr %s201, 128
          %s203 = scalar_lea.hbm %s1, %s202
          %s204 = sshll.u32 %s197, 4
          %s205 = int_to_ptr.vmem [resolvable:$true] %s204
          %210 = dma.hbm_to_vmem [thread:$0]  %s203, 256, %s205, %s194, 128, 128, 8
        $region24: #{decoder_layer.11} parent=15 // pred_fallthru
          _
        // Predicated region
        $region25: #{decoder_layer.11} parent=15 // pred_check
          %p211 = pneg %p95
        $region26: #{decoder_layer.11} parent=15 // pred_check_branch
          %213 = sbr.rel (%p211) target = $region28
        $region27: #{decoder_layer.11} parent=15 // pred_region
          %s214 = sand.u32 %s23, 1
          %s215 = scalar_lea.sflag [#allocation6], %s214
          %s216 = sand.u32 %s85, 1
          %s217 = smul.addr %s216, 16
          %s218 = scalar_lea.vmem [#allocation7], %s217
          %s220 = ssub.s32 256, 256
          %221 = vsyncadd %s215, %s220
          %s222 = smul.addr %s23, 2
          %s223 = smul.addr %s222, 128
          %s224 = scalar_lea.hbm %s2, %s223
          %s225 = sshll.u32 %s218, 4
          %s226 = int_to_ptr.vmem [resolvable:$true] %s225
          %231 = dma.hbm_to_vmem [thread:$0]  %s224, 256, %s226, %s215, 128, 128, 8
        $region28: #{decoder_layer.11} parent=15 // pred_fallthru
          _
      $region16: #{decoder_layer.11} parent=5 // pred_fallthru
        _
      %p232 = scmp.le.s32.totalorder 1, %s23
      %p233 = scmp.lt.s32.totalorder %s23, 3
      %p234 = pnand %p232, %p233
      %p235 = pneg %p234
      // Predicated region
      $region29: #{decoder_layer.11} parent=5 // pred_check
        _
      $region30: #{decoder_layer.11} parent=5 // pred_check_branch
        %237 = sbr.rel (%p234) target = $region32
      $region31: #{decoder_layer.11} parent=5 // pred_region
        %s238 = ssub.s32 %s23, 1
        %s239 = sand.u32 %s36, 1
        %s240 = scalar_lea.sflag [#allocation3], %s239
        %s241 = sand.u32 %s36, 1
        %s242 = smul.addr %s241, 8
        %s243 = scalar_lea.vmem [#allocation2], %s242
        // Predicated region
        $region33: #{decoder_layer.11} parent=31 // pred_check
          %p244 = pneg %p49
        $region34: #{decoder_layer.11} parent=31 // pred_check_branch
          %246 = sbr.rel (%p244) target = $region36
        $region35: #{decoder_layer.11} parent=31 // pred_region
          %247 = dma.done %s240, 128
        $region36: #{decoder_layer.11} parent=31 // pred_fallthru
          _
        %s248 = sand.u32 %s28, 1
        %s249 = scalar_lea.sflag [#allocation6], %s248
        %s250 = sand.u32 %s62, 1
        %s251 = smul.addr %s250, 16
        %s252 = scalar_lea.vmem [#allocation5], %s251
        // Predicated region
        $region37: #{decoder_layer.11} parent=31 // pred_check
          %p253 = pneg %p75
        $region38: #{decoder_layer.11} parent=31 // pred_check_branch
          %255 = sbr.rel (%p253) target = $region40
        $region39: #{decoder_layer.11} parent=31 // pred_region
          %256 = dma.done %s249, 256
        $region40: #{decoder_layer.11} parent=31 // pred_fallthru
          _
        %s257 = sand.u32 %s28, 1
        %s258 = scalar_lea.sflag [#allocation6], %s257
        %s259 = sand.u32 %s88, 1
        %s260 = smul.addr %s259, 16
        %s261 = scalar_lea.vmem [#allocation7], %s260
        // Predicated region
        $region41: #{decoder_layer.11} parent=31 // pred_check
          %p262 = pneg %p101
        $region42: #{decoder_layer.11} parent=31 // pred_check_branch
          %264 = sbr.rel (%p262) target = $region44
        $region43: #{decoder_layer.11} parent=31 // pred_region
          %265 = dma.done %s258, 256
        $region44: #{decoder_layer.11} parent=31 // pred_fallthru
          _
        %s266 = sand.u32 %s36, 1
        %s267 = scalar_lea.sflag [#allocation3], %s266
        %s268 = sand.u32 %s36, 1
        %s269 = smul.addr %s268, 8
        %s270 = scalar_lea.vmem [#allocation2], %s269
        %p271 = pneg %p49
        %p272 = pneg %p46
        %s273 = sand.u32 %s28, 1
        %s274 = scalar_lea.sflag [#allocation6], %s273
        %s275 = sand.u32 %s62, 1
        %s276 = smul.addr %s275, 16
        %s277 = scalar_lea.vmem [#allocation5], %s276
        %p278 = pneg %p75
        %p279 = pneg %p72
        %s280 = sand.u32 %s28, 1
        %s281 = scalar_lea.sflag [#allocation6], %s280
        %s282 = sand.u32 %s88, 1
        %s283 = smul.addr %s282, 16
        %s284 = scalar_lea.vmem [#allocation7], %s283
        %p285 = pneg %p101
        %p286 = pneg %p98
        %p287 = pneg %p127
        %p288 = pneg %p124
        %s289 = sand.u32 %s114, 1
        %s290 = scalar_lea.sflag [#allocation4], %s289
        %s291 = sand.u32 %s114, 1
        %s292 = smul.addr %s291, 8
        %s293 = scalar_lea.vmem [#allocation8], %s292
        %p294 = pneg %p153
        %p295 = pneg %p150
        %s296 = sand.u32 %s140, 1
        %s297 = scalar_lea.sflag [#allocation10], %s296
        %s298 = sand.u32 %s140, 1
        %s299 = smul.addr %s298, 8
        %s300 = scalar_lea.vmem [#allocation9], %s299
        %v302 = vld [vmem:[%s243] sm:$0xff]
        %v303 = vld [vmem:[%s252] sm:$0xff]
        %v304 = vld [vmem:[%s252 + $0x8] sm:$0xff]
        %v305 = vld [vmem:[%s261] sm:$0xff]
        %v306 = vld [vmem:[%s261 + $0x8] sm:$0xff]
        %v307 = vpack.c.bf16 %v302, %v302
        %v308 = vpack.c.bf16 %v304, %v303
        %v309 = vpack.c.bf16 %v306, %v305
        %vm310 = vcmask 64512
        %v312 = vsel %vm310, %v307, 0
        %v315 = vsel %vm310, %v308, 0
        %317 = vmatprep.subr.bf16.mxu0 0
        %318 = vmatpush1.bf16.xpose.msra.mxu0 %v315
        %319 = vmatprep.subr.bf16.mxu0 0
        %320 = vmatpush1.bf16.xpose.msra.mxu0 0
        %321 = vmatprep.subr.bf16.mxu0 0
        %322 = vmatpush1.bf16.xpose.msra.mxu0 0
        %323 = vmatprep.subr.bf16.mxu0 0
        %324 = vmatpush1.bf16.xpose.msra.mxu0 0
        %325 = vmatprep.subr.bf16.mxu0 0
        %326 = vmatpush1.bf16.xpose.msra.mxu0 0
        %327 = vmatprep.subr.bf16.mxu0 0
        %328 = vmatpush1.bf16.xpose.msra.mxu0 0
        %329 = vmatprep.subr.bf16.mxu0 0
        %330 = vmatpush1.bf16.xpose.msra.mxu0 0
        %331 = vmatprep.subr.bf16.mxu0 0
        %332 = vmatpush1.bf16.xpose.msra.mxu0 0
        %333 = vmatprep.subr.bf16.mxu0 0
        %334 = vmatpush1.bf16.xpose.msra.mxu0 0
        %335 = vmatprep.subr.bf16.mxu0 0
        %336 = vmatpush1.bf16.xpose.msra.mxu0 0
        %337 = vmatprep.subr.bf16.mxu0 0
        %338 = vmatpush1.bf16.xpose.msra.mxu0 0
        %339 = vmatprep.subr.bf16.mxu0 0
        %340 = vmatpush1.bf16.xpose.msra.mxu0 0
        %341 = vmatprep.subr.bf16.mxu0 0
        %342 = vmatpush1.bf16.xpose.msra.mxu0 0
        %343 = vmatprep.subr.bf16.mxu0 0
        %344 = vmatpush1.bf16.xpose.msra.mxu0 0
        %345 = vmatprep.subr.bf16.mxu0 0
        %346 = vmatpush1.bf16.xpose.msra.mxu0 0
        %347 = vmatprep.subr.bf16.mxu0 0
        %348 = vmatpush1.bf16.xpose.msra.mxu0 0
        %349 = vmatprep.mubr.bf16.mxu0 0
        %350 = vmatmul.mubr.bf16.gmra.mrb[0].mxu0 %v312
        %v351 = vpop.f32.mrb[0].mxu0
        %v352 = vadd.f32 0.0, %v351
        %v353 = vpop.f32.mrb[0].mxu0
        %v354 = vpop.f32.mrb[0].mxu0
        %v355 = vpop.f32.mrb[0].mxu0
        %356 = vdwg.mxu0
        %v357 = vmul.f32 %v352, 0.35355338
        %vm358 = vcmask 130048
        %v359 = vsel %vm358, %v357, -inf
        %360 = vmax.xlane.f32.xlu0 %v359
        %v361 = vpop.xlane.xlu0 %360
        %v362 = vsub.f32 %v357, %v361
        %v363 = vmul.f32 %v362, 1.442695
        %v364 = vpow.pop %v363
        %v365 = vsel %vm358, %v364, 0.0
        %366 = vadd.xlane.f32.xlu0 %v365
        %v367 = vpop.xlane.xlu0 %366
        %v368 = vrcp.pop %v367
        %v369 = vmul.f32 %v364, %v368
        %v370 = vadd.f32 %v369, 0.0
        %v371 = vpack.c.bf16 %v369, %v369
        %v373 = vsel %vm358, %v371, 0
        %375 = vmatprep.subr.bf16.mxu0 0
        %376 = vmatpush1.bf16.msra.mxu0 %v309
        %377 = vmatprep.subr.bf16.mxu0 0
        %378 = vmatpush1.bf16.msra.mxu0 0
        %379 = vmatprep.subr.bf16.mxu0 0
        %380 = vmatpush1.bf16.msra.mxu0 0
        %381 = vmatprep.subr.bf16.mxu0 0
        %382 = vmatpush1.bf16.msra.mxu0 0
        %383 = vmatprep.subr.bf16.mxu0 0
        %384 = vmatpush1.bf16.msra.mxu0 0
        %385 = vmatprep.subr.bf16.mxu0 0
        %386 = vmatpush1.bf16.msra.mxu0 0
        %387 = vmatprep.subr.bf16.mxu0 0
        %388 = vmatpush1.bf16.msra.mxu0 0
        %389 = vmatprep.subr.bf16.mxu0 0
        %390 = vmatpush1.bf16.msra.mxu0 0
        %391 = vmatprep.subr.bf16.mxu0 0
        %392 = vmatpush1.bf16.msra.mxu0 0
        %393 = vmatprep.subr.bf16.mxu0 0
        %394 = vmatpush1.bf16.msra.mxu0 0
        %395 = vmatprep.subr.bf16.mxu0 0
        %396 = vmatpush1.bf16.msra.mxu0 0
        %397 = vmatprep.subr.bf16.mxu0 0
        %398 = vmatpush1.bf16.msra.mxu0 0
        %399 = vmatprep.subr.bf16.mxu0 0
        %400 = vmatpush1.bf16.msra.mxu0 0
        %401 = vmatprep.subr.bf16.mxu0 0
        %402 = vmatpush1.bf16.msra.mxu0 0
        %403 = vmatprep.subr.bf16.mxu0 0
        %404 = vmatpush1.bf16.msra.mxu0 0
        %405 = vmatprep.subr.bf16.mxu0 0
        %406 = vmatpush1.bf16.msra.mxu0 0
        %407 = vmatprep.mubr.bf16.mxu0 0
        %408 = vmatmul.mubr.bf16.gmra.mrb[0].mxu0 %v373
        %v409 = vpop.f32.mrb[0].mxu0
        %v410 = vadd.f32 0.0, %v409
        %v411 = vpop.f32.mrb[0].mxu0
        %v412 = vpop.f32.mrb[0].mxu0
        %v413 = vpop.f32.mrb[0].mxu0
        %414 = vdwg.mxu0
        %416 = vrot.lane.b32.xlu0 %v307, 120
        %v417 = vpop.permute.xlu0 %416
        %419 = vrot.lane.b32.xlu0 %v308, 120
        %v420 = vpop.permute.xlu0 %419
        %v422 = vsel %vm310, %v417, 0
        %v425 = vsel %vm310, %v420, 0
        %427 = vmatprep.subr.bf16.mxu0 0
        %428 = vmatpush1.bf16.xpose.msra.mxu0 %v425
        %429 = vmatprep.subr.bf16.mxu0 0
        %430 = vmatpush1.bf16.xpose.msra.mxu0 0
        %431 = vmatprep.subr.bf16.mxu0 0
        %432 = vmatpush1.bf16.xpose.msra.mxu0 0
        %433 = vmatprep.subr.bf16.mxu0 0
        %434 = vmatpush1.bf16.xpose.msra.mxu0 0
        %435 = vmatprep.subr.bf16.mxu0 0
        %436 = vmatpush1.bf16.xpose.msra.mxu0 0
        %437 = vmatprep.subr.bf16.mxu0 0
        %438 = vmatpush1.bf16.xpose.msra.mxu0 0
        %439 = vmatprep.subr.bf16.mxu0 0
        %440 = vmatpush1.bf16.xpose.msra.mxu0 0
        %441 = vmatprep.subr.bf16.mxu0 0
        %442 = vmatpush1.bf16.xpose.msra.mxu0 0
        %443 = vmatprep.subr.bf16.mxu0 0
        %444 = vmatpush1.bf16.xpose.msra.mxu0 0
        %445 = vmatprep.subr.bf16.mxu0 0
        %446 = vmatpush1.bf16.xpose.msra.mxu0 0
        %447 = vmatprep.subr.bf16.mxu0 0
        %448 = vmatpush1.bf16.xpose.msra.mxu0 0
        %449 = vmatprep.subr.bf16.mxu0 0
        %450 = vmatpush1.bf16.xpose.msra.mxu0 0
        %451 = vmatprep.subr.bf16.mxu0 0
        %452 = vmatpush1.bf16.xpose.msra.mxu0 0
        %453 = vmatprep.subr.bf16.mxu0 0
        %454 = vmatpush1.bf16.xpose.msra.mxu0 0
        %455 = vmatprep.subr.bf16.mxu0 0
        %456 = vmatpush1.bf16.xpose.msra.mxu0 0
        %457 = vmatprep.subr.bf16.mxu0 0
        %458 = vmatpush1.bf16.xpose.msra.mxu0 0
        %459 = vmatprep.mubr.bf16.mxu0 0
        %460 = vmatmul.mubr.bf16.gmra.mrb[0].mxu0 %v422
        %v461 = vpop.f32.mrb[0].mxu0
        %v462 = vadd.f32 0.0, %v461
        %v463 = vpop.f32.mrb[0].mxu0
        %v464 = vpop.f32.mrb[0].mxu0
        %v465 = vpop.f32.mrb[0].mxu0
        %466 = vdwg.mxu0
        %v467 = vmul.f32 %v462, 0.35355338
        %v468 = vsel %vm358, %v467, -inf
        %469 = vmax.xlane.f32.xlu0 %v468
        %v470 = vpop.xlane.xlu0 %469
        %v471 = vsub.f32 %v467, %v470
        %v472 = vmul.f32 %v471, 1.442695
        %v473 = vpow.pop %v472
        %v474 = vsel %vm358, %v473, 0.0
        %475 = vadd.xlane.f32.xlu0 %v474
        %v476 = vpop.xlane.xlu0 %475
        %v477 = vrcp.pop %v476
        %v478 = vmul.f32 %v473, %v477
        %v479 = vadd.f32 %v370, %v478
        %v480 = vpack.c.bf16 %v478, %v478
        %482 = vrot.lane.b32.xlu0 %v309, 120
        %v483 = vpop.permute.xlu0 %482
        %v486 = vsel %vm358, %v480, 0
        %488 = vmatprep.subr.bf16.mxu0 0
        %489 = vmatpush1.bf16.msra.mxu0 %v483
        %490 = vmatprep.subr.bf16.mxu0 0
        %491 = vmatpush1.bf16.msra.mxu0 0
        %492 = vmatprep.subr.bf16.mxu0 0
        %493 = vmatpush1.bf16.msra.mxu0 0
        %494 = vmatprep.subr.bf16.mxu0 0
        %495 = vmatpush1.bf16.msra.mxu0 0
        %496 = vmatprep.subr.bf16.mxu0 0
        %497 = vmatpush1.bf16.msra.mxu0 0
        %498 = vmatprep.subr.bf16.mxu0 0
        %499 = vmatpush1.bf16.msra.mxu0 0
        %500 = vmatprep.subr.bf16.mxu0 0
        %501 = vmatpush1.bf16.msra.mxu0 0
        %502 = vmatprep.subr.bf16.mxu0 0
        %503 = vmatpush1.bf16.msra.mxu0 0
        %504 = vmatprep.subr.bf16.mxu0 0
        %505 = vmatpush1.bf16.msra.mxu0 0
        %506 = vmatprep.subr.bf16.mxu0 0
        %507 = vmatpush1.bf16.msra.mxu0 0
        %508 = vmatprep.subr.bf16.mxu0 0
        %509 = vmatpush1.bf16.msra.mxu0 0
        %510 = vmatprep.subr.bf16.mxu0 0
        %511 = vmatpush1.bf16.msra.mxu0 0
        %512 = vmatprep.subr.bf16.mxu0 0
        %513 = vmatpush1.bf16.msra.mxu0 0
        %514 = vmatprep.subr.bf16.mxu0 0
        %515 = vmatpush1.bf16.msra.mxu0 0
        %516 = vmatprep.subr.bf16.mxu0 0
        %517 = vmatpush1.bf16.msra.mxu0 0
        %518 = vmatprep.subr.bf16.mxu0 0
        %519 = vmatpush1.bf16.msra.mxu0 0
        %520 = vmatprep.mubr.bf16.mxu0 0
        %521 = vmatmul.mubr.bf16.gmra.mrb[0].mxu0 %v486
        %v522 = vpop.f32.mrb[0].mxu0
        %v523 = vadd.f32 0.0, %v522
        %v524 = vpop.f32.mrb[0].mxu0
        %v525 = vpop.f32.mrb[0].mxu0
        %v526 = vpop.f32.mrb[0].mxu0
        %527 = vdwg.mxu0
        %528 = vrot.lane.b32.xlu0 %v307, 112
        %v529 = vpop.permute.xlu0 %528
        %530 = vrot.lane.b32.xlu0 %v308, 112
        %v531 = vpop.permute.xlu0 %530
        %v533 = vsel %vm310, %v529, 0
        %v536 = vsel %vm310, %v531, 0
        %538 = vmatprep.subr.bf16.mxu0 0
        %539 = vmatpush1.bf16.xpose.msra.mxu0 %v536
        %540 = vmatprep.subr.bf16.mxu0 0
        %541 = vmatpush1.bf16.xpose.msra.mxu0 0
        %542 = vmatprep.subr.bf16.mxu0 0
        %543 = vmatpush1.bf16.xpose.msra.mxu0 0
        %544 = vmatprep.subr.bf16.mxu0 0
        %545 = vmatpush1.bf16.xpose.msra.mxu0 0
        %546 = vmatprep.subr.bf16.mxu0 0
        %547 = vmatpush1.bf16.xpose.msra.mxu0 0
        %548 = vmatprep.subr.bf16.mxu0 0
        %549 = vmatpush1.bf16.xpose.msra.mxu0 0
        %550 = vmatprep.subr.bf16.mxu0 0
        %551 = vmatpush1.bf16.xpose.msra.mxu0 0
        %552 = vmatprep.subr.bf16.mxu0 0
        %553 = vmatpush1.bf16.xpose.msra.mxu0 0
        %554 = vmatprep.subr.bf16.mxu0 0
        %555 = vmatpush1.bf16.xpose.msra.mxu0 0
        %556 = vmatprep.subr.bf16.mxu0 0
        %557 = vmatpush1.bf16.xpose.msra.mxu0 0
        %558 = vmatprep.subr.bf16.mxu0 0
        %559 = vmatpush1.bf16.xpose.msra.mxu0 0
        %560 = vmatprep.subr.bf16.mxu0 0
        %561 = vmatpush1.bf16.xpose.msra.mxu0 0
        %562 = vmatprep.subr.bf16.mxu0 0
        %563 = vmatpush1.bf16.xpose.msra.mxu0 0
        %564 = vmatprep.subr.bf16.mxu0 0
        %565 = vmatpush1.bf16.xpose.msra.mxu0 0
        %566 = vmatprep.subr.bf16.mxu0 0
        %567 = vmatpush1.bf16.xpose.msra.mxu0 0
        %568 = vmatprep.subr.bf16.mxu0 0
        %569 = vmatpush1.bf16.xpose.msra.mxu0 0
        %570 = vmatprep.mubr.bf16.mxu0 0
        %571 = vmatmul.mubr.bf16.gmra.mrb[0].mxu0 %v533
        %v572 = vpop.f32.mrb[0].mxu0
        %v573 = vadd.f32 0.0, %v572
        %v574 = vpop.f32.mrb[0].mxu0
        %v575 = vpop.f32.mrb[0].mxu0
        %v576 = vpop.f32.mrb[0].mxu0
        %577 = vdwg.mxu0
        %v578 = vmul.f32 %v573, 0.35355338
        %v579 = vsel %vm358, %v578, -inf
        %580 = vmax.xlane.f32.xlu0 %v579
        %v581 = vpop.xlane.xlu0 %580
        %v582 = vsub.f32 %v578, %v581
        %v583 = vmul.f32 %v582, 1.442695
        %v584 = vpow.pop %v583
        %v585 = vsel %vm358, %v584, 0.0
        %586 = vadd.xlane.f32.xlu0 %v585
        %v587 = vpop.xlane.xlu0 %586
        %v588 = vrcp.pop %v587
        %v589 = vmul.f32 %v584, %v588
        %v590 = vadd.f32 %v479, %v589
        %v591 = vpack.c.bf16 %v589, %v589
        %592 = vrot.lane.b32.xlu0 %v309, 112
        %v593 = vpop.permute.xlu0 %592
        %v596 = vsel %vm358, %v591, 0
        %598 = vmatprep.subr.bf16.mxu0 0
        %599 = vmatpush1.bf16.msra.mxu0 %v593
        %600 = vmatprep.subr.bf16.mxu0 0
        %601 = vmatpush1.bf16.msra.mxu0 0
        %602 = vmatprep.subr.bf16.mxu0 0
        %603 = vmatpush1.bf16.msra.mxu0 0
        %604 = vmatprep.subr.bf16.mxu0 0
        %605 = vmatpush1.bf16.msra.mxu0 0
        %606 = vmatprep.subr.bf16.mxu0 0
        %607 = vmatpush1.bf16.msra.mxu0 0
        %608 = vmatprep.subr.bf16.mxu0 0
        %609 = vmatpush1.bf16.msra.mxu0 0
        %610 = vmatprep.subr.bf16.mxu0 0
        %611 = vmatpush1.bf16.msra.mxu0 0
        %612 = vmatprep.subr.bf16.mxu0 0
        %613 = vmatpush1.bf16.msra.mxu0 0
        %614 = vmatprep.subr.bf16.mxu0 0
        %615 = vmatpush1.bf16.msra.mxu0 0
        %616 = vmatprep.subr.bf16.mxu0 0
        %617 = vmatpush1.bf16.msra.mxu0 0
        %618 = vmatprep.subr.bf16.mxu0 0
        %619 = vmatpush1.bf16.msra.mxu0 0
        %620 = vmatprep.subr.bf16.mxu0 0
        %621 = vmatpush1.bf16.msra.mxu0 0
        %622 = vmatprep.subr.bf16.mxu0 0
        %623 = vmatpush1.bf16.msra.mxu0 0
        %624 = vmatprep.subr.bf16.mxu0 0
        %625 = vmatpush1.bf16.msra.mxu0 0
        %626 = vmatprep.subr.bf16.mxu0 0
        %627 = vmatpush1.bf16.msra.mxu0 0
        %628 = vmatprep.subr.bf16.mxu0 0
        %629 = vmatpush1.bf16.msra.mxu0 0
        %630 = vmatprep.mubr.bf16.mxu0 0
        %631 = vmatmul.mubr.bf16.gmra.mrb[0].mxu0 %v596
        %v632 = vpop.f32.mrb[0].mxu0
        %v633 = vadd.f32 0.0, %v632
        %v634 = vpop.f32.mrb[0].mxu0
        %v635 = vpop.f32.mrb[0].mxu0
        %v636 = vpop.f32.mrb[0].mxu0
        %637 = vdwg.mxu0
        %638 = vrot.lane.b32.xlu0 %v307, 104
        %v639 = vpop.permute.xlu0 %638
        %640 = vrot.lane.b32.xlu0 %v308, 104
        %v641 = vpop.permute.xlu0 %640
        %v643 = vsel %vm310, %v639, 0
        %v646 = vsel %vm310, %v641, 0
        %648 = vmatprep.subr.bf16.mxu0 0
        %649 = vmatpush1.bf16.xpose.msra.mxu0 %v646
        %650 = vmatprep.subr.bf16.mxu0 0
        %651 = vmatpush1.bf16.xpose.msra.mxu0 0
        %652 = vmatprep.subr.bf16.mxu0 0
        %653 = vmatpush1.bf16.xpose.msra.mxu0 0
        %654 = vmatprep.subr.bf16.mxu0 0
        %655 = vmatpush1.bf16.xpose.msra.mxu0 0
        %656 = vmatprep.subr.bf16.mxu0 0
        %657 = vmatpush1.bf16.xpose.msra.mxu0 0
        %658 = vmatprep.subr.bf16.mxu0 0
        %659 = vmatpush1.bf16.xpose.msra.mxu0 0
        %660 = vmatprep.subr.bf16.mxu0 0
        %661 = vmatpush1.bf16.xpose.msra.mxu0 0
        %662 = vmatprep.subr.bf16.mxu0 0
        %663 = vmatpush1.bf16.xpose.msra.mxu0 0
        %664 = vmatprep.subr.bf16.mxu0 0
        %665 = vmatpush1.bf16.xpose.msra.mxu0 0
        %666 = vmatprep.subr.bf16.mxu0 0
        %667 = vmatpush1.bf16.xpose.msra.mxu0 0
        %668 = vmatprep.subr.bf16.mxu0 0
        %669 = vmatpush1.bf16.xpose.msra.mxu0 0
        %670 = vmatprep.subr.bf16.mxu0 0
        %671 = vmatpush1.bf16.xpose.msra.mxu0 0
        %672 = vmatprep.subr.bf16.mxu0 0
        %673 = vmatpush1.bf16.xpose.msra.mxu0 0
        %674 = vmatprep.subr.bf16.mxu0 0
        %675 = vmatpush1.bf16.xpose.msra.mxu0 0
        %676 = vmatprep.subr.bf16.mxu0 0
        %677 = vmatpush1.bf16.xpose.msra.mxu0 0
        %678 = vmatprep.subr.bf16.mxu0 0
        %679 = vmatpush1.bf16.xpose.msra.mxu0 0
        %680 = vmatprep.mubr.bf16.mxu0 0
        %681 = vmatmul.mubr.bf16.gmra.mrb[0].mxu0 %v643
        %v682 = vpop.f32.mrb[0].mxu0
        %v683 = vadd.f32 0.0, %v682
        %v684 = vpop.f32.mrb[0].mxu0
        %v685 = vpop.f32.mrb[0].mxu0
        %v686 = vpop.f32.mrb[0].mxu0
        %687 = vdwg.mxu0
        %v688 = vmul.f32 %v683, 0.35355338
        %v689 = vsel %vm358, %v688, -inf
        %690 = vmax.xlane.f32.xlu0 %v689
        %v691 = vpop.xlane.xlu0 %690
        %v692 = vsub.f32 %v688, %v691
        %v693 = vmul.f32 %v692, 1.442695
        %v694 = vpow.pop %v693
        %v695 = vsel %vm358, %v694, 0.0
        %696 = vadd.xlane.f32.xlu0 %v695
        %v697 = vpop.xlane.xlu0 %696
        %v698 = vrcp.pop %v697
        %v699 = vmul.f32 %v694, %v698
        %v700 = vadd.f32 %v590, %v699
        %v701 = vpack.c.bf16 %v699, %v699
        %702 = vrot.lane.b32.xlu0 %v309, 104
        %v703 = vpop.permute.xlu0 %702
        %v706 = vsel %vm358, %v701, 0
        %708 = vmatprep.subr.bf16.mxu0 0
        %709 = vmatpush1.bf16.msra.mxu0 %v703
        %710 = vmatprep.subr.bf16.mxu0 0
        %711 = vmatpush1.bf16.msra.mxu0 0
        %712 = vmatprep.subr.bf16.mxu0 0
        %713 = vmatpush1.bf16.msra.mxu0 0
        %714 = vmatprep.subr.bf16.mxu0 0
        %715 = vmatpush1.bf16.msra.mxu0 0
        %716 = vmatprep.subr.bf16.mxu0 0
        %717 = vmatpush1.bf16.msra.mxu0 0
        %718 = vmatprep.subr.bf16.mxu0 0
        %719 = vmatpush1.bf16.msra.mxu0 0
        %720 = vmatprep.subr.bf16.mxu0 0
        %721 = vmatpush1.bf16.msra.mxu0 0
        %722 = vmatprep.subr.bf16.mxu0 0
        %723 = vmatpush1.bf16.msra.mxu0 0
        %724 = vmatprep.subr.bf16.mxu0 0
        %725 = vmatpush1.bf16.msra.mxu0 0
        %726 = vmatprep.subr.bf16.mxu0 0
        %727 = vmatpush1.bf16.msra.mxu0 0
        %728 = vmatprep.subr.bf16.mxu0 0
        %729 = vmatpush1.bf16.msra.mxu0 0
        %730 = vmatprep.subr.bf16.mxu0 0
        %731 = vmatpush1.bf16.msra.mxu0 0
        %732 = vmatprep.subr.bf16.mxu0 0
        %733 = vmatpush1.bf16.msra.mxu0 0
        %734 = vmatprep.subr.bf16.mxu0 0
        %735 = vmatpush1.bf16.msra.mxu0 0
        %736 = vmatprep.subr.bf16.mxu0 0
        %737 = vmatpush1.bf16.msra.mxu0 0
        %738 = vmatprep.subr.bf16.mxu0 0
        %739 = vmatpush1.bf16.msra.mxu0 0
        %740 = vmatprep.mubr.bf16.mxu0 0
        %741 = vmatmul.mubr.bf16.gmra.mrb[0].mxu0 %v706
        %v742 = vpop.f32.mrb[0].mxu0
        %v743 = vadd.f32 0.0, %v742
        %v744 = vpop.f32.mrb[0].mxu0
        %v745 = vpop.f32.mrb[0].mxu0
        %v746 = vpop.f32.mrb[0].mxu0
        %747 = vdwg.mxu0
        %749 = vrot.lane.b32.xlu0 %v523, 8
        %v750 = vpop.permute.xlu0 %749
        %753 = vrot.lane.b32.xlu0 %v633, 16
        %v754 = vpop.permute.xlu0 %753
        %757 = vrot.lane.b32.xlu0 %v743, 24
        %v758 = vpop.permute.xlu0 %757
        %v760 = vsel %vm310, %v410, %v750
        %v761 = vsel %vm358, %v760, %v754
        %vm762 = vcmask 195584
        %v763 = vsel %vm762, %v761, %v758
        %vm764 = vcmask 261120
        %765 = vst.msk [vmem:[%s293] sm:$0xff] %vm764, %v763
        %v766 = vmul.f32 %v700, 0.25
        %767 = vst.msk [vmem:[%s300] sm:$0xff] %vm358, %v766
        %s768 = sand.u32 %s114, 1
        %s769 = scalar_lea.sflag [#allocation4], %s768
        %s770 = sand.u32 %s114, 1
        %s771 = smul.addr %s770, 8
        %s772 = scalar_lea.vmem [#allocation8], %s771
        %s773 = sand.u32 %s140, 1
        %s774 = scalar_lea.sflag [#allocation10], %s773
        %s775 = sand.u32 %s140, 1
        %s776 = smul.addr %s775, 8
        %s777 = scalar_lea.vmem [#allocation9], %s776
        // Predicated region
        $region45: #{decoder_layer.11} parent=31 // pred_check
          %p778 = pneg %p124
        $region46: #{decoder_layer.11} parent=31 // pred_check_branch
          %780 = sbr.rel (%p778) target = $region48
        $region47: #{decoder_layer.11} parent=31 // pred_region
          %s782 = ssub.s32 128, 128
          %783 = vsyncadd %s769, %s782
          %s784 = smul.addr %s28, 128
          %s785 = scalar_lea.hbm %s3, %s784
          %s787 = sshll.u32 %s772, 4
          %s788 = int_to_ptr.vmem [resolvable:$true] %s787
          %790 = dma.vmem_to_hbm [thread:$0]  %s788, 128, %s785, %s769
        $region48: #{decoder_layer.11} parent=31 // pred_fallthru
          _
        // Predicated region
        $region49: #{decoder_layer.11} parent=31 // pred_check
          %p791 = pneg %p150
        $region50: #{decoder_layer.11} parent=31 // pred_check_branch
          %793 = sbr.rel (%p791) target = $region52
        $region51: #{decoder_layer.11} parent=31 // pred_region
          %s795 = ssub.s32 128, 128
          %796 = vsyncadd %s774, %s795
          %s797 = smul.addr %s28, 128
          %s798 = scalar_lea.hbm %s4, %s797
          %s800 = sshll.u32 %s777, 4
          %s801 = int_to_ptr.vmem [resolvable:$true] %s800
          %803 = dma.vmem_to_hbm [thread:$0]  %s801, 128, %s798, %s774
        $region52: #{decoder_layer.11} parent=31 // pred_fallthru
          _
      $region32: #{decoder_layer.11} parent=5 // pred_fallthru
        _
      %p804 = scmp.le.s32.totalorder 2, %s23
      // Predicated region
      $region53: #{decoder_layer.11} parent=5 // pred_check
        %p805 = pneg %p804
      $region54: #{decoder_layer.11} parent=5 // pred_check_branch
        %807 = sbr.rel (%p805) target = $region56
      $region55: #{decoder_layer.11} parent=5 // pred_region
        %s808 = ssub.s32 %s23, 2
        // Predicated region
        $region57: #{decoder_layer.11} parent=55 // pred_check
          %p809 = pneg %p130
        $region58: #{decoder_layer.11} parent=55 // pred_check_branch
          %811 = sbr.rel (%p809) target = $region60
        $region59: #{decoder_layer.11} parent=55 // pred_region
          %s812 = sand.u32 %s115, 1
          %s813 = scalar_lea.sflag [#allocation4], %s812
          %s814 = sand.u32 %s115, 1
          %s815 = smul.addr %s814, 8
          %s816 = scalar_lea.vmem [#allocation8], %s815
          %817 = dma.done %s813, 128
        $region60: #{decoder_layer.11} parent=55 // pred_fallthru
          _
        // Predicated region
        $region61: #{decoder_layer.11} parent=55 // pred_check
          %p818 = pneg %p156
        $region62: #{decoder_layer.11} parent=55 // pred_check_branch
          %820 = sbr.rel (%p818) target = $region64
        $region63: #{decoder_layer.11} parent=55 // pred_region
          %s821 = sand.u32 %s141, 1
          %s822 = scalar_lea.sflag [#allocation10], %s821
          %s823 = sand.u32 %s141, 1
          %s824 = smul.addr %s823, 8
          %s825 = scalar_lea.vmem [#allocation9], %s824
          %826 = dma.done %s822, 128
        $region64: #{decoder_layer.11} parent=55 // pred_fallthru
          _
      $region56: #{decoder_layer.11} parent=5 // pred_fallthru
        _
    $region6: #{decoder_layer.11} parent=1 // loop_footer
      %s27 = sadd.s32 1, %s23
    $region7: #{decoder_layer.11} parent=1 // loop_footer_branch
      %22 = sbr.rel target = $region3
    $region8: #{decoder_layer.11} parent=1 // loop_exit
      _
    %827 = vsyncpa [#allocation3], 1
    %s828 = scalar_lea.sflag [#allocation3], 1
    %829 = vsyncpa %s828, 1
    %830 = vsyncpa [#allocation6], 1
    %s831 = scalar_lea.sflag [#allocation6], 1
    %832 = vsyncpa %s831, 1
    %833 = vsyncpa [#allocation4], 1
    %s834 = scalar_lea.sflag [#allocation4], 1
    %835 = vsyncpa %s834, 1
    %836 = vsyncpa [#allocation10], 1
    %s837 = scalar_lea.sflag [#allocation10], 1
    %838 = vsyncpa %s837, 1

// kernel: decoder_layer.13
$region0: #{decoder_layer.13}
  #allocation0 [shape = 'u32[]', space=smem, size = 0x4, offset = 0x4, fixed_abs, tag = 'smem constant byte address 0x4 - core index']
  #allocation1 [shape = 'u32[144,128]{1,0:T(1,128)}', space=vmem, size = 0x12000, scoped, tag = 'internal scratch']
  #allocation2 [shape = 'f32[16,32]{1,0:T(8,128)}', space=vmem, size = 0x2000, scoped, tag = 'scratch operand']
  %s0 = inlined_call_operand.hbm [shape: f32[16,32], index: 0, kind: input, shape index: {}]
  %s1 = inlined_call_operand.hbm [shape: f32[1,32], index: 1, kind: input, shape index: {}]
  %s2 = inlined_call_operand.hbm [shape: f32[1,32], index: 2, kind: input, shape index: {}]
  %s3 = inlined_call_operand.hbm [shape: f32[32,64], index: 3, kind: input, shape index: {}]
  %s4 = inlined_call_operand.hbm [shape: f32[1,64], index: 4, kind: input, shape index: {}]
  %s5 = inlined_call_operand.hbm [shape: f32[64,32], index: 5, kind: input, shape index: {}]
  %s6 = inlined_call_operand.hbm [shape: f32[1,32], index: 6, kind: input, shape index: {}]
  %s7 = inlined_call_operand.hbm [shape: f32[1,32], index: 7, kind: input, shape index: {}]
  %s8 = inlined_call_operand.hbm [shape: f32[1,32], index: 8, kind: input, shape index: {}]
  %s9 = inlined_call_operand.hbm [shape: f32[16,32], index: 9, kind: output, shape index: {}]
  %s10 = sld [smem:[#allocation0]]
  $region90: #{decoder_layer.13} parent=0
    _
  %s12 = ssub.s32 1, %s10
  %s13 = scalar_select 0, %s12, %s10
  $region1: #{decoder_layer.13} parent=0
    #allocation3 [shape = 'u8[8192]{0}', space=vmem, size = 0x2000, scoped, tag = 'input window, operand 0, single buffered']
    #allocation4 [shape = 's32[1]{0}', space=sflag, size = 0x4, scoped, tag = 'scoped memory for decoder_layer.13']
    #allocation5 [shape = 's32[1]{0}', space=sflag, size = 0x4, scoped, tag = 'scoped memory for decoder_layer.13']
    #allocation6 [shape = 'u8[512]{0}', space=vmem, size = 0x400, scoped, tag = 'input window, operand 1, single buffered']
    #allocation7 [shape = 's32[1]{0}', space=sflag, size = 0x4, scoped, tag = 'scoped memory for decoder_layer.13']
    #allocation8 [shape = 'u8[512]{0}', space=vmem, size = 0x400, scoped, tag = 'input window, operand 2, single buffered']
    #allocation9 [shape = 'u8[16384]{0}', space=vmem, size = 0x4000, scoped, tag = 'input window, operand 3, single buffered']
    #allocation10 [shape = 's32[1]{0}', space=sflag, size = 0x4, scoped, tag = 'scoped memory for decoder_layer.13']
    #allocation11 [shape = 'u8[512]{0}', space=vmem, size = 0x400, scoped, tag = 'input window, operand 4, single buffered']
    #allocation12 [shape = 'u8[32768]{0}', space=vmem, size = 0x8000, scoped, tag = 'input window, operand 5, single buffered']
    #allocation13 [shape = 's32[1]{0}', space=sflag, size = 0x4, scoped, tag = 'scoped memory for decoder_layer.13']
    #allocation14 [shape = 'u8[512]{0}', space=vmem, size = 0x400, scoped, tag = 'input window, operand 6, single buffered']
    #allocation15 [shape = 'u8[512]{0}', space=vmem, size = 0x400, scoped, tag = 'input window, operand 7, single buffered']
    #allocation16 [shape = 's32[1]{0}', space=sflag, size = 0x4, scoped, tag = 'scoped memory for decoder_layer.13']
    #allocation17 [shape = 'u8[512]{0}', space=vmem, size = 0x400, scoped, tag = 'input window, operand 8, single buffered']
    #allocation18 [shape = 'u8[8192]{0}', space=vmem, size = 0x2000, scoped, tag = 'output window, operand 0, single buffered']
    %14 = vsyncpa [#allocation4], 0
    %15 = vsyncpa [#allocation7], 0
    %16 = vsyncpa [#allocation10], 0
    %17 = vsyncpa [#allocation13], 0
    %18 = vsyncpa [#allocation16], 0
    %19 = vsyncpa [#allocation5], 0
    // Predicated region
    $region2: #{decoder_layer.13} parent=1 // pred_check
      _
    $region3: #{decoder_layer.13} parent=1 // pred_check_branch
      %21 = sbr.rel (0) target = $region5
    $region4: #{decoder_layer.13} parent=1 // pred_region
      %s23 = ssub.s32 256, 256
      %24 = vsyncadd [#allocation4], %s23
      %s25 = sshll.u32 [#allocation3], 4
      %s26 = int_to_ptr.vmem [resolvable:$true] %s25
      %31 = dma.hbm_to_vmem [thread:$0]  %s0, 256, %s26, [#allocation4], 128, 128, 8
    $region5: #{decoder_layer.13} parent=1 // pred_fallthru
      _
    // Predicated region
    $region6: #{decoder_layer.13} parent=1 // pred_check
      _
    $region7: #{decoder_layer.13} parent=1 // pred_check_branch
      %33 = sbr.rel (0) target = $region9
    $region8: #{decoder_layer.13} parent=1 // pred_region
      %s35 = ssub.s32 16, 16
      %36 = vsyncadd [#allocation7], %s35
      %s38 = sshll.u32 [#allocation6], 4
      %s39 = int_to_ptr.vmem [resolvable:$true] %s38
      %41 = dma.hbm_to_vmem [thread:$0]  %s1, 16, %s39, [#allocation7]
    $region9: #{decoder_layer.13} parent=1 // pred_fallthru
      _
    // Predicated region
    $region10: #{decoder_layer.13} parent=1 // pred_check
      _
    $region11: #{decoder_layer.13} parent=1 // pred_check_branch
      %43 = sbr.rel (0) target = $region13
    $region12: #{decoder_layer.13} parent=1 // pred_region
      %s45 = ssub.s32 16, 16
      %46 = vsyncadd [#allocation7], %s45
      %s48 = sshll.u32 [#allocation8], 4
      %s49 = int_to_ptr.vmem [resolvable:$true] %s48
      %51 = dma.hbm_to_vmem [thread:$0]  %s2, 16, %s49, [#allocation7]
    $region13: #{decoder_layer.13} parent=1 // pred_fallthru
      _
    // Predicated region
    $region14: #{decoder_layer.13} parent=1 // pred_check
      _
    $region15: #{decoder_layer.13} parent=1 // pred_check_branch
      %53 = sbr.rel (0) target = $region17
    $region16: #{decoder_layer.13} parent=1 // pred_region
      %s55 = ssub.s32 512, 512
      %56 = vsyncadd [#allocation10], %s55
      %s57 = sshll.u32 [#allocation9], 4
      %s58 = int_to_ptr.vmem [resolvable:$true] %s57
      %63 = dma.hbm_to_vmem [thread:$0]  %s3, 512, %s58, [#allocation10], 128, 128, 8
    $region17: #{decoder_layer.13} parent=1 // pred_fallthru
      _
    // Predicated region
    $region18: #{decoder_layer.13} parent=1 // pred_check
      _
    $region19: #{decoder_layer.13} parent=1 // pred_check_branch
      %65 = sbr.rel (0) target = $region21
    $region20: #{decoder_layer.13} parent=1 // pred_region
      %s67 = ssub.s32 16, 16
      %68 = vsyncadd [#allocation10], %s67
      %s70 = sshll.u32 [#allocation11], 4
      %s71 = int_to_ptr.vmem [resolvable:$true] %s70
      %73 = dma.hbm_to_vmem [thread:$0]  %s4, 16, %s71, [#allocation10]
    $region21: #{decoder_layer.13} parent=1 // pred_fallthru
      _
    // Predicated region
    $region22: #{decoder_layer.13} parent=1 // pred_check
      _
    $region23: #{decoder_layer.13} parent=1 // pred_check_branch
      %75 = sbr.rel (0) target = $region25
    $region24: #{decoder_layer.13} parent=1 // pred_region
      %s77 = ssub.s32 1024, 1024
      %78 = vsyncadd [#allocation13], %s77
      %s79 = sshll.u32 [#allocation12], 4
      %s80 = int_to_ptr.vmem [resolvable:$true] %s79
      %85 = dma.hbm_to_vmem [thread:$0]  %s5, 1024, %s80, [#allocation13], 128, 128, 8
    $region25: #{decoder_layer.13} parent=1 // pred_fallthru
      _
    // Predicated region
    $region26: #{decoder_layer.13} parent=1 // pred_check
      _
    $region27: #{decoder_layer.13} parent=1 // pred_check_branch
      %87 = sbr.rel (0) target = $region29
    $region28: #{decoder_layer.13} parent=1 // pred_region
      %s89 = ssub.s32 16, 16
      %90 = vsyncadd [#allocation13], %s89
      %s92 = sshll.u32 [#allocation14], 4
      %s93 = int_to_ptr.vmem [resolvable:$true] %s92
      %95 = dma.hbm_to_vmem [thread:$0]  %s6, 16, %s93, [#allocation13]
    $region29: #{decoder_layer.13} parent=1 // pred_fallthru
      _
    // Predicated region
    $region30: #{decoder_layer.13} parent=1 // pred_check
      _
    $region31: #{decoder_layer.13} parent=1 // pred_check_branch
      %97 = sbr.rel (0) target = $region33
    $region32: #{decoder_layer.13} parent=1 // pred_region
      %s99 = ssub.s32 16, 16
      %100 = vsyncadd [#allocation16], %s99
      %s102 = sshll.u32 [#allocation15], 4
      %s103 = int_to_ptr.vmem [resolvable:$true] %s102
      %105 = dma.hbm_to_vmem [thread:$0]  %s7, 16, %s103, [#allocation16]
    $region33: #{decoder_layer.13} parent=1 // pred_fallthru
      _
    // Predicated region
    $region34: #{decoder_layer.13} parent=1 // pred_check
      _
    $region35: #{decoder_layer.13} parent=1 // pred_check_branch
      %107 = sbr.rel (0) target = $region37
    $region36: #{decoder_layer.13} parent=1 // pred_region
      %s109 = ssub.s32 16, 16
      %110 = vsyncadd [#allocation16], %s109
      %s112 = sshll.u32 [#allocation17], 4
      %s113 = int_to_ptr.vmem [resolvable:$true] %s112
      %115 = dma.hbm_to_vmem [thread:$0]  %s8, 16, %s113, [#allocation16]
    $region37: #{decoder_layer.13} parent=1 // pred_fallthru
      _
    // Predicated region
    $region38: #{decoder_layer.13} parent=1 // pred_check
      _
    $region39: #{decoder_layer.13} parent=1 // pred_check_branch
      %117 = sbr.rel (0) target = $region41
    $region40: #{decoder_layer.13} parent=1 // pred_region
      %118 = dma.done [#allocation4], 256
    $region41: #{decoder_layer.13} parent=1 // pred_fallthru
      _
    // Predicated region
    $region42: #{decoder_layer.13} parent=1 // pred_check
      _
    $region43: #{decoder_layer.13} parent=1 // pred_check_branch
      %120 = sbr.rel (0) target = $region45
    $region44: #{decoder_layer.13} parent=1 // pred_region
      %121 = dma.done [#allocation7], 16
    $region45: #{decoder_layer.13} parent=1 // pred_fallthru
      _
    // Predicated region
    $region46: #{decoder_layer.13} parent=1 // pred_check
      _
    $region47: #{decoder_layer.13} parent=1 // pred_check_branch
      %123 = sbr.rel (0) target = $region49
    $region48: #{decoder_layer.13} parent=1 // pred_region
      %124 = dma.done [#allocation7], 16
    $region49: #{decoder_layer.13} parent=1 // pred_fallthru
      _
    // Predicated region
    $region50: #{decoder_layer.13} parent=1 // pred_check
      _
    $region51: #{decoder_layer.13} parent=1 // pred_check_branch
      %126 = sbr.rel (0) target = $region53
    $region52: #{decoder_layer.13} parent=1 // pred_region
      %127 = dma.done [#allocation10], 512
    $region53: #{decoder_layer.13} parent=1 // pred_fallthru
      _
    // Predicated region
    $region54: #{decoder_layer.13} parent=1 // pred_check
      _
    $region55: #{decoder_layer.13} parent=1 // pred_check_branch
      %129 = sbr.rel (0) target = $region57
    $region56: #{decoder_layer.13} parent=1 // pred_region
      %130 = dma.done [#allocation10], 16
    $region57: #{decoder_layer.13} parent=1 // pred_fallthru
      _
    // Predicated region
    $region58: #{decoder_layer.13} parent=1 // pred_check
      _
    $region59: #{decoder_layer.13} parent=1 // pred_check_branch
      %132 = sbr.rel (0) target = $region61
    $region60: #{decoder_layer.13} parent=1 // pred_region
      %133 = dma.done [#allocation13], 1024
    $region61: #{decoder_layer.13} parent=1 // pred_fallthru
      _
    // Predicated region
    $region62: #{decoder_layer.13} parent=1 // pred_check
      _
    $region63: #{decoder_layer.13} parent=1 // pred_check_branch
      %135 = sbr.rel (0) target = $region65
    $region64: #{decoder_layer.13} parent=1 // pred_region
      %136 = dma.done [#allocation13], 16
    $region65: #{decoder_layer.13} parent=1 // pred_fallthru
      _
    // Predicated region
    $region66: #{decoder_layer.13} parent=1 // pred_check
      _
    $region67: #{decoder_layer.13} parent=1 // pred_check_branch
      %138 = sbr.rel (0) target = $region69
    $region68: #{decoder_layer.13} parent=1 // pred_region
      %139 = dma.done [#allocation16], 16
    $region69: #{decoder_layer.13} parent=1 // pred_fallthru
      _
    // Predicated region
    $region70: #{decoder_layer.13} parent=1 // pred_check
      _
    $region71: #{decoder_layer.13} parent=1 // pred_check_branch
      %141 = sbr.rel (0) target = $region73
    $region72: #{decoder_layer.13} parent=1 // pred_region
      %142 = dma.done [#allocation16], 16
    $region73: #{decoder_layer.13} parent=1 // pred_fallthru
      _
    %v144 = vld [vmem:[#allocation3] sm:$0xff]
    %v145 = vld [vmem:[#allocation3 + $0x8] sm:$0xff]
    %v146 = vld [vmem:[#allocation6] sm:$0x1]
    %v147 = vld [vmem:[#allocation8] sm:$0x1]
    %vm148 = vcmask 261120
    %v149 = vsel %vm148, %v144, 0.0
    %150 = vadd.xlane.f32.xlu0 %v149
    %v151 = vpop.xlane.xlu0 %150
    %v152 = vsel %vm148, %v145, 0.0
    %153 = vadd.xlane.f32.xlu0 %v152
    %v154 = vpop.xlane.xlu0 %153
    %v155 = vrcp.pop 32.0
    %v156 = vmul.f32 %v151, %v155
    %v157 = vmul.f32 %v154, %v155
    %v158 = vsub.f32 %v144, %v156
    %v159 = vsub.f32 %v145, %v157
    %v160 = vmul.f32 %v158, %v158
    %v161 = vmul.f32 %v159, %v159
    %v162 = vsel %vm148, %v160, 0.0
    %163 = vadd.xlane.f32.xlu0 %v162
    %v164 = vpop.xlane.xlu0 %163
    %v165 = vsel %vm148, %v161, 0.0
    %166 = vadd.xlane.f32.xlu0 %v165
    %v167 = vpop.xlane.xlu0 %166
    %v168 = vmul.f32 %v164, %v155
    %v169 = vmul.f32 %v167, %v155
    %v170 = vadd.f32 %v168, 1e-05
    %v171 = vadd.f32 %v169, 1e-05
    %v172 = vrsqrt.pop %v170
    %v173 = vrsqrt.pop %v171
    %v174 = vmul.f32 %v158, %v172
    %v175 = vmul.f32 %v159, %v173
    %v177 = vlaneseq
    %v178 = vshrl.u32 %v177, 7
    %v179 = vsub.s32 0, %v178
    %v180 = vrot.slane %v146, %v179
    %v182 = vmul.f32 %v174, %v180
    %v183 = vmul.f32 %v175, %v180
    %v185 = vlaneseq
    %v186 = vshrl.u32 %v185, 7
    %v187 = vsub.s32 0, %v186
    %v188 = vrot.slane %v147, %v187
    %v190 = vadd.f32 %v182, %v188
    %v191 = vadd.f32 %v183, %v188
    %v192 = vpack.c.bf16 %v191, %v190
    %v193 = vld [vmem:[#allocation9] sm:$0xff]
    %v194 = vld [vmem:[#allocation9 + $0x8] sm:$0xff]
    %v195 = vld [vmem:[#allocation9 + $0x10] sm:$0xff]
    %v196 = vld [vmem:[#allocation9 + $0x18] sm:$0xff]
    %v197 = vpack.c.bf16 %v194, %v193
    %v198 = vpack.c.bf16 %v196, %v195
    %v199 = vld [vmem:[#allocation11] sm:$0x1]
    %v201 = vlaneseq
    %v202 = vshrl.u32 %v201, 7
    %v203 = vsub.s32 0, %v202
    %v204 = vrot.slane %v199, %v203
    %v207 = vsel %vm148, %v192, 0
    %209 = vmatprep.subr.bf16.mxu0 0
    %210 = vmatpush1.bf16.msra.mxu0 %v197
    %211 = vmatprep.subr.bf16.mxu0 0
    %212 = vmatpush1.bf16.msra.mxu0 %v198
    %213 = vmatprep.subr.bf16.mxu0 0
    %214 = vmatpush1.bf16.msra.mxu0 0
    %215 = vmatprep.subr.bf16.mxu0 0
    %216 = vmatpush1.bf16.msra.mxu0 0
    %217 = vmatprep.subr.bf16.mxu0 0
    %218 = vmatpush1.bf16.msra.mxu0 0
    %219 = vmatprep.subr.bf16.mxu0 0
    %220 = vmatpush1.bf16.msra.mxu0 0
    %221 = vmatprep.subr.bf16.mxu0 0
    %222 = vmatpush1.bf16.msra.mxu0 0
    %223 = vmatprep.subr.bf16.mxu0 0
    %224 = vmatpush1.bf16.msra.mxu0 0
    %225 = vmatprep.subr.bf16.mxu0 0
    %226 = vmatpush1.bf16.msra.mxu0 0
    %227 = vmatprep.subr.bf16.mxu0 0
    %228 = vmatpush1.bf16.msra.mxu0 0
    %229 = vmatprep.subr.bf16.mxu0 0
    %230 = vmatpush1.bf16.msra.mxu0 0
    %231 = vmatprep.subr.bf16.mxu0 0
    %232 = vmatpush1.bf16.msra.mxu0 0
    %233 = vmatprep.subr.bf16.mxu0 0
    %234 = vmatpush1.bf16.msra.mxu0 0
    %235 = vmatprep.subr.bf16.mxu0 0
    %236 = vmatpush1.bf16.msra.mxu0 0
    %237 = vmatprep.subr.bf16.mxu0 0
    %238 = vmatpush1.bf16.msra.mxu0 0
    %239 = vmatprep.subr.bf16.mxu0 0
    %240 = vmatpush1.bf16.msra.mxu0 0
    %241 = vmatprep.mubr.bf16.mxu0 0
    %242 = vmatmul.mubr.bf16.gmra.mrb[0].mxu0 %v207
    %v243 = vpop.f32.mrb[0].mxu0
    %v244 = vadd.f32 %v204, %v243
    %v245 = vpop.f32.mrb[0].mxu0
    %v246 = vpop.f32.mrb[0].mxu0
    %v247 = vadd.f32 %v204, %v246
    %v248 = vpop.f32.mrb[0].mxu0
    %249 = vdwg.mxu0
    %v250 = vmax.f32 %v244, 0.0
    %v251 = vmax.f32 %v247, 0.0
    %p252 = scmp.eq.s32.totalorder 0, 0
    // Predicated region
    $region74: #{decoder_layer.13} parent=1 // pred_check
      %p253 = pneg %p252
    $region75: #{decoder_layer.13} parent=1 // pred_check_branch
      %255 = sbr.rel (%p253) target = $region77
    $region76: #{decoder_layer.13} parent=1 // pred_region
      %256 = vst.msk [vmem:[#allocation2] sm:$0xff] %vm148, 0.0
      %257 = vst.msk [vmem:[#allocation2 + $0x8] sm:$0xff] %vm148, 0.0
    $region77: #{decoder_layer.13} parent=1 // pred_fallthru
      _
    %v258 = vld [vmem:[#allocation2] sm:$0xff]
    %v259 = vld [vmem:[#allocation2 + $0x8] sm:$0xff]
    %v260 = vpack.c.bf16 %v251, %v250
    %v261 = vld [vmem:[#allocation12] sm:$0xff]
    %v262 = vld [vmem:[#allocation12 + $0x8] sm:$0xff]
    %v263 = vld [vmem:[#allocation12 + $0x10] sm:$0xff]
    %v264 = vld [vmem:[#allocation12 + $0x18] sm:$0xff]
    %v265 = vld [vmem:[#allocation12 + $0x20] sm:$0xff]
    %v266 = vld [vmem:[#allocation12 + $0x28] sm:$0xff]
    %v267 = vld [vmem:[#allocation12 + $0x30] sm:$0xff]
    %v268 = vld [vmem:[#allocation12 + $0x38] sm:$0xff]
    %v269 = vpack.c.bf16 %v262, %v261
    %v270 = vpack.c.bf16 %v264, %v263
    %v271 = vpack.c.bf16 %v266, %v265
    %v272 = vpack.c.bf16 %v268, %v267
    %vm273 = vcmask 523264
    %v275 = vsel %vm273, %v260, 0
    %277 = vmatprep.subr.bf16.mxu0 0
    %278 = vmatpush1.bf16.msra.mxu0 %v269
    %279 = vmatprep.subr.bf16.mxu0 0
    %280 = vmatpush1.bf16.msra.mxu0 %v270
    %281 = vmatprep.subr.bf16.mxu0 0
    %282 = vmatpush1.bf16.msra.mxu0 %v271
    %283 = vmatprep.subr.bf16.mxu0 0
    %284 = vmatpush1.bf16.msra.mxu0 %v272
    %285 = vmatprep.subr.bf16.mxu0 0
    %286 = vmatpush1.bf16.msra.mxu0 0
    %287 = vmatprep.subr.bf16.mxu0 0
    %288 = vmatpush1.bf16.msra.mxu0 0
    %289 = vmatprep.subr.bf16.mxu0 0
    %290 = vmatpush1.bf16.msra.mxu0 0
    %291 = vmatprep.subr.bf16.mxu0 0
    %292 = vmatpush1.bf16.msra.mxu0 0
    %293 = vmatprep.subr.bf16.mxu0 0
    %294 = vmatpush1.bf16.msra.mxu0 0
    %295 = vmatprep.subr.bf16.mxu0 0
    %296 = vmatpush1.bf16.msra.mxu0 0
    %297 = vmatprep.subr.bf16.mxu0 0
    %298 = vmatpush1.bf16.msra.mxu0 0
    %299 = vmatprep.subr.bf16.mxu0 0
    %300 = vmatpush1.bf16.msra.mxu0 0
    %301 = vmatprep.subr.bf16.mxu0 0
    %302 = vmatpush1.bf16.msra.mxu0 0
    %303 = vmatprep.subr.bf16.mxu0 0
    %304 = vmatpush1.bf16.msra.mxu0 0
    %305 = vmatprep.subr.bf16.mxu0 0
    %306 = vmatpush1.bf16.msra.mxu0 0
    %307 = vmatprep.subr.bf16.mxu0 0
    %308 = vmatpush1.bf16.msra.mxu0 0
    %309 = vmatprep.mubr.bf16.mxu0 0
    %310 = vmatmul.mubr.bf16.gmra.mrb[0].mxu0 %v275
    %v311 = vpop.f32.mrb[0].mxu0
    %v312 = vadd.f32 0.0, %v311
    %v313 = vpop.f32.mrb[0].mxu0
    %v314 = vpop.f32.mrb[0].mxu0
    %v315 = vadd.f32 0.0, %v314
    %v316 = vpop.f32.mrb[0].mxu0
    %317 = vdwg.mxu0
    %v318 = vadd.f32 %v258, %v312
    %v319 = vadd.f32 %v259, %v315
    %320 = vst.msk [vmem:[#allocation2] sm:$0xff] %vm148, %v318
    %321 = vst.msk [vmem:[#allocation2 + $0x8] sm:$0xff] %vm148, %v319
    // Predicated region
    $region78: #{decoder_layer.13} parent=1 // pred_check
      %p322 = pneg %p252
    $region79: #{decoder_layer.13} parent=1 // pred_check_branch
      %324 = sbr.rel (%p322) target = $region81
    $region80: #{decoder_layer.13} parent=1 // pred_region
      %v325 = vld [vmem:[#allocation2] sm:$0xff]
      %v326 = vld [vmem:[#allocation2 + $0x8] sm:$0xff]
      %v327 = vld [vmem:[#allocation14] sm:$0x1]
      %v329 = vlaneseq
      %v330 = vshrl.u32 %v329, 7
      %v331 = vsub.s32 0, %v330
      %v332 = vrot.slane %v327, %v331
      %v334 = vadd.f32 %v325, %v332
      %v335 = vadd.f32 %v326, %v332
      %v336 = vadd.f32 %v334, %v144
      %v337 = vadd.f32 %v335, %v145
      %v338 = vld [vmem:[#allocation15] sm:$0x1]
      %v339 = vld [vmem:[#allocation17] sm:$0x1]
      %v340 = vsel %vm148, %v336, 0.0
      %341 = vadd.xlane.f32.xlu0 %v340
      %v342 = vpop.xlane.xlu0 %341
      %v343 = vsel %vm148, %v337, 0.0
      %344 = vadd.xlane.f32.xlu0 %v343
      %v345 = vpop.xlane.xlu0 %344
      %v346 = vmul.f32 %v342, %v155
      %v347 = vmul.f32 %v345, %v155
      %v348 = vsub.f32 %v336, %v346
      %v349 = vsub.f32 %v337, %v347
      %v350 = vmul.f32 %v348, %v348
      %v351 = vmul.f32 %v349, %v349
      %v352 = vsel %vm148, %v350, 0.0
      %353 = vadd.xlane.f32.xlu0 %v352
      %v354 = vpop.xlane.xlu0 %353
      %v355 = vsel %vm148, %v351, 0.0
      %356 = vadd.xlane.f32.xlu0 %v355
      %v357 = vpop.xlane.xlu0 %356
      %v358 = vmul.f32 %v354, %v155
      %v359 = vmul.f32 %v357, %v155
      %v360 = vadd.f32 %v358, 1e-05
      %v361 = vadd.f32 %v359, 1e-05
      %v362 = vrsqrt.pop %v360
      %v363 = vrsqrt.pop %v361
      %v364 = vmul.f32 %v348, %v362
      %v365 = vmul.f32 %v349, %v363
      %v367 = vlaneseq
      %v368 = vshrl.u32 %v367, 7
      %v369 = vsub.s32 0, %v368
      %v370 = vrot.slane %v338, %v369
      %v372 = vmul.f32 %v364, %v370
      %v373 = vmul.f32 %v365, %v370
      %v375 = vlaneseq
      %v376 = vshrl.u32 %v375, 7
      %v377 = vsub.s32 0, %v376
      %v378 = vrot.slane %v339, %v377
      %v380 = vadd.f32 %v372, %v378
      %v381 = vadd.f32 %v373, %v378
      %382 = vst.msk [vmem:[#allocation18] sm:$0xff] %vm148, %v380
      %383 = vst.msk [vmem:[#allocation18 + $0x8] sm:$0xff] %vm148, %v381
    $region81: #{decoder_layer.13} parent=1 // pred_fallthru
      _
    // Predicated region
    $region82: #{decoder_layer.13} parent=1 // pred_check
      _
    $region83: #{decoder_layer.13} parent=1 // pred_check_branch
      %385 = sbr.rel (0) target = $region85
    $region84: #{decoder_layer.13} parent=1 // pred_region
      %s387 = ssub.s32 256, 256
      %388 = vsyncadd [#allocation5], %s387
      %s389 = sshll.u32 [#allocation18], 4
      %s390 = int_to_ptr.vmem [resolvable:$true] %s389
      %395 = dma.vmem_to_hbm [thread:$0]  %s390, 256, %s9, [#allocation5], 128, 128, 8
    $region85: #{decoder_layer.13} parent=1 // pred_fallthru
      _
    // Predicated region
    $region86: #{decoder_layer.13} parent=1 // pred_check
      _
    $region87: #{decoder_layer.13} parent=1 // pred_check_branch
      %397 = sbr.rel (0) target = $region89
    $region88: #{decoder_layer.13} parent=1 // pred_region
      %398 = dma.done [#allocation5], 256
    $region89: #{decoder_layer.13} parent=1 // pred_fallthru
      _
    %399 = vsyncpa [#allocation4], 1
    %400 = vsyncpa [#allocation7], 1
    %401 = vsyncpa [#allocation10], 1
    %402 = vsyncpa [#allocation13], 1
    %403 = vsyncpa [#allocation16], 1
    %404 = vsyncpa [#allocation5], 1

</llo_original>
